<compile_context>
chip_gen: v7x
topology: tpu7x:2x2x1
jax: 0.10.0
libtpu: 0.0.40
codegen_flags: <defaults>
</compile_context>

<pallas_src>
import functools

import jax
import jax.numpy as jnp
from jax.experimental import pallas as pl
from jax.experimental.pallas import tpu as pltpu


# ---------------------------------------------------------------------------
# Fused DoubleConv kernel (one batch element per grid step)
# ---------------------------------------------------------------------------

def _m1_double_conv_kernel(x_ref, w1_ref, b1_ref, w2_ref, b2_ref, o_ref,
                           xpad_ref, hpad_ref, kcat1_ref, kcat2_ref,
                           *, H, WCin, WC1):
    """Fused (conv3x3 + BN + ReLU) x 2 for one image.

    x_ref:     (1, H, W*Cin)        activations, W and C flattened on lanes
    w1_ref:    (3*W*Cin, W*C1)      banded weights, BN scale pre-folded
    b1_ref:    (1, W*C1)            folded BN shift (tiled over W)
    w2_ref:    (3*W*C1, W*C2)
    b2_ref:    (1, W*C2)
    o_ref:     (1, H, W*C2)
    xpad_ref:  (H+2, W*Cin)         zero-bordered scratch ('same' pad along H)
    hpad_ref:  (H+2, W*C1)
    kcat1_ref: (H, 3*W*Cin)         K-concatenated shifted windows for conv1
    kcat2_ref: (H, 3*W*C1)          K-concatenated shifted windows for conv2
    """
    # Zero only the two border rows of each padded scratch (interior rows are
    # fully overwritten every step).  Done unconditionally: with "parallel"
    # grid semantics a core may never run program_id 0, so a pl.when(first)
    # guard would leave its borders uninitialized.
    xpad_ref[0:1, :] = jnp.zeros((1, WCin), jnp.float32)
    xpad_ref[H + 1:H + 2, :] = jnp.zeros((1, WCin), jnp.float32)
    hpad_ref[0:1, :] = jnp.zeros((1, WC1), jnp.float32)
    hpad_ref[H + 1:H + 2, :] = jnp.zeros((1, WC1), jnp.float32)

    # ---- conv1 + BN + ReLU (intermediate stays in VMEM) --------------------
    xpad_ref[1:H + 1, :] = x_ref[0]
    # Materialize the three kh-shifted row windows exactly once, then do a
    # single K = 3*W*Cin contraction on the MXU.
    kcat1_ref[:, 0:WCin] = xpad_ref[0:H, :]
    kcat1_ref[:, WCin:2 * WCin] = xpad_ref[1:H + 1, :]
    kcat1_ref[:, 2 * WCin:3 * WCin] = xpad_ref[2:H + 2, :]
    acc = jnp.dot(kcat1_ref[...], w1_ref[...],
                  preferred_element_type=jnp.float32)
    h = jnp.maximum(acc + b1_ref[0], 0.0)                        # (H, W*C1)

    # ---- conv2 + BN + ReLU --------------------------------------------------
    hpad_ref[1:H + 1, :] = h
    kcat2_ref[:, 0:WC1] = hpad_ref[0:H, :]
    kcat2_ref[:, WC1:2 * WC1] = hpad_ref[1:H + 1, :]
    kcat2_ref[:, 2 * WC1:3 * WC1] = hpad_ref[2:H + 2, :]
    acc2 = jnp.dot(kcat2_ref[...], w2_ref[...],
                   preferred_element_type=jnp.float32)
    o_ref[0] = jnp.maximum(acc2 + b2_ref[0], 0.0)                # (H, W*C2)


# ---------------------------------------------------------------------------
# One-time weight preparation (call once at parameter-setup time)
# ---------------------------------------------------------------------------

def _banded_conv_weights(w_hwio, W):
    """Dense (3,3,Cin,Cout) 3x3 weights -> (3*W*Cin, W*Cout) banded matrix.

    out[kh*W*Cin + jin*Cin + c, jout*Cout + co] = w[kh, jin-jout+1, c, co]
    when 0 <= jin-jout+1 < 3, else 0.  The zero band implements the 'same'
    padding along W; the K ordering matches the kernel's kcat layout.
    """
    _, _, cin, cout = w_hwio.shape
    slabs = []
    for kh in range(3):
        t = jnp.zeros((W * cin, W * cout), jnp.float32)
        for kw in range(3):
            band = jnp.eye(W, k=-(kw - 1), dtype=jnp.float32)  # jin == jout+(kw-1)
            t = t + jnp.kron(band, w_hwio[kh, kw].astype(jnp.float32))
        slabs.append(t)
    return jnp.concatenate(slabs, axis=0)


def prepare_m1_params(params, W):
    """Build (once) the banded weights with BN scale folded in, plus shifts.

    Do NOT call this per forward pass; the result is reused across calls so the
    kernel-side weight traffic is a plain DMA of prebuilt arrays.
    """
    w1, s1, b1 = params["c1"]
    w2, s2, b2 = params["c2"]
    C1, C2 = w1.shape[-1], w2.shape[-1]
    # Fold BN scale into the output-channel axis of the conv weights.
    w1s = w1.astype(jnp.float32) * s1.astype(jnp.float32)
    w2s = w2.astype(jnp.float32) * s2.astype(jnp.float32)
    return {
        "w1b": _banded_conv_weights(w1s, W),                      # (3*W*Cin, W*C1)
        "b1t": jnp.tile(b1.astype(jnp.float32), W).reshape(1, W * C1),
        "w2b": _banded_conv_weights(w2s, W),                      # (3*W*C1, W*C2)
        "b2t": jnp.tile(b2.astype(jnp.float32), W).reshape(1, W * C2),
    }


# ---------------------------------------------------------------------------
# M1 forward pass
# ---------------------------------------------------------------------------

def m1_forward(x_nchw, prepped):
    """M1.forward: x (N, Cin, H, W) NCHW -> (N, 32, H, W) NCHW."""
    w1b, b1t = prepped["w1b"], prepped["b1t"]
    w2b, b2t = prepped["w2b"], prepped["b2t"]

    x = jnp.transpose(x_nchw, (0, 2, 3, 1)).astype(jnp.float32)   # NCHW -> NHWC
    N, H, W, Cin = x.shape
    WCin = W * Cin
    WC1 = b1t.shape[-1]
    WC2 = b2t.shape[-1]
    C2 = WC2 // W

    # Lane-dense activation layout: (N, H, W*C)  (reshape is free, row-major).
    xf = x.reshape(N, H, WCin)

    out = pl.pallas_call(
        functools.partial(_m1_double_conv_kernel, H=H, WCin=WCin, WC1=WC1),
        out_shape=jax.ShapeDtypeStruct((N, H, WC2), jnp.float32),
        grid=(N,),
        in_specs=[
            pl.BlockSpec((1, H, WCin), lambda n: (n, 0, 0)),
            pl.BlockSpec((3 * WCin, WC1), lambda n: (0, 0)),
            pl.BlockSpec((1, WC1), lambda n: (0, 0)),
            pl.BlockSpec((3 * WC1, WC2), lambda n: (0, 0)),
            pl.BlockSpec((1, WC2), lambda n: (0, 0)),
        ],
        out_specs=pl.BlockSpec((1, H, WC2), lambda n: (n, 0, 0)),
        scratch_shapes=[
            pltpu.VMEM((H + 2, WCin), jnp.float32),    # xpad
            pltpu.VMEM((H + 2, WC1), jnp.float32),     # hpad
            pltpu.VMEM((H, 3 * WCin), jnp.float32),    # kcat1
            pltpu.VMEM((H, 3 * WC1), jnp.float32),     # kcat2
        ],
        compiler_params=pltpu.CompilerParams(
            dimension_semantics=("parallel",),
            vmem_limit_bytes=32 * 1024 * 1024),
    )(xf, w1b, b1t, w2b, b2t)

    out_nhwc = out.reshape(N, H, W, C2)
    return jnp.transpose(out_nhwc, (0, 3, 1, 2))                  # NHWC -> NCHW


# ---------------------------------------------------------------------------
# Parameter construction (deterministic, synthetic) with BN folding
# ---------------------------------------------------------------------------

def make_conv_bn_params(key, cin, cout, eps=1e-5):
    k = jax.random.split(key, 6)
    fan_in = cin * 9
    w = jax.random.normal(k[0], (3, 3, cin, cout), jnp.float32) / jnp.sqrt(fan_in)
    b = 0.1 * jax.random.normal(k[1], (cout,), jnp.float32)
    gamma = 1.0 + 0.1 * jax.random.normal(k[2], (cout,), jnp.float32)
    beta = 0.1 * jax.random.normal(k[3], (cout,), jnp.float32)
    run_mean = 0.05 * jax.random.normal(k[4], (cout,), jnp.float32)
    run_var = 1.0 + 0.1 * jax.random.uniform(k[5], (cout,), jnp.float32)
    scale = gamma / jnp.sqrt(run_var + eps)
    shift = beta - run_mean * scale + scale * b     # fold conv bias into shift
    return w, scale, shift


# ---------------------------------------------------------------------------
# Pure-JAX reference (for correctness check)
# ---------------------------------------------------------------------------

def _ref_m1(x_nchw, params):
    x = jnp.transpose(x_nchw, (0, 2, 3, 1)).astype(jnp.float32)
    for name in ("c1", "c2"):
        w, s, b = params[name]
        y = jax.lax.conv_general_dilated(
            x, w, window_strides=(1, 1), padding="SAME",
            dimension_numbers=("NHWC", "HWIO", "NHWC"),
            precision=jax.lax.Precision.HIGHEST)
        x = jnp.maximum(y * s + b, 0.0)
    return jnp.transpose(x, (0, 3, 1, 2))


# ---------------------------------------------------------------------------

if __name__ == "__main__":
    key = jax.random.PRNGKey(0)
    kx, k1, k2 = jax.random.split(key, 3)

    N, Cin, H, W = 2, 4, 16, 16
    x = jax.random.normal(kx, (N, Cin, H, W), jnp.float32)   # NCHW, PyTorch-style

    params = {
        "c1": make_conv_bn_params(k1, Cin, 32),
        "c2": make_conv_bn_params(k2, 32, 32),
    }

    # One-time preparation (banded weights + folded BN scale); reused across
    # every forward call.
    prepped = prepare_m1_params(params, W)
    jax.block_until_ready(prepped)

    m1 = jax.jit(m1_forward)
    out = m1(x, prepped)
    jax.block_until_ready(out)

    assert out.shape == (N, 32, H, W), out.shape

    ref = _ref_m1(x, params)
    max_err = float(jnp.max(jnp.abs(out - ref)))
    assert jnp.allclose(out, ref, rtol=2e-3, atol=2e-3), max_err

    print("KERNEL_OK")
</pallas_src>

<mosaic_0001>
module attributes {stable_mosaic.version = 11 : i64} {
  func.func @_m1_double_conv_kernel(%arg0: i32, %arg1: memref<1x16x64xf32, #tpu.memory_space<vmem>>, %arg2: memref<192x512xf32, #tpu.memory_space<vmem>>, %arg3: memref<1x512xf32, #tpu.memory_space<vmem>>, %arg4: memref<1536x512xf32, #tpu.memory_space<vmem>>, %arg5: memref<1x512xf32, #tpu.memory_space<vmem>>, %arg6: memref<1x16x512xf32, #tpu.memory_space<vmem>>, %arg7: memref<18x64xf32, #tpu.memory_space<vmem>>, %arg8: memref<18x512xf32, #tpu.memory_space<vmem>>, %arg9: memref<16x192xf32, #tpu.memory_space<vmem>>, %arg10: memref<16x1536xf32, #tpu.memory_space<vmem>>) attributes {dimension_semantics = [#tpu.dimension_semantics<parallel>], iteration_bounds = array<i64: 2>, scalar_prefetch = 0 : i64, scratch_operands = 4 : i64, tpu.core_type = #tpu.core_type<tc>, window_params = [{transform_indices = @transform_0, window_bounds = array<i64: 1, 16, 64>}, {pipeline_mode = #tpu.pipeline_mode<synchronous>, transform_indices = @transform_1, window_bounds = array<i64: 192, 512>}, {pipeline_mode = #tpu.pipeline_mode<synchronous>, transform_indices = @transform_2, window_bounds = array<i64: 1, 512>}, {pipeline_mode = #tpu.pipeline_mode<synchronous>, transform_indices = @transform_3, window_bounds = array<i64: 1536, 512>}, {pipeline_mode = #tpu.pipeline_mode<synchronous>, transform_indices = @transform_4, window_bounds = array<i64: 1, 512>}, {transform_indices = @transform_5, window_bounds = array<i64: 1, 16, 512>}]} {
    %cst = arith.constant 0.000000e+00 : f32
    %0 = vector.broadcast %cst : f32 to vector<1x64xf32>
    %c0 = arith.constant 0 : index
    %c0_0 = arith.constant 0 : index
    %1 = vector.load %arg7[%c0, %c0_0] : memref<18x64xf32, #tpu.memory_space<vmem>>, vector<1x64xf32>
    tpu.vector_store %arg7[%c0, %c0_0], %0 {strides = array<i32>} : memref<18x64xf32, #tpu.memory_space<vmem>>, vector<1x64xf32>,
    %cst_1 = arith.constant 0.000000e+00 : f32
    %2 = vector.broadcast %cst_1 : f32 to vector<1x64xf32>
    %c17 = arith.constant 17 : index
    %c0_2 = arith.constant 0 : index
    %3 = vector.load %arg7[%c17, %c0_2] : memref<18x64xf32, #tpu.memory_space<vmem>>, vector<1x64xf32>
    tpu.vector_store %arg7[%c17, %c0_2], %2 {strides = array<i32>} : memref<18x64xf32, #tpu.memory_space<vmem>>, vector<1x64xf32>,
    %cst_3 = arith.constant 0.000000e+00 : f32
    %4 = vector.broadcast %cst_3 : f32 to vector<1x512xf32>
    %c0_4 = arith.constant 0 : index
    %c0_5 = arith.constant 0 : index
    %5 = vector.load %arg8[%c0_4, %c0_5] : memref<18x512xf32, #tpu.memory_space<vmem>>, vector<1x512xf32>
    tpu.vector_store %arg8[%c0_4, %c0_5], %4 {strides = array<i32>} : memref<18x512xf32, #tpu.memory_space<vmem>>, vector<1x512xf32>,
    %cst_6 = arith.constant 0.000000e+00 : f32
    %6 = vector.broadcast %cst_6 : f32 to vector<1x512xf32>
    %c17_7 = arith.constant 17 : index
    %c0_8 = arith.constant 0 : index
    %7 = vector.load %arg8[%c17_7, %c0_8] : memref<18x512xf32, #tpu.memory_space<vmem>>, vector<1x512xf32>
    tpu.vector_store %arg8[%c17_7, %c0_8], %6 {strides = array<i32>} : memref<18x512xf32, #tpu.memory_space<vmem>>, vector<1x512xf32>,
    %c0_9 = arith.constant 0 : index
    %c0_10 = arith.constant 0 : index
    %c0_11 = arith.constant 0 : index
    %8 = vector.load %arg1[%c0_9, %c0_10, %c0_11] : memref<1x16x64xf32, #tpu.memory_space<vmem>>, vector<1x16x64xf32>
    %9 = vector.shape_cast %8 : vector<1x16x64xf32> to vector<16x64xf32>
    %c1 = arith.constant 1 : index
    %c0_12 = arith.constant 0 : index
    %10 = vector.load %arg7[%c1, %c0_12] : memref<18x64xf32, #tpu.memory_space<vmem>>, vector<16x64xf32>
    tpu.vector_store %arg7[%c1, %c0_12], %9 {strides = array<i32>} : memref<18x64xf32, #tpu.memory_space<vmem>>, vector<16x64xf32>,
    %c0_13 = arith.constant 0 : index
    %c0_14 = arith.constant 0 : index
    %11 = vector.load %arg7[%c0_13, %c0_14] : memref<18x64xf32, #tpu.memory_space<vmem>>, vector<16x64xf32>
    %c0_15 = arith.constant 0 : index
    %c0_16 = arith.constant 0 : index
    %12 = vector.load %arg9[%c0_15, %c0_16] : memref<16x192xf32, #tpu.memory_space<vmem>>, vector<16x64xf32>
    tpu.vector_store %arg9[%c0_15, %c0_16], %11 {strides = array<i32>} : memref<16x192xf32, #tpu.memory_space<vmem>>, vector<16x64xf32>,
    %c1_17 = arith.constant 1 : index
    %c0_18 = arith.constant 0 : index
    %13 = vector.load %arg7[%c1_17, %c0_18] : memref<18x64xf32, #tpu.memory_space<vmem>>, vector<16x64xf32>
    %c0_19 = arith.constant 0 : index
    %c64 = arith.constant 64 : index
    %14 = vector.load %arg9[%c0_19, %c64] : memref<16x192xf32, #tpu.memory_space<vmem>>, vector<16x64xf32>
    tpu.vector_store %arg9[%c0_19, %c64], %13 {strides = array<i32>} : memref<16x192xf32, #tpu.memory_space<vmem>>, vector<16x64xf32>,
    %c2 = arith.constant 2 : index
    %c0_20 = arith.constant 0 : index
    %15 = vector.load %arg7[%c2, %c0_20] : memref<18x64xf32, #tpu.memory_space<vmem>>, vector<16x64xf32>
    %c0_21 = arith.constant 0 : index
    %c128 = arith.constant 128 : index
    %16 = vector.load %arg9[%c0_21, %c128] : memref<16x192xf32, #tpu.memory_space<vmem>>, vector<16x64xf32>
    tpu.vector_store %arg9[%c0_21, %c128], %15 {strides = array<i32>} : memref<16x192xf32, #tpu.memory_space<vmem>>, vector<16x64xf32>,
    %c0_22 = arith.constant 0 : index
    %c0_23 = arith.constant 0 : index
    %17 = vector.load %arg9[%c0_22, %c0_23] : memref<16x192xf32, #tpu.memory_space<vmem>>, vector<16x192xf32>
    %c0_24 = arith.constant 0 : index
    %c0_25 = arith.constant 0 : index
    %18 = vector.load %arg2[%c0_24, %c0_25] : memref<192x512xf32, #tpu.memory_space<vmem>>, vector<192x512xf32>
    %cst_26 = arith.constant dense<0.000000e+00> : vector<16x512xf32>
    %19 = tpu.matmul %17, %18, %cst_26 {dimension_numbers = #tpu.dot_dimension_numbers<[1], [0], [0], [1], [0, 0, 1, 1], [], []>} : vector<16x192xf32>, vector<192x512xf32>, vector<16x512xf32> -> vector<16x512xf32>
    %c0_27 = arith.constant 0 : index
    %c0_28 = arith.constant 0 : index
    %20 = vector.load %arg3[%c0_27, %c0_28] : memref<1x512xf32, #tpu.memory_space<vmem>>, vector<1x512xf32>
    %21 = vector.shape_cast %20 : vector<1x512xf32> to vector<512xf32>
    %22 = vector.shape_cast %21 : vector<512xf32> to vector<1x512xf32>
    %23 = vector.broadcast %22 : vector<1x512xf32> to vector<16x512xf32>
    %24 = arith.addf %19, %23 : vector<16x512xf32>
    %cst_29 = arith.constant 0.000000e+00 : f32
    %25 = vector.broadcast %cst_29 : f32 to vector<16x512xf32>
    %26 = arith.maximumf %24, %25 : vector<16x512xf32>
    %c1_30 = arith.constant 1 : index
    %c0_31 = arith.constant 0 : index
    %27 = vector.load %arg8[%c1_30, %c0_31] : memref<18x512xf32, #tpu.memory_space<vmem>>, vector<16x512xf32>
    tpu.vector_store %arg8[%c1_30, %c0_31], %26 {strides = array<i32>} : memref<18x512xf32, #tpu.memory_space<vmem>>, vector<16x512xf32>,
    %c0_32 = arith.constant 0 : index
    %c0_33 = arith.constant 0 : index
    %28 = vector.load %arg8[%c0_32, %c0_33] : memref<18x512xf32, #tpu.memory_space<vmem>>, vector<16x512xf32>
    %c0_34 = arith.constant 0 : index
    %c0_35 = arith.constant 0 : index
    %29 = vector.load %arg10[%c0_34, %c0_35] : memref<16x1536xf32, #tpu.memory_space<vmem>>, vector<16x512xf32>
    tpu.vector_store %arg10[%c0_34, %c0_35], %28 {strides = array<i32>} : memref<16x1536xf32, #tpu.memory_space<vmem>>, vector<16x512xf32>,
    %c1_36 = arith.constant 1 : index
    %c0_37 = arith.constant 0 : index
    %30 = vector.load %arg8[%c1_36, %c0_37] : memref<18x512xf32, #tpu.memory_space<vmem>>, vector<16x512xf32>
    %c0_38 = arith.constant 0 : index
    %c512 = arith.constant 512 : index
    %31 = vector.load %arg10[%c0_38, %c512] : memref<16x1536xf32, #tpu.memory_space<vmem>>, vector<16x512xf32>
    tpu.vector_store %arg10[%c0_38, %c512], %30 {strides = array<i32>} : memref<16x1536xf32, #tpu.memory_space<vmem>>, vector<16x512xf32>,
    %c2_39 = arith.constant 2 : index
    %c0_40 = arith.constant 0 : index
    %32 = vector.load %arg8[%c2_39, %c0_40] : memref<18x512xf32, #tpu.memory_space<vmem>>, vector<16x512xf32>
    %c0_41 = arith.constant 0 : index
    %c1024 = arith.constant 1024 : index
    %33 = vector.load %arg10[%c0_41, %c1024] : memref<16x1536xf32, #tpu.memory_space<vmem>>, vector<16x512xf32>
    tpu.vector_store %arg10[%c0_41, %c1024], %32 {strides = array<i32>} : memref<16x1536xf32, #tpu.memory_space<vmem>>, vector<16x512xf32>,
    %c0_42 = arith.constant 0 : index
    %c0_43 = arith.constant 0 : index
    %34 = vector.load %arg10[%c0_42, %c0_43] : memref<16x1536xf32, #tpu.memory_space<vmem>>, vector<16x1536xf32>
    %c0_44 = arith.constant 0 : index
    %c0_45 = arith.constant 0 : index
    %35 = vector.load %arg4[%c0_44, %c0_45] : memref<1536x512xf32, #tpu.memory_space<vmem>>, vector<1536x512xf32>
    %cst_46 = arith.constant dense<0.000000e+00> : vector<16x512xf32>
    %36 = tpu.matmul %34, %35, %cst_46 {dimension_numbers = #tpu.dot_dimension_numbers<[1], [0], [0], [1], [0, 0, 1, 1], [], []>} : vector<16x1536xf32>, vector<1536x512xf32>, vector<16x512xf32> -> vector<16x512xf32>
    %c0_47 = arith.constant 0 : index
    %c0_48 = arith.constant 0 : index
    %37 = vector.load %arg5[%c0_47, %c0_48] : memref<1x512xf32, #tpu.memory_space<vmem>>, vector<1x512xf32>
    %38 = vector.shape_cast %37 : vector<1x512xf32> to vector<512xf32>
    %39 = vector.shape_cast %38 : vector<512xf32> to vector<1x512xf32>
    %40 = vector.broadcast %39 : vector<1x512xf32> to vector<16x512xf32>
    %41 = arith.addf %36, %40 : vector<16x512xf32>
    %cst_49 = arith.constant 0.000000e+00 : f32
    %42 = vector.broadcast %cst_49 : f32 to vector<16x512xf32>
    %43 = arith.maximumf %41, %42 : vector<16x512xf32>
    %c0_50 = arith.constant 0 : index
    %c0_51 = arith.constant 0 : index
    %c0_52 = arith.constant 0 : index
    %44 = vector.load %arg6[%c0_50, %c0_51, %c0_52] : memref<1x16x512xf32, #tpu.memory_space<vmem>>, vector<1x16x512xf32>
    %45 = vector.shape_cast %44 : vector<1x16x512xf32> to vector<16x512xf32>
    %46 = vector.shape_cast %43 : vector<16x512xf32> to vector<1x16x512xf32>
    tpu.vector_store %arg6[%c0_50, %c0_51, %c0_52], %46 {strides = array<i32>} : memref<1x16x512xf32, #tpu.memory_space<vmem>>, vector<1x16x512xf32>,
    return
  }
  func.func @transform_0(%arg0: i32) -> (i32, i32, i32) {
    %c0_i32 = arith.constant 0 : i32
    %c0_i32_0 = arith.constant 0 : i32
    %c0_i32_1 = arith.constant 0 : i32
    return %arg0, %c0_i32, %c0_i32_0 : i32, i32, i32
  }
  func.func @transform_1(%arg0: i32) -> (i32, i32) {
    %c0_i32 = arith.constant 0 : i32
    %c0_i32_0 = arith.constant 0 : i32
    %c0_i32_1 = arith.constant 0 : i32
    return %c0_i32, %c0_i32_0 : i32, i32
  }
  func.func @transform_2(%arg0: i32) -> (i32, i32) {
    %c0_i32 = arith.constant 0 : i32
    %c0_i32_0 = arith.constant 0 : i32
    %c0_i32_1 = arith.constant 0 : i32
    return %c0_i32, %c0_i32_0 : i32, i32
  }
  func.func @transform_3(%arg0: i32) -> (i32, i32) {
    %c0_i32 = arith.constant 0 : i32
    %c0_i32_0 = arith.constant 0 : i32
    %c0_i32_1 = arith.constant 0 : i32
    return %c0_i32, %c0_i32_0 : i32, i32
  }
  func.func @transform_4(%arg0: i32) -> (i32, i32) {
    %c0_i32 = arith.constant 0 : i32
    %c0_i32_0 = arith.constant 0 : i32
    %c0_i32_1 = arith.constant 0 : i32
    return %c0_i32, %c0_i32_0 : i32, i32
  }
  func.func @transform_5(%arg0: i32) -> (i32, i32, i32) {
    %c0_i32 = arith.constant 0 : i32
    %c0_i32_0 = arith.constant 0 : i32
    %c0_i32_1 = arith.constant 0 : i32
    return %arg0, %c0_i32, %c0_i32_0 : i32, i32, i32
  }
}

</mosaic_0001>

<llo_original>
// kernel: m1_forward.1
$region0: #{m1_forward.1}
  #allocation0 [shape = 'u32[]', space=smem, size = 0x4, offset = 0x4, fixed_abs, tag = 'smem constant byte address 0x4 - core index']
  #allocation1 [shape = 'u32[144,128]{1,0:T(1,128)}', space=vmem, size = 0x12000, scoped, tag = 'internal scratch']
  #allocation2 [shape = 'f32[18,64]{1,0:T(8,128)}', space=vmem, size = 0x3000, scoped, tag = 'scratch operand']
  #allocation3 [shape = 'f32[18,512]{1,0:T(8,128)}', space=vmem, size = 0xc000, scoped, tag = 'scratch operand']
  #allocation4 [shape = 'f32[16,192]{1,0:T(8,128)}', space=vmem, size = 0x4000, scoped, tag = 'scratch operand']
  #allocation5 [shape = 'f32[16,1536]{1,0:T(8,128)}', space=vmem, size = 0x18000, scoped, tag = 'scratch operand']
  %s0 = inlined_call_operand.vmem [shape: f32[2,16,64], index: 0, kind: input, shape index: {}]
  %s1 = inlined_call_operand.hbm [shape: f32[192,512], index: 1, kind: input, shape index: {}]
  %s2 = inlined_call_operand.hbm [shape: f32[1,512], index: 2, kind: input, shape index: {}]
  %s3 = inlined_call_operand.hbm [shape: f32[1536,512], index: 3, kind: input, shape index: {}]
  %s4 = inlined_call_operand.hbm [shape: f32[1,512], index: 4, kind: input, shape index: {}]
  %s5 = inlined_call_operand.vmem [shape: f32[2,16,512], index: 5, kind: output, shape index: {}]
  %s6 = sld [smem:[#allocation0]]
  $region69: #{m1_forward.1} parent=0
    _
  %s8 = ssub.s32 1, %s6
  %s9 = scalar_select 0, %s8, %s6
  $region1: #{m1_forward.1} parent=0
    #allocation6 [shape = 'u8[393216]{0}', space=vmem, size = 0x60000, scoped, tag = 'input window, operand 1, single buffered']
    #allocation7 [shape = 's32[2]{0}', space=sflag, size = 0x8, scoped, tag = 'scoped memory for m1_forward.1']
    #allocation8 [shape = 'u8[2048]{0}', space=vmem, size = 0x800, scoped, tag = 'input window, operand 2, single buffered']
    #allocation9 [shape = 's32[1]{0}', space=sflag, size = 0x4, scoped, tag = 'scoped memory for m1_forward.1']
    #allocation10 [shape = 'u8[3145728]{0}', space=vmem, size = 0x300000, scoped, tag = 'input window, operand 3, single buffered']
    #allocation11 [shape = 'u8[2048]{0}', space=vmem, size = 0x800, scoped, tag = 'input window, operand 4, single buffered']
    #allocation12 [shape = 's32[1]{0}', space=sflag, size = 0x4, scoped, tag = 'scoped memory for m1_forward.1']
    %10 = vsyncpa [#allocation7], 0
    %11 = vsyncpa [#allocation9], 0
    %12 = vsyncpa [#allocation12], 0
    loop: start=0, step=1, limit=4
    $region2: #{m1_forward.1} parent=1 // loop_pre_header
      _
    $region3: #{m1_forward.1} parent=1 // loop_header
      %s14 = sphi 0, %s18
      %p15 = scmp.ge.s32.totalorder %s14, 4
      %s24 = sphi 0, %s26
      %s27 = sphi 0, %s24
      %s28 = sphi 0, %s27
      %s44 = sphi 0, %s28
      %s48 = sphi 0, %s48
      %s50 = sphi 0, %s48
      %s51 = sphi 0, %s50
      %s65 = sphi 0, %s51
      %s69 = sphi 0, %s69
      %s71 = sphi 0, %s69
      %s72 = sphi 0, %s71
      %s86 = sphi 0, %s72
      %s90 = sphi 0, %s90
      %s92 = sphi 0, %s90
      %s93 = sphi 0, %s92
      %s107 = sphi 0, %s93
      %s111 = sphi 0, %s111
      %s113 = sphi 0, %s111
      %s114 = sphi 0, %s113
      %s128 = sphi 0, %s114
      %s134 = sphi 0, %s136
      %s137 = sphi 0, %s134
      %s138 = sphi 0, %s137
      %s154 = sphi 0, %s138
    $region4: #{m1_forward.1} parent=1 // loop_header_branch
      %17 = sbr.rel (%p15) target = $region8
    $region5: #{m1_forward.1} parent=1 // loop_body
      %s19 = ssub.s32 %s14, 1
      %s20 = ssub.s32 %s14, 2
      %s21 = sadd.s32 %s14, 1
      %s22 = ssub.s32 %s14, %s21
      %p23 = scmp.eq.s32.totalorder %s22, 0
      %s25 = sadd.s32 %s24, 1
      %s26 = scalar_select %p23, %s24, %s25
      %p29 = pneg %p23
      %p30 = scmp.eq.s32.totalorder %s14, 1
      %p31 = por %p29, %p30
      %p32 = scmp.ne.s32.totalorder %s24, %s27
      %p33 = scmp.eq.s32.totalorder %s14, 0
      %p34 = por %p32, %p33
      %p35 = scmp.ne.s32.totalorder %s24, %s27
      %p36 = scmp.eq.s32.totalorder %s19, 1
      %p37 = por %p35, %p36
      %p38 = scmp.ne.s32.totalorder %s27, %s28
      %p39 = scmp.eq.s32.totalorder %s19, 0
      %p40 = por %p38, %p39
      %p41 = scmp.ne.s32.totalorder %s27, %s28
      %p42 = scmp.eq.s32.totalorder %s20, 1
      %p43 = por %p41, %p42
      %p45 = scmp.ne.s32.totalorder %s28, %s44
      %p46 = scmp.eq.s32.totalorder %s20, 0
      %p47 = por %p45, %p46
      %s49 = sadd.s32 %s48, 1
      %p52 = scmp.eq.s32.totalorder %s14, 1
      %p53 = scmp.ne.s32.totalorder %s48, %s50
      %p54 = scmp.eq.s32.totalorder %s14, 0
      %p55 = por %p53, %p54
      %p56 = scmp.ne.s32.totalorder %s48, %s50
      %p57 = scmp.eq.s32.totalorder %s19, 1
      %p58 = por %p56, %p57
      %p59 = scmp.ne.s32.totalorder %s50, %s51
      %p60 = scmp.eq.s32.totalorder %s19, 0
      %p61 = por %p59, %p60
      %p62 = scmp.ne.s32.totalorder %s50, %s51
      %p63 = scmp.eq.s32.totalorder %s20, 1
      %p64 = por %p62, %p63
      %p66 = scmp.ne.s32.totalorder %s51, %s65
      %p67 = scmp.eq.s32.totalorder %s20, 0
      %p68 = por %p66, %p67
      %s70 = sadd.s32 %s69, 1
      %p73 = scmp.eq.s32.totalorder %s14, 1
      %p74 = scmp.ne.s32.totalorder %s69, %s71
      %p75 = scmp.eq.s32.totalorder %s14, 0
      %p76 = por %p74, %p75
      %p77 = scmp.ne.s32.totalorder %s69, %s71
      %p78 = scmp.eq.s32.totalorder %s19, 1
      %p79 = por %p77, %p78
      %p80 = scmp.ne.s32.totalorder %s71, %s72
      %p81 = scmp.eq.s32.totalorder %s19, 0
      %p82 = por %p80, %p81
      %p83 = scmp.ne.s32.totalorder %s71, %s72
      %p84 = scmp.eq.s32.totalorder %s20, 1
      %p85 = por %p83, %p84
      %p87 = scmp.ne.s32.totalorder %s72, %s86
      %p88 = scmp.eq.s32.totalorder %s20, 0
      %p89 = por %p87, %p88
      %s91 = sadd.s32 %s90, 1
      %p94 = scmp.eq.s32.totalorder %s14, 1
      %p95 = scmp.ne.s32.totalorder %s90, %s92
      %p96 = scmp.eq.s32.totalorder %s14, 0
      %p97 = por %p95, %p96
      %p98 = scmp.ne.s32.totalorder %s90, %s92
      %p99 = scmp.eq.s32.totalorder %s19, 1
      %p100 = por %p98, %p99
      %p101 = scmp.ne.s32.totalorder %s92, %s93
      %p102 = scmp.eq.s32.totalorder %s19, 0
      %p103 = por %p101, %p102
      %p104 = scmp.ne.s32.totalorder %s92, %s93
      %p105 = scmp.eq.s32.totalorder %s20, 1
      %p106 = por %p104, %p105
      %p108 = scmp.ne.s32.totalorder %s93, %s107
      %p109 = scmp.eq.s32.totalorder %s20, 0
      %p110 = por %p108, %p109
      %s112 = sadd.s32 %s111, 1
      %p115 = scmp.eq.s32.totalorder %s14, 1
      %p116 = scmp.ne.s32.totalorder %s111, %s113
      %p117 = scmp.eq.s32.totalorder %s14, 0
      %p118 = por %p116, %p117
      %p119 = scmp.ne.s32.totalorder %s111, %s113
      %p120 = scmp.eq.s32.totalorder %s19, 1
      %p121 = por %p119, %p120
      %p122 = scmp.ne.s32.totalorder %s113, %s114
      %p123 = scmp.eq.s32.totalorder %s19, 0
      %p124 = por %p122, %p123
      %p125 = scmp.ne.s32.totalorder %s113, %s114
      %p126 = scmp.eq.s32.totalorder %s20, 1
      %p127 = por %p125, %p126
      %p129 = scmp.ne.s32.totalorder %s114, %s128
      %p130 = scmp.eq.s32.totalorder %s20, 0
      %p131 = por %p129, %p130
      %s132 = ssub.s32 %s14, %s21
      %p133 = scmp.eq.s32.totalorder %s132, 0
      %s135 = sadd.s32 %s134, 1
      %s136 = scalar_select %p133, %s134, %s135
      %p139 = pneg %p133
      %p140 = scmp.eq.s32.totalorder %s14, 1
      %p141 = por %p139, %p140
      %p142 = scmp.ne.s32.totalorder %s134, %s137
      %p143 = scmp.eq.s32.totalorder %s14, 0
      %p144 = por %p142, %p143
      %p145 = scmp.ne.s32.totalorder %s134, %s137
      %p146 = scmp.eq.s32.totalorder %s19, 1
      %p147 = por %p145, %p146
      %p148 = scmp.ne.s32.totalorder %s137, %s138
      %p149 = scmp.eq.s32.totalorder %s19, 0
      %p150 = por %p148, %p149
      %p151 = scmp.ne.s32.totalorder %s137, %s138
      %p152 = scmp.eq.s32.totalorder %s20, 1
      %p153 = por %p151, %p152
      %p155 = scmp.ne.s32.totalorder %s138, %s154
      %p156 = scmp.eq.s32.totalorder %s20, 0
      %p157 = por %p155, %p156
      %p158 = scmp.le.s32.totalorder 1, %s14
      %p159 = scmp.lt.s32.totalorder %s14, 3
      %p160 = pnand %p158, %p159
      %p161 = pneg %p160
      // Predicated region
      $region9: #{m1_forward.1} parent=5 // pred_check
        _
      $region10: #{m1_forward.1} parent=5 // pred_check_branch
        %163 = sbr.rel (%p160) target = $region12
      $region11: #{m1_forward.1} parent=5 // pred_region
        %s164 = ssub.s32 %s14, 1
        // Predicated region
        $region13: #{m1_forward.1} parent=11 // pred_check
          %p165 = pneg %p61
        $region14: #{m1_forward.1} parent=11 // pred_check_branch
          %167 = sbr.rel (%p165) target = $region16
        $region15: #{m1_forward.1} parent=11 // pred_region
          %s169 = ssub.s32 12288, 12288
          %170 = vsyncadd [#allocation7], %s169
          %s171 = sshll.u32 [#allocation6], 4
          %s172 = int_to_ptr.vmem [resolvable:$true] %s171
          %177 = dma.hbm_to_vmem [thread:$0]  %s1, 12288, %s172, [#allocation7], 512, 512, 32
        $region16: #{m1_forward.1} parent=11 // pred_fallthru
          _
        // Predicated region
        $region17: #{m1_forward.1} parent=11 // pred_check
          %p178 = pneg %p82
        $region18: #{m1_forward.1} parent=11 // pred_check_branch
          %180 = sbr.rel (%p178) target = $region20
        $region19: #{m1_forward.1} parent=11 // pred_region
          %s182 = ssub.s32 64, 64
          %183 = vsyncadd [#allocation9], %s182
          %s185 = sshll.u32 [#allocation8], 4
          %s186 = int_to_ptr.vmem [resolvable:$true] %s185
          %188 = dma.hbm_to_vmem [thread:$0]  %s2, 64, %s186, [#allocation9]
        $region20: #{m1_forward.1} parent=11 // pred_fallthru
          _
        // Predicated region
        $region21: #{m1_forward.1} parent=11 // pred_check
          %p189 = pneg %p103
        $region22: #{m1_forward.1} parent=11 // pred_check_branch
          %191 = sbr.rel (%p189) target = $region24
        $region23: #{m1_forward.1} parent=11 // pred_region
          %s193 = ssub.s32 98304, 98304
          %194 = vsyncadd [#allocation9], %s193
          %s195 = sshll.u32 [#allocation10], 4
          %s196 = int_to_ptr.vmem [resolvable:$true] %s195
          %201 = dma.hbm_to_vmem [thread:$0]  %s3, 98304, %s196, [#allocation9], 512, 512, 32
        $region24: #{m1_forward.1} parent=11 // pred_fallthru
          _
        // Predicated region
        $region25: #{m1_forward.1} parent=11 // pred_check
          %p202 = pneg %p124
        $region26: #{m1_forward.1} parent=11 // pred_check_branch
          %204 = sbr.rel (%p202) target = $region28
        $region27: #{m1_forward.1} parent=11 // pred_region
          %s206 = ssub.s32 64, 64
          %207 = vsyncadd [#allocation12], %s206
          %s209 = sshll.u32 [#allocation11], 4
          %s210 = int_to_ptr.vmem [resolvable:$true] %s209
          %212 = dma.hbm_to_vmem [thread:$0]  %s4, 64, %s210, [#allocation12]
        $region28: #{m1_forward.1} parent=11 // pred_fallthru
          _
      $region12: #{m1_forward.1} parent=5 // pred_fallthru
        _
      %p213 = scmp.lt.s32.totalorder %s14, 2
      // Predicated region
      $region29: #{m1_forward.1} parent=5 // pred_check
        %p214 = pneg %p213
      $region30: #{m1_forward.1} parent=5 // pred_check_branch
        %216 = sbr.rel (%p214) target = $region32
      $region31: #{m1_forward.1} parent=5 // pred_region
        // Predicated region
        $region33: #{m1_forward.1} parent=31 // pred_check
          %p217 = pneg %p34
        $region34: #{m1_forward.1} parent=31 // pred_check_branch
          %219 = sbr.rel (%p217) target = $region36
        $region35: #{m1_forward.1} parent=31 // pred_region
          %p220 = scmp.lt.s32.totalorder %s14, 1
          %s221 = scalar_select %p220, %s14, 1
          %s222 = smul.addr %s221, 2
          %s223 = smul.addr %s222, 8
          %s224 = scalar_lea.vmem %s0, %s223
        $region36: #{m1_forward.1} parent=31 // pred_fallthru
          _
      $region32: #{m1_forward.1} parent=5 // pred_fallthru
        _
      %p225 = scmp.le.s32.totalorder 1, %s14
      %p226 = scmp.lt.s32.totalorder %s14, 3
      %p227 = pnand %p225, %p226
      %p228 = pneg %p227
      // Predicated region
      $region37: #{m1_forward.1} parent=5 // pred_check
        _
      $region38: #{m1_forward.1} parent=5 // pred_check_branch
        %230 = sbr.rel (%p227) target = $region40
      $region39: #{m1_forward.1} parent=5 // pred_region
        %s231 = ssub.s32 %s14, 1
        // Predicated region
        $region41: #{m1_forward.1} parent=39 // pred_check
          %p232 = pneg %p61
        $region42: #{m1_forward.1} parent=39 // pred_check_branch
          %234 = sbr.rel (%p232) target = $region44
        $region43: #{m1_forward.1} parent=39 // pred_region
          %235 = dma.done [#allocation7], 12288
        $region44: #{m1_forward.1} parent=39 // pred_fallthru
          _
        // Predicated region
        $region45: #{m1_forward.1} parent=39 // pred_check
          %p236 = pneg %p82
        $region46: #{m1_forward.1} parent=39 // pred_check_branch
          %238 = sbr.rel (%p236) target = $region48
        $region47: #{m1_forward.1} parent=39 // pred_region
          %239 = dma.done [#allocation9], 64
        $region48: #{m1_forward.1} parent=39 // pred_fallthru
          _
        // Predicated region
        $region49: #{m1_forward.1} parent=39 // pred_check
          %p240 = pneg %p103
        $region50: #{m1_forward.1} parent=39 // pred_check_branch
          %242 = sbr.rel (%p240) target = $region52
        $region51: #{m1_forward.1} parent=39 // pred_region
          %243 = dma.done [#allocation9], 98304
        $region52: #{m1_forward.1} parent=39 // pred_fallthru
          _
        // Predicated region
        $region53: #{m1_forward.1} parent=39 // pred_check
          %p244 = pneg %p124
        $region54: #{m1_forward.1} parent=39 // pred_check_branch
          %246 = sbr.rel (%p244) target = $region56
        $region55: #{m1_forward.1} parent=39 // pred_region
          %247 = dma.done [#allocation12], 64
        $region56: #{m1_forward.1} parent=39 // pred_fallthru
          _
        %p248 = scmp.lt.s32.totalorder %s19, 1
        %s249 = scalar_select %p248, %s19, 1
        %s250 = smul.addr %s249, 2
        %s251 = smul.addr %s250, 8
        %s252 = scalar_lea.vmem %s0, %s251
        %p253 = pneg %p40
        %p254 = pneg %p37
        %p255 = pneg %p61
        %p256 = pneg %p58
        %p257 = pneg %p82
        %p258 = pneg %p79
        %p259 = pneg %p103
        %p260 = pneg %p100
        %p261 = pneg %p124
        %p262 = pneg %p121
        %p263 = pneg %p150
        %p264 = pneg %p147
        %p265 = scmp.lt.s32.totalorder %s19, 1
        %s266 = scalar_select %p265, %s19, 1
        %s267 = smul.addr %s266, 8
        %s268 = smul.addr %s267, 8
        %s269 = scalar_lea.vmem %s5, %s268
        %p270 = scmp.lt.s32.totalorder %s19, 1
        %s271 = scalar_select %p270, %s19, 1
        %s272 = smul.addr %s271, 2
        %s273 = smul.addr %s272, 8
        %s274 = scalar_lea.vmem %s0, %s273
        %p275 = scmp.lt.s32.totalorder %s19, 1
        %s276 = scalar_select %p275, %s19, 1
        %s277 = smul.addr %s276, 8
        %s278 = smul.addr %s277, 8
        %s279 = scalar_lea.vmem %s5, %s278
        %vm280 = vcmask 516096
        %281 = vst.msk [vmem:[#allocation2] sm:$0x1] %vm280, 0.0
        %282 = vst.msk [vmem:[#allocation2 + $0x11] sm:$0x1] %vm280, 0.0
        %v283 = vlaneseq
        %vm284 = vcmp.ge.s32.totalorder %v283, 0
        %vm285 = vcmp.lt.s32.totalorder %v283, 512
        %vm286 = vmand %vm284, %vm285
        %287 = vst.msk [vmem:[#allocation3] ss:$8 sm:$0xf] %vm286, 0.0
        %288 = vst.msk [vmem:[#allocation3] ss:$8 sm:$0x0] %vm286, 0.0
        %s289 = scalar_lea.vmem [#allocation3], 65
        %290 = vst.msk [vmem:[%s289] ss:$8 sm:$0xf] %vm286, 0.0
        %291 = vst.msk [vmem:[%s289] ss:$8 sm:$0x0] %vm286, 0.0
        %v292 = vld [vmem:[%s274] sm:$0xff]
        %v293 = vld [vmem:[%s274 + $0x8] sm:$0xff]
        %vm294 = vcmask 523264
        %295 = vst.msk [vmem:[#allocation2 + $0x1] sm:$0xff] %vm294, %v292
        %296 = vst.msk [vmem:[#allocation2 + $0x9] sm:$0xff] %vm294, %v293
        %v297 = vld [vmem:[#allocation2] sm:$0xff]
        %v298 = vld [vmem:[#allocation2 + $0x8] sm:$0xff]
        %299 = vst.msk [vmem:[#allocation4] sm:$0xff] %vm294, %v297
        %300 = vst.msk [vmem:[#allocation4 + $0x10] sm:$0xff] %vm294, %v298
        %v301 = vld [vmem:[#allocation2 + $0x1] sm:$0xff]
        %v302 = vld [vmem:[#allocation2 + $0x9] sm:$0xff]
        %305 = vrot.lane.b32.xlu0 %v301, 64
        %v306 = vpop.permute.xlu0 %305
        %307 = vrot.lane.b32.xlu0 %v302, 64
        %v308 = vpop.permute.xlu0 %307
        %vm311 = vcmask 1048064
        %312 = vst.msk [vmem:[#allocation4] sm:$0xff] %vm311, %v306
        %313 = vst.msk [vmem:[#allocation4 + $0x10] sm:$0xff] %vm311, %v308
        %v314 = vld [vmem:[#allocation2 + $0x2] sm:$0xff]
        %v315 = vld [vmem:[#allocation2 + $0xa] sm:$0xff]
        %316 = vst.msk [vmem:[#allocation4 + $0x8] sm:$0xff] %vm294, %v314
        %317 = vst.msk [vmem:[#allocation4 + $0x18] sm:$0xff] %vm294, %v315
        %v318 = vld [vmem:[#allocation4] sm:$0xff]
        %v319 = vld [vmem:[#allocation4 + $0x8] sm:$0xff]
        %v320 = vld [vmem:[#allocation4 + $0x10] sm:$0xff]
        %v321 = vld [vmem:[#allocation4 + $0x18] sm:$0xff]
        %v322 = vld [vmem:[#allocation6] sm:$0xff]
        %v323 = vld [vmem:[#allocation6 + $0x8] sm:$0xff]
        %v324 = vld [vmem:[#allocation6 + $0x10] sm:$0xff]
        %v325 = vld [vmem:[#allocation6 + $0x18] sm:$0xff]
        %v326 = vld [vmem:[#allocation6 + $0x20] sm:$0xff]
        %v327 = vld [vmem:[#allocation6 + $0x28] sm:$0xff]
        %v328 = vld [vmem:[#allocation6 + $0x30] sm:$0xff]
        %v329 = vld [vmem:[#allocation6 + $0x38] sm:$0xff]
        %v330 = vld [vmem:[#allocation6 + $0x40] sm:$0xff]
        %v331 = vld [vmem:[#allocation6 + $0x48] sm:$0xff]
        %v332 = vld [vmem:[#allocation6 + $0x50] sm:$0xff]
        %v333 = vld [vmem:[#allocation6 + $0x58] sm:$0xff]
        %v334 = vld [vmem:[#allocation6 + $0x60] sm:$0xff]
        %v335 = vld [vmem:[#allocation6 + $0x68] sm:$0xff]
        %v336 = vld [vmem:[#allocation6 + $0x70] sm:$0xff]
        %v337 = vld [vmem:[#allocation6 + $0x78] sm:$0xff]
        %v338 = vld [vmem:[#allocation6 + $0x80] sm:$0xff]
        %v339 = vld [vmem:[#allocation6 + $0x88] sm:$0xff]
        %v340 = vld [vmem:[#allocation6 + $0x90] sm:$0xff]
        %v341 = vld [vmem:[#allocation6 + $0x98] sm:$0xff]
        %v342 = vld [vmem:[#allocation6 + $0xa0] sm:$0xff]
        %v343 = vld [vmem:[#allocation6 + $0xa8] sm:$0xff]
        %v344 = vld [vmem:[#allocation6 + $0xb0] sm:$0xff]
        %v345 = vld [vmem:[#allocation6 + $0xb8] sm:$0xff]
        %v346 = vld [vmem:[#allocation6 + $0xc0] sm:$0xff]
        %v347 = vld [vmem:[#allocation6 + $0xc8] sm:$0xff]
        %v348 = vld [vmem:[#allocation6 + $0xd0] sm:$0xff]
        %v349 = vld [vmem:[#allocation6 + $0xd8] sm:$0xff]
        %v350 = vld [vmem:[#allocation6 + $0xe0] sm:$0xff]
        %v351 = vld [vmem:[#allocation6 + $0xe8] sm:$0xff]
        %v352 = vld [vmem:[#allocation6 + $0xf0] sm:$0xff]
        %v353 = vld [vmem:[#allocation6 + $0xf8] sm:$0xff]
        %v354 = vld [vmem:[#allocation6 + $0x100] sm:$0xff]
        %v355 = vld [vmem:[#allocation6 + $0x108] sm:$0xff]
        %v356 = vld [vmem:[#allocation6 + $0x110] sm:$0xff]
        %v357 = vld [vmem:[#allocation6 + $0x118] sm:$0xff]
        %v358 = vld [vmem:[#allocation6 + $0x120] sm:$0xff]
        %v359 = vld [vmem:[#allocation6 + $0x128] sm:$0xff]
        %v360 = vld [vmem:[#allocation6 + $0x130] sm:$0xff]
        %v361 = vld [vmem:[#allocation6 + $0x138] sm:$0xff]
        %v362 = vld [vmem:[#allocation6 + $0x140] sm:$0xff]
        %v363 = vld [vmem:[#allocation6 + $0x148] sm:$0xff]
        %v364 = vld [vmem:[#allocation6 + $0x150] sm:$0xff]
        %v365 = vld [vmem:[#allocation6 + $0x158] sm:$0xff]
        %v366 = vld [vmem:[#allocation6 + $0x160] sm:$0xff]
        %v367 = vld [vmem:[#allocation6 + $0x168] sm:$0xff]
        %v368 = vld [vmem:[#allocation6 + $0x170] sm:$0xff]
        %v369 = vld [vmem:[#allocation6 + $0x178] sm:$0xff]
        %v370 = vld [vmem:[#allocation6 + $0x180] sm:$0xff]
        %v371 = vld [vmem:[#allocation6 + $0x188] sm:$0xff]
        %v372 = vld [vmem:[#allocation6 + $0x190] sm:$0xff]
        %v373 = vld [vmem:[#allocation6 + $0x198] sm:$0xff]
        %v374 = vld [vmem:[#allocation6 + $0x1a0] sm:$0xff]
        %v375 = vld [vmem:[#allocation6 + $0x1a8] sm:$0xff]
        %v376 = vld [vmem:[#allocation6 + $0x1b0] sm:$0xff]
        %v377 = vld [vmem:[#allocation6 + $0x1b8] sm:$0xff]
        %v378 = vld [vmem:[#allocation6 + $0x1c0] sm:$0xff]
        %v379 = vld [vmem:[#allocation6 + $0x1c8] sm:$0xff]
        %v380 = vld [vmem:[#allocation6 + $0x1d0] sm:$0xff]
        %v381 = vld [vmem:[#allocation6 + $0x1d8] sm:$0xff]
        %v382 = vld [vmem:[#allocation6 + $0x1e0] sm:$0xff]
        %v383 = vld [vmem:[#allocation6 + $0x1e8] sm:$0xff]
        %v384 = vld [vmem:[#allocation6 + $0x1f0] sm:$0xff]
        %v385 = vld [vmem:[#allocation6 + $0x1f8] sm:$0xff]
        %v386 = vld [vmem:[#allocation6 + $0x200] sm:$0xff]
        %v387 = vld [vmem:[#allocation6 + $0x208] sm:$0xff]
        %v388 = vld [vmem:[#allocation6 + $0x210] sm:$0xff]
        %v389 = vld [vmem:[#allocation6 + $0x218] sm:$0xff]
        %v390 = vld [vmem:[#allocation6 + $0x220] sm:$0xff]
        %v391 = vld [vmem:[#allocation6 + $0x228] sm:$0xff]
        %v392 = vld [vmem:[#allocation6 + $0x230] sm:$0xff]
        %v393 = vld [vmem:[#allocation6 + $0x238] sm:$0xff]
        %v394 = vld [vmem:[#allocation6 + $0x240] sm:$0xff]
        %v395 = vld [vmem:[#allocation6 + $0x248] sm:$0xff]
        %v396 = vld [vmem:[#allocation6 + $0x250] sm:$0xff]
        %v397 = vld [vmem:[#allocation6 + $0x258] sm:$0xff]
        %v398 = vld [vmem:[#allocation6 + $0x260] sm:$0xff]
        %v399 = vld [vmem:[#allocation6 + $0x268] sm:$0xff]
        %v400 = vld [vmem:[#allocation6 + $0x270] sm:$0xff]
        %v401 = vld [vmem:[#allocation6 + $0x278] sm:$0xff]
        %v402 = vld [vmem:[#allocation6 + $0x280] sm:$0xff]
        %v403 = vld [vmem:[#allocation6 + $0x288] sm:$0xff]
        %v404 = vld [vmem:[#allocation6 + $0x290] sm:$0xff]
        %v405 = vld [vmem:[#allocation6 + $0x298] sm:$0xff]
        %v406 = vld [vmem:[#allocation6 + $0x2a0] sm:$0xff]
        %v407 = vld [vmem:[#allocation6 + $0x2a8] sm:$0xff]
        %v408 = vld [vmem:[#allocation6 + $0x2b0] sm:$0xff]
        %v409 = vld [vmem:[#allocation6 + $0x2b8] sm:$0xff]
        %v410 = vld [vmem:[#allocation6 + $0x2c0] sm:$0xff]
        %v411 = vld [vmem:[#allocation6 + $0x2c8] sm:$0xff]
        %v412 = vld [vmem:[#allocation6 + $0x2d0] sm:$0xff]
        %v413 = vld [vmem:[#allocation6 + $0x2d8] sm:$0xff]
        %v414 = vld [vmem:[#allocation6 + $0x2e0] sm:$0xff]
        %v415 = vld [vmem:[#allocation6 + $0x2e8] sm:$0xff]
        %v416 = vld [vmem:[#allocation6 + $0x2f0] sm:$0xff]
        %v417 = vld [vmem:[#allocation6 + $0x2f8] sm:$0xff]
        %v418 = vld [vmem:[#allocation8] sm:$0xf]
        %v420 = vlaneseq
        %v421 = vshrl.u32 %v420, 7
        %v422 = vsub.s32 0, %v421
        %v423 = vrot.slane %v418, %v422
        %v424 = vlaneseq
        %v425 = vshrl.u32 %v424, 7
        %v426 = vsub.s32 1, %v425
        %v427 = vrot.slane %v418, %v426
        %v428 = vlaneseq
        %v429 = vshrl.u32 %v428, 7
        %v430 = vsub.s32 2, %v429
        %v431 = vrot.slane %v418, %v430
        %v432 = vlaneseq
        %v433 = vshrl.u32 %v432, 7
        %v434 = vsub.s32 3, %v433
        %v435 = vrot.slane %v418, %v434
        %v441 = vsel %vm294, %v319, 0
        %v444 = vsel %vm294, %v321, 0
        %446 = vmatprep.subr.mxu0 %v323
        %447 = vmatpush1.msra.mxu0 %v322
        %448 = vmatprep.subr.mxu0 %v327
        %449 = vmatpush1.msra.mxu0 %v326
        %450 = vmatprep.subr.mxu0 %v331
        %451 = vmatpush1.msra.mxu0 %v330
        %452 = vmatprep.subr.mxu0 %v335
        %453 = vmatpush1.msra.mxu0 %v334
        %454 = vmatprep.subr.mxu0 %v339
        %455 = vmatpush1.msra.mxu0 %v338
        %456 = vmatprep.subr.mxu0 %v343
        %457 = vmatpush1.msra.mxu0 %v342
        %458 = vmatprep.subr.mxu0 %v347
        %459 = vmatpush1.msra.mxu0 %v346
        %460 = vmatprep.subr.mxu0 %v351
        %461 = vmatpush1.msra.mxu0 %v350
        %462 = vmatprep.subr.mxu0 %v355
        %463 = vmatpush1.msra.mxu0 %v354
        %464 = vmatprep.subr.mxu0 %v359
        %465 = vmatpush1.msra.mxu0 %v358
        %466 = vmatprep.subr.mxu0 %v363
        %467 = vmatpush1.msra.mxu0 %v362
        %468 = vmatprep.subr.mxu0 %v367
        %469 = vmatpush1.msra.mxu0 %v366
        %470 = vmatprep.subr.mxu0 %v371
        %471 = vmatpush1.msra.mxu0 %v370
        %472 = vmatprep.subr.mxu0 %v375
        %473 = vmatpush1.msra.mxu0 %v374
        %474 = vmatprep.subr.mxu0 %v379
        %475 = vmatpush1.msra.mxu0 %v378
        %476 = vmatprep.subr.mxu0 %v383
        %477 = vmatpush1.msra.mxu0 %v382
        %478 = vmatprep.subr.mxu0 %v387
        %479 = vmatpush1.msra.mxu0 %v386
        %480 = vmatprep.subr.mxu0 %v391
        %481 = vmatpush1.msra.mxu0 %v390
        %482 = vmatprep.subr.mxu0 %v395
        %483 = vmatpush1.msra.mxu0 %v394
        %484 = vmatprep.subr.mxu0 %v399
        %485 = vmatpush1.msra.mxu0 %v398
        %486 = vmatprep.subr.mxu0 %v403
        %487 = vmatpush1.msra.mxu0 %v402
        %488 = vmatprep.subr.mxu0 %v407
        %489 = vmatpush1.msra.mxu0 %v406
        %490 = vmatprep.subr.mxu0 %v411
        %491 = vmatpush1.msra.mxu0 %v410
        %492 = vmatprep.subr.mxu0 %v415
        %493 = vmatpush1.msra.mxu0 %v414
        %494 = vmatprep.subr.mxu0 0.0
        %495 = vmatpush1.msra.mxu0 0.0
        %496 = vmatprep.subr.mxu0 0.0
        %497 = vmatpush1.msra.mxu0 0.0
        %498 = vmatprep.subr.mxu0 0.0
        %499 = vmatpush1.msra.mxu0 0.0
        %500 = vmatprep.subr.mxu0 0.0
        %501 = vmatpush1.msra.mxu0 0.0
        %502 = vmatprep.subr.mxu0 0.0
        %503 = vmatpush1.msra.mxu0 0.0
        %504 = vmatprep.subr.mxu0 0.0
        %505 = vmatpush1.msra.mxu0 0.0
        %506 = vmatprep.subr.mxu0 0.0
        %507 = vmatpush1.msra.mxu0 0.0
        %508 = vmatprep.subr.mxu0 0.0
        %509 = vmatpush1.msra.mxu0 0.0
        %510 = vmatprep.mubr.f32.mxu0 %v441
        %511 = vmatmul.mubr.f32.gmra.mrb[0].mxu0 %v318
        %v512 = vpop.f32.mrb[0].mxu0
        %v513 = vadd.f32 %v423, %v512
        %v514 = vpop.f32.mrb[0].mxu0
        %v515 = vadd.f32 %v427, %v514
        %516 = vmatprep.mubr.f32.mxu0 %v444
        %517 = vmatmul.mubr.f32.gmra.mrb[0].mxu0 %v320
        %v518 = vpop.f32.mrb[0].mxu0
        %v519 = vadd.f32 %v423, %v518
        %v520 = vpop.f32.mrb[0].mxu0
        %v521 = vadd.f32 %v427, %v520
        %522 = vdwg.mxu0
        %523 = vmatprep.subr.mxu0 %v325
        %524 = vmatpush1.msra.mxu0 %v324
        %525 = vmatprep.subr.mxu0 %v329
        %526 = vmatpush1.msra.mxu0 %v328
        %527 = vmatprep.subr.mxu0 %v333
        %528 = vmatpush1.msra.mxu0 %v332
        %529 = vmatprep.subr.mxu0 %v337
        %530 = vmatpush1.msra.mxu0 %v336
        %531 = vmatprep.subr.mxu0 %v341
        %532 = vmatpush1.msra.mxu0 %v340
        %533 = vmatprep.subr.mxu0 %v345
        %534 = vmatpush1.msra.mxu0 %v344
        %535 = vmatprep.subr.mxu0 %v349
        %536 = vmatpush1.msra.mxu0 %v348
        %537 = vmatprep.subr.mxu0 %v353
        %538 = vmatpush1.msra.mxu0 %v352
        %539 = vmatprep.subr.mxu0 %v357
        %540 = vmatpush1.msra.mxu0 %v356
        %541 = vmatprep.subr.mxu0 %v361
        %542 = vmatpush1.msra.mxu0 %v360
        %543 = vmatprep.subr.mxu0 %v365
        %544 = vmatpush1.msra.mxu0 %v364
        %545 = vmatprep.subr.mxu0 %v369
        %546 = vmatpush1.msra.mxu0 %v368
        %547 = vmatprep.subr.mxu0 %v373
        %548 = vmatpush1.msra.mxu0 %v372
        %549 = vmatprep.subr.mxu0 %v377
        %550 = vmatpush1.msra.mxu0 %v376
        %551 = vmatprep.subr.mxu0 %v381
        %552 = vmatpush1.msra.mxu0 %v380
        %553 = vmatprep.subr.mxu0 %v385
        %554 = vmatpush1.msra.mxu0 %v384
        %555 = vmatprep.subr.mxu0 %v389
        %556 = vmatpush1.msra.mxu0 %v388
        %557 = vmatprep.subr.mxu0 %v393
        %558 = vmatpush1.msra.mxu0 %v392
        %559 = vmatprep.subr.mxu0 %v397
        %560 = vmatpush1.msra.mxu0 %v396
        %561 = vmatprep.subr.mxu0 %v401
        %562 = vmatpush1.msra.mxu0 %v400
        %563 = vmatprep.subr.mxu0 %v405
        %564 = vmatpush1.msra.mxu0 %v404
        %565 = vmatprep.subr.mxu0 %v409
        %566 = vmatpush1.msra.mxu0 %v408
        %567 = vmatprep.subr.mxu0 %v413
        %568 = vmatpush1.msra.mxu0 %v412
        %569 = vmatprep.subr.mxu0 %v417
        %570 = vmatpush1.msra.mxu0 %v416
        %571 = vmatprep.subr.mxu0 0.0
        %572 = vmatpush1.msra.mxu0 0.0
        %573 = vmatprep.subr.mxu0 0.0
        %574 = vmatpush1.msra.mxu0 0.0
        %575 = vmatprep.subr.mxu0 0.0
        %576 = vmatpush1.msra.mxu0 0.0
        %577 = vmatprep.subr.mxu0 0.0
        %578 = vmatpush1.msra.mxu0 0.0
        %579 = vmatprep.subr.mxu0 0.0
        %580 = vmatpush1.msra.mxu0 0.0
        %581 = vmatprep.subr.mxu0 0.0
        %582 = vmatpush1.msra.mxu0 0.0
        %583 = vmatprep.subr.mxu0 0.0
        %584 = vmatpush1.msra.mxu0 0.0
        %585 = vmatprep.subr.mxu0 0.0
        %586 = vmatpush1.msra.mxu0 0.0
        %587 = vmatprep.mubr.f32.mxu0 %v441
        %588 = vmatmul.mubr.f32.gmra.mrb[0].mxu0 %v318
        %v589 = vpop.f32.mrb[0].mxu0
        %v590 = vadd.f32 %v431, %v589
        %v591 = vpop.f32.mrb[0].mxu0
        %v592 = vadd.f32 %v435, %v591
        %593 = vmatprep.mubr.f32.mxu0 %v444
        %594 = vmatmul.mubr.f32.gmra.mrb[0].mxu0 %v320
        %v595 = vpop.f32.mrb[0].mxu0
        %v596 = vadd.f32 %v431, %v595
        %v597 = vpop.f32.mrb[0].mxu0
        %v598 = vadd.f32 %v435, %v597
        %599 = vdwg.mxu0
        %v600 = vmax.f32 %v513, 0.0
        %v601 = vmax.f32 %v515, 0.0
        %v602 = vmax.f32 %v590, 0.0
        %v603 = vmax.f32 %v592, 0.0
        %v604 = vmax.f32 %v519, 0.0
        %v605 = vmax.f32 %v521, 0.0
        %v606 = vmax.f32 %v596, 0.0
        %v607 = vmax.f32 %v598, 0.0
        %vm616 = vcmask 1040384
        %v617 = vrot.slane %v600, 7
        %v618 = vrot.slane %v601, 7
        %v619 = vrot.slane %v602, 7
        %v620 = vrot.slane %v603, 7
        %v621 = vrot.slane %v604, 7
        %v622 = vsel %vm616, %v617, %v621
        %v623 = vrot.slane %v605, 7
        %v624 = vsel %vm616, %v618, %v623
        %v625 = vrot.slane %v606, 7
        %v626 = vsel %vm616, %v619, %v625
        %v627 = vrot.slane %v607, 7
        %v628 = vsel %vm616, %v620, %v627
        %641 = vst [vmem:[#allocation3] sm:$0xfe] %v617
        %642 = vst [vmem:[#allocation3 + $0x8] sm:$0xfe] %v618
        %643 = vst [vmem:[#allocation3 + $0x10] sm:$0xfe] %v619
        %644 = vst [vmem:[#allocation3 + $0x18] sm:$0xfe] %v620
        %645 = vst [vmem:[#allocation3 + $0x20] sm:$0xff] %v622
        %646 = vst [vmem:[#allocation3 + $0x28] sm:$0xff] %v624
        %647 = vst [vmem:[#allocation3 + $0x30] sm:$0xff] %v626
        %648 = vst [vmem:[#allocation3 + $0x38] sm:$0xff] %v628
        %649 = vst [vmem:[#allocation3 + $0x40] sm:$0x1] %v621
        %650 = vst [vmem:[#allocation3 + $0x48] sm:$0x1] %v623
        %651 = vst [vmem:[#allocation3 + $0x50] sm:$0x1] %v625
        %652 = vst [vmem:[#allocation3 + $0x58] sm:$0x1] %v627
        %v653 = vld [vmem:[#allocation3] sm:$0xff]
        %v654 = vld [vmem:[#allocation3 + $0x8] sm:$0xff]
        %v655 = vld [vmem:[#allocation3 + $0x10] sm:$0xff]
        %v656 = vld [vmem:[#allocation3 + $0x18] sm:$0xff]
        %v657 = vld [vmem:[#allocation3 + $0x20] sm:$0xff]
        %v658 = vld [vmem:[#allocation3 + $0x28] sm:$0xff]
        %v659 = vld [vmem:[#allocation3 + $0x30] sm:$0xff]
        %v660 = vld [vmem:[#allocation3 + $0x38] sm:$0xff]
        %661 = vst [vmem:[#allocation5] sm:$0xff] %v653
        %662 = vst [vmem:[#allocation5 + $0x8] sm:$0xff] %v654
        %663 = vst [vmem:[#allocation5 + $0x10] sm:$0xff] %v655
        %664 = vst [vmem:[#allocation5 + $0x18] sm:$0xff] %v656
        %665 = vst [vmem:[#allocation5 + $0x60] sm:$0xff] %v657
        %666 = vst [vmem:[#allocation5 + $0x68] sm:$0xff] %v658
        %667 = vst [vmem:[#allocation5 + $0x70] sm:$0xff] %v659
        %668 = vst [vmem:[#allocation5 + $0x78] sm:$0xff] %v660
        %v669 = vld [vmem:[#allocation3] sm:$0xfe]
        %v670 = vld [vmem:[#allocation3 + $0x8] sm:$0xfe]
        %v671 = vld [vmem:[#allocation3 + $0x10] sm:$0xfe]
        %v672 = vld [vmem:[#allocation3 + $0x18] sm:$0xfe]
        %v673 = vld [vmem:[#allocation3 + $0x20] sm:$0xff]
        %v674 = vld [vmem:[#allocation3 + $0x28] sm:$0xff]
        %v675 = vld [vmem:[#allocation3 + $0x30] sm:$0xff]
        %v676 = vld [vmem:[#allocation3 + $0x38] sm:$0xff]
        %v677 = vld [vmem:[#allocation3 + $0x40] sm:$0x1]
        %v678 = vld [vmem:[#allocation3 + $0x48] sm:$0x1]
        %v679 = vld [vmem:[#allocation3 + $0x50] sm:$0x1]
        %v680 = vld [vmem:[#allocation3 + $0x58] sm:$0x1]
        %vm693 = vcmask 1046528
        %v694 = vrot.slane %v669, 1
        %v695 = vrot.slane %v673, 1
        %v696 = vsel %vm693, %v694, %v695
        %v697 = vrot.slane %v670, 1
        %v698 = vrot.slane %v674, 1
        %v699 = vsel %vm693, %v697, %v698
        %v700 = vrot.slane %v671, 1
        %v701 = vrot.slane %v675, 1
        %v702 = vsel %vm693, %v700, %v701
        %v703 = vrot.slane %v672, 1
        %v704 = vrot.slane %v676, 1
        %v705 = vsel %vm693, %v703, %v704
        %v706 = vrot.slane %v677, 1
        %v707 = vsel %vm693, %v695, %v706
        %v708 = vrot.slane %v678, 1
        %v709 = vsel %vm693, %v698, %v708
        %v710 = vrot.slane %v679, 1
        %v711 = vsel %vm693, %v701, %v710
        %v712 = vrot.slane %v680, 1
        %v713 = vsel %vm693, %v704, %v712
        %722 = vst [vmem:[#allocation5 + $0x20] sm:$0xff] %v696
        %723 = vst [vmem:[#allocation5 + $0x28] sm:$0xff] %v699
        %724 = vst [vmem:[#allocation5 + $0x30] sm:$0xff] %v702
        %725 = vst [vmem:[#allocation5 + $0x38] sm:$0xff] %v705
        %726 = vst [vmem:[#allocation5 + $0x80] sm:$0xff] %v707
        %727 = vst [vmem:[#allocation5 + $0x88] sm:$0xff] %v709
        %728 = vst [vmem:[#allocation5 + $0x90] sm:$0xff] %v711
        %729 = vst [vmem:[#allocation5 + $0x98] sm:$0xff] %v713
        %v730 = vld [vmem:[#allocation3] sm:$0xfc]
        %v731 = vld [vmem:[#allocation3 + $0x8] sm:$0xfc]
        %v732 = vld [vmem:[#allocation3 + $0x10] sm:$0xfc]
        %v733 = vld [vmem:[#allocation3 + $0x18] sm:$0xfc]
        %v734 = vld [vmem:[#allocation3 + $0x20] sm:$0xff]
        %v735 = vld [vmem:[#allocation3 + $0x28] sm:$0xff]
        %v736 = vld [vmem:[#allocation3 + $0x30] sm:$0xff]
        %v737 = vld [vmem:[#allocation3 + $0x38] sm:$0xff]
        %v738 = vld [vmem:[#allocation3 + $0x40] sm:$0x3]
        %v739 = vld [vmem:[#allocation3 + $0x48] sm:$0x3]
        %v740 = vld [vmem:[#allocation3 + $0x50] sm:$0x3]
        %v741 = vld [vmem:[#allocation3 + $0x58] sm:$0x3]
        %vm754 = vcmask 1045504
        %v755 = vrot.slane %v730, 2
        %v756 = vrot.slane %v734, 2
        %v757 = vsel %vm754, %v755, %v756
        %v758 = vrot.slane %v731, 2
        %v759 = vrot.slane %v735, 2
        %v760 = vsel %vm754, %v758, %v759
        %v761 = vrot.slane %v732, 2
        %v762 = vrot.slane %v736, 2
        %v763 = vsel %vm754, %v761, %v762
        %v764 = vrot.slane %v733, 2
        %v765 = vrot.slane %v737, 2
        %v766 = vsel %vm754, %v764, %v765
        %v767 = vrot.slane %v738, 2
        %v768 = vsel %vm754, %v756, %v767
        %v769 = vrot.slane %v739, 2
        %v770 = vsel %vm754, %v759, %v769
        %v771 = vrot.slane %v740, 2
        %v772 = vsel %vm754, %v762, %v771
        %v773 = vrot.slane %v741, 2
        %v774 = vsel %vm754, %v765, %v773
        %783 = vst [vmem:[#allocation5 + $0x40] sm:$0xff] %v757
        %784 = vst [vmem:[#allocation5 + $0x48] sm:$0xff] %v760
        %785 = vst [vmem:[#allocation5 + $0x50] sm:$0xff] %v763
        %786 = vst [vmem:[#allocation5 + $0x58] sm:$0xff] %v766
        %787 = vst [vmem:[#allocation5 + $0xa0] sm:$0xff] %v768
        %788 = vst [vmem:[#allocation5 + $0xa8] sm:$0xff] %v770
        %789 = vst [vmem:[#allocation5 + $0xb0] sm:$0xff] %v772
        %790 = vst [vmem:[#allocation5 + $0xb8] sm:$0xff] %v774
        %v791 = vld [vmem:[#allocation5] sm:$0xff]
        %v792 = vld [vmem:[#allocation5 + $0x8] sm:$0xff]
        %v793 = vld [vmem:[#allocation5 + $0x10] sm:$0xff]
        %v794 = vld [vmem:[#allocation5 + $0x18] sm:$0xff]
        %v795 = vld [vmem:[#allocation5 + $0x20] sm:$0xff]
        %v796 = vld [vmem:[#allocation5 + $0x28] sm:$0xff]
        %v797 = vld [vmem:[#allocation5 + $0x30] sm:$0xff]
        %v798 = vld [vmem:[#allocation5 + $0x38] sm:$0xff]
        %v799 = vld [vmem:[#allocation5 + $0x40] sm:$0xff]
        %v800 = vld [vmem:[#allocation5 + $0x48] sm:$0xff]
        %v801 = vld [vmem:[#allocation5 + $0x50] sm:$0xff]
        %v802 = vld [vmem:[#allocation5 + $0x58] sm:$0xff]
        %v803 = vld [vmem:[#allocation5 + $0x60] sm:$0xff]
        %v804 = vld [vmem:[#allocation5 + $0x68] sm:$0xff]
        %v805 = vld [vmem:[#allocation5 + $0x70] sm:$0xff]
        %v806 = vld [vmem:[#allocation5 + $0x78] sm:$0xff]
        %v807 = vld [vmem:[#allocation5 + $0x80] sm:$0xff]
        %v808 = vld [vmem:[#allocation5 + $0x88] sm:$0xff]
        %v809 = vld [vmem:[#allocation5 + $0x90] sm:$0xff]
        %v810 = vld [vmem:[#allocation5 + $0x98] sm:$0xff]
        %v811 = vld [vmem:[#allocation5 + $0xa0] sm:$0xff]
        %v812 = vld [vmem:[#allocation5 + $0xa8] sm:$0xff]
        %v813 = vld [vmem:[#allocation5 + $0xb0] sm:$0xff]
        %v814 = vld [vmem:[#allocation5 + $0xb8] sm:$0xff]
        %v815 = vld [vmem:[#allocation10] sm:$0xff]
        %v816 = vld [vmem:[#allocation10 + $0x8] sm:$0xff]
        %v817 = vld [vmem:[#allocation10 + $0x10] sm:$0xff]
        %v818 = vld [vmem:[#allocation10 + $0x18] sm:$0xff]
        %v819 = vld [vmem:[#allocation10 + $0x20] sm:$0xff]
        %v820 = vld [vmem:[#allocation10 + $0x28] sm:$0xff]
        %v821 = vld [vmem:[#allocation10 + $0x30] sm:$0xff]
        %v822 = vld [vmem:[#allocation10 + $0x38] sm:$0xff]
        %v823 = vld [vmem:[#allocation10 + $0x40] sm:$0xff]
        %v824 = vld [vmem:[#allocation10 + $0x48] sm:$0xff]
        %v825 = vld [vmem:[#allocation10 + $0x50] sm:$0xff]
        %v826 = vld [vmem:[#allocation10 + $0x58] sm:$0xff]
        %v827 = vld [vmem:[#allocation10 + $0x60] sm:$0xff]
        %v828 = vld [vmem:[#allocation10 + $0x68] sm:$0xff]
        %v829 = vld [vmem:[#allocation10 + $0x70] sm:$0xff]
        %v830 = vld [vmem:[#allocation10 + $0x78] sm:$0xff]
        %v831 = vld [vmem:[#allocation10 + $0x80] sm:$0xff]
        %v832 = vld [vmem:[#allocation10 + $0x88] sm:$0xff]
        %v833 = vld [vmem:[#allocation10 + $0x90] sm:$0xff]
        %v834 = vld [vmem:[#allocation10 + $0x98] sm:$0xff]
        %v835 = vld [vmem:[#allocation10 + $0xa0] sm:$0xff]
        %v836 = vld [vmem:[#allocation10 + $0xa8] sm:$0xff]
        %v837 = vld [vmem:[#allocation10 + $0xb0] sm:$0xff]
        %v838 = vld [vmem:[#allocation10 + $0xb8] sm:$0xff]
        %v839 = vld [vmem:[#allocation10 + $0xc0] sm:$0xff]
        %v840 = vld [vmem:[#allocation10 + $0xc8] sm:$0xff]
        %v841 = vld [vmem:[#allocation10 + $0xd0] sm:$0xff]
        %v842 = vld [vmem:[#allocation10 + $0xd8] sm:$0xff]
        %v843 = vld [vmem:[#allocation10 + $0xe0] sm:$0xff]
        %v844 = vld [vmem:[#allocation10 + $0xe8] sm:$0xff]
        %v845 = vld [vmem:[#allocation10 + $0xf0] sm:$0xff]
        %v846 = vld [vmem:[#allocation10 + $0xf8] sm:$0xff]
        %v847 = vld [vmem:[#allocation10 + $0x100] sm:$0xff]
        %v848 = vld [vmem:[#allocation10 + $0x108] sm:$0xff]
        %v849 = vld [vmem:[#allocation10 + $0x110] sm:$0xff]
        %v850 = vld [vmem:[#allocation10 + $0x118] sm:$0xff]
        %v851 = vld [vmem:[#allocation10 + $0x120] sm:$0xff]
        %v852 = vld [vmem:[#allocation10 + $0x128] sm:$0xff]
        %v853 = vld [vmem:[#allocation10 + $0x130] sm:$0xff]
        %v854 = vld [vmem:[#allocation10 + $0x138] sm:$0xff]
        %v855 = vld [vmem:[#allocation10 + $0x140] sm:$0xff]
        %v856 = vld [vmem:[#allocation10 + $0x148] sm:$0xff]
        %v857 = vld [vmem:[#allocation10 + $0x150] sm:$0xff]
        %v858 = vld [vmem:[#allocation10 + $0x158] sm:$0xff]
        %v859 = vld [vmem:[#allocation10 + $0x160] sm:$0xff]
        %v860 = vld [vmem:[#allocation10 + $0x168] sm:$0xff]
        %v861 = vld [vmem:[#allocation10 + $0x170] sm:$0xff]
        %v862 = vld [vmem:[#allocation10 + $0x178] sm:$0xff]
        %v863 = vld [vmem:[#allocation10 + $0x180] sm:$0xff]
        %v864 = vld [vmem:[#allocation10 + $0x188] sm:$0xff]
        %v865 = vld [vmem:[#allocation10 + $0x190] sm:$0xff]
        %v866 = vld [vmem:[#allocation10 + $0x198] sm:$0xff]
        %v867 = vld [vmem:[#allocation10 + $0x1a0] sm:$0xff]
        %v868 = vld [vmem:[#allocation10 + $0x1a8] sm:$0xff]
        %v869 = vld [vmem:[#allocation10 + $0x1b0] sm:$0xff]
        %v870 = vld [vmem:[#allocation10 + $0x1b8] sm:$0xff]
        %v871 = vld [vmem:[#allocation10 + $0x1c0] sm:$0xff]
        %v872 = vld [vmem:[#allocation10 + $0x1c8] sm:$0xff]
        %v873 = vld [vmem:[#allocation10 + $0x1d0] sm:$0xff]
        %v874 = vld [vmem:[#allocation10 + $0x1d8] sm:$0xff]
        %v875 = vld [vmem:[#allocation10 + $0x1e0] sm:$0xff]
        %v876 = vld [vmem:[#allocation10 + $0x1e8] sm:$0xff]
        %v877 = vld [vmem:[#allocation10 + $0x1f0] sm:$0xff]
        %v878 = vld [vmem:[#allocation10 + $0x1f8] sm:$0xff]
        %v879 = vld [vmem:[#allocation10 + $0x200] sm:$0xff]
        %v880 = vld [vmem:[#allocation10 + $0x208] sm:$0xff]
        %v881 = vld [vmem:[#allocation10 + $0x210] sm:$0xff]
        %v882 = vld [vmem:[#allocation10 + $0x218] sm:$0xff]
        %v883 = vld [vmem:[#allocation10 + $0x220] sm:$0xff]
        %v884 = vld [vmem:[#allocation10 + $0x228] sm:$0xff]
        %v885 = vld [vmem:[#allocation10 + $0x230] sm:$0xff]
        %v886 = vld [vmem:[#allocation10 + $0x238] sm:$0xff]
        %v887 = vld [vmem:[#allocation10 + $0x240] sm:$0xff]
        %v888 = vld [vmem:[#allocation10 + $0x248] sm:$0xff]
        %v889 = vld [vmem:[#allocation10 + $0x250] sm:$0xff]
        %v890 = vld [vmem:[#allocation10 + $0x258] sm:$0xff]
        %v891 = vld [vmem:[#allocation10 + $0x260] sm:$0xff]
        %v892 = vld [vmem:[#allocation10 + $0x268] sm:$0xff]
        %v893 = vld [vmem:[#allocation10 + $0x270] sm:$0xff]
        %v894 = vld [vmem:[#allocation10 + $0x278] sm:$0xff]
        %v895 = vld [vmem:[#allocation10 + $0x280] sm:$0xff]
        %v896 = vld [vmem:[#allocation10 + $0x288] sm:$0xff]
        %v897 = vld [vmem:[#allocation10 + $0x290] sm:$0xff]
        %v898 = vld [vmem:[#allocation10 + $0x298] sm:$0xff]
        %v899 = vld [vmem:[#allocation10 + $0x2a0] sm:$0xff]
        %v900 = vld [vmem:[#allocation10 + $0x2a8] sm:$0xff]
        %v901 = vld [vmem:[#allocation10 + $0x2b0] sm:$0xff]
        %v902 = vld [vmem:[#allocation10 + $0x2b8] sm:$0xff]
        %v903 = vld [vmem:[#allocation10 + $0x2c0] sm:$0xff]
        %v904 = vld [vmem:[#allocation10 + $0x2c8] sm:$0xff]
        %v905 = vld [vmem:[#allocation10 + $0x2d0] sm:$0xff]
        %v906 = vld [vmem:[#allocation10 + $0x2d8] sm:$0xff]
        %v907 = vld [vmem:[#allocation10 + $0x2e0] sm:$0xff]
        %v908 = vld [vmem:[#allocation10 + $0x2e8] sm:$0xff]
        %v909 = vld [vmem:[#allocation10 + $0x2f0] sm:$0xff]
        %v910 = vld [vmem:[#allocation10 + $0x2f8] sm:$0xff]
        %v911 = vld [vmem:[#allocation10 + $0x300] sm:$0xff]
        %v912 = vld [vmem:[#allocation10 + $0x308] sm:$0xff]
        %v913 = vld [vmem:[#allocation10 + $0x310] sm:$0xff]
        %v914 = vld [vmem:[#allocation10 + $0x318] sm:$0xff]
        %v915 = vld [vmem:[#allocation10 + $0x320] sm:$0xff]
        %v916 = vld [vmem:[#allocation10 + $0x328] sm:$0xff]
        %v917 = vld [vmem:[#allocation10 + $0x330] sm:$0xff]
        %v918 = vld [vmem:[#allocation10 + $0x338] sm:$0xff]
        %v919 = vld [vmem:[#allocation10 + $0x340] sm:$0xff]
        %v920 = vld [vmem:[#allocation10 + $0x348] sm:$0xff]
        %v921 = vld [vmem:[#allocation10 + $0x350] sm:$0xff]
        %v922 = vld [vmem:[#allocation10 + $0x358] sm:$0xff]
        %v923 = vld [vmem:[#allocation10 + $0x360] sm:$0xff]
        %v924 = vld [vmem:[#allocation10 + $0x368] sm:$0xff]
        %v925 = vld [vmem:[#allocation10 + $0x370] sm:$0xff]
        %v926 = vld [vmem:[#allocation10 + $0x378] sm:$0xff]
        %v927 = vld [vmem:[#allocation10 + $0x380] sm:$0xff]
        %v928 = vld [vmem:[#allocation10 + $0x388] sm:$0xff]
        %v929 = vld [vmem:[#allocation10 + $0x390] sm:$0xff]
        %v930 = vld [vmem:[#allocation10 + $0x398] sm:$0xff]
        %v931 = vld [vmem:[#allocation10 + $0x3a0] sm:$0xff]
        %v932 = vld [vmem:[#allocation10 + $0x3a8] sm:$0xff]
        %v933 = vld [vmem:[#allocation10 + $0x3b0] sm:$0xff]
        %v934 = vld [vmem:[#allocation10 + $0x3b8] sm:$0xff]
        %v935 = vld [vmem:[#allocation10 + $0x3c0] sm:$0xff]
        %v936 = vld [vmem:[#allocation10 + $0x3c8] sm:$0xff]
        %v937 = vld [vmem:[#allocation10 + $0x3d0] sm:$0xff]
        %v938 = vld [vmem:[#allocation10 + $0x3d8] sm:$0xff]
        %v939 = vld [vmem:[#allocation10 + $0x3e0] sm:$0xff]
        %v940 = vld [vmem:[#allocation10 + $0x3e8] sm:$0xff]
        %v941 = vld [vmem:[#allocation10 + $0x3f0] sm:$0xff]
        %v942 = vld [vmem:[#allocation10 + $0x3f8] sm:$0xff]
        %v943 = vld [vmem:[#allocation10 + $0x400] sm:$0xff]
        %v944 = vld [vmem:[#allocation10 + $0x408] sm:$0xff]
        %v945 = vld [vmem:[#allocation10 + $0x410] sm:$0xff]
        %v946 = vld [vmem:[#allocation10 + $0x418] sm:$0xff]
        %v947 = vld [vmem:[#allocation10 + $0x420] sm:$0xff]
        %v948 = vld [vmem:[#allocation10 + $0x428] sm:$0xff]
        %v949 = vld [vmem:[#allocation10 + $0x430] sm:$0xff]
        %v950 = vld [vmem:[#allocation10 + $0x438] sm:$0xff]
        %v951 = vld [vmem:[#allocation10 + $0x440] sm:$0xff]
        %v952 = vld [vmem:[#allocation10 + $0x448] sm:$0xff]
        %v953 = vld [vmem:[#allocation10 + $0x450] sm:$0xff]
        %v954 = vld [vmem:[#allocation10 + $0x458] sm:$0xff]
        %v955 = vld [vmem:[#allocation10 + $0x460] sm:$0xff]
        %v956 = vld [vmem:[#allocation10 + $0x468] sm:$0xff]
        %v957 = vld [vmem:[#allocation10 + $0x470] sm:$0xff]
        %v958 = vld [vmem:[#allocation10 + $0x478] sm:$0xff]
        %v959 = vld [vmem:[#allocation10 + $0x480] sm:$0xff]
        %v960 = vld [vmem:[#allocation10 + $0x488] sm:$0xff]
        %v961 = vld [vmem:[#allocation10 + $0x490] sm:$0xff]
        %v962 = vld [vmem:[#allocation10 + $0x498] sm:$0xff]
        %v963 = vld [vmem:[#allocation10 + $0x4a0] sm:$0xff]
        %v964 = vld [vmem:[#allocation10 + $0x4a8] sm:$0xff]
        %v965 = vld [vmem:[#allocation10 + $0x4b0] sm:$0xff]
        %v966 = vld [vmem:[#allocation10 + $0x4b8] sm:$0xff]
        %v967 = vld [vmem:[#allocation10 + $0x4c0] sm:$0xff]
        %v968 = vld [vmem:[#allocation10 + $0x4c8] sm:$0xff]
        %v969 = vld [vmem:[#allocation10 + $0x4d0] sm:$0xff]
        %v970 = vld [vmem:[#allocation10 + $0x4d8] sm:$0xff]
        %v971 = vld [vmem:[#allocation10 + $0x4e0] sm:$0xff]
        %v972 = vld [vmem:[#allocation10 + $0x4e8] sm:$0xff]
        %v973 = vld [vmem:[#allocation10 + $0x4f0] sm:$0xff]
        %v974 = vld [vmem:[#allocation10 + $0x4f8] sm:$0xff]
        %v975 = vld [vmem:[#allocation10 + $0x500] sm:$0xff]
        %v976 = vld [vmem:[#allocation10 + $0x508] sm:$0xff]
        %v977 = vld [vmem:[#allocation10 + $0x510] sm:$0xff]
        %v978 = vld [vmem:[#allocation10 + $0x518] sm:$0xff]
        %v979 = vld [vmem:[#allocation10 + $0x520] sm:$0xff]
        %v980 = vld [vmem:[#allocation10 + $0x528] sm:$0xff]
        %v981 = vld [vmem:[#allocation10 + $0x530] sm:$0xff]
        %v982 = vld [vmem:[#allocation10 + $0x538] sm:$0xff]
        %v983 = vld [vmem:[#allocation10 + $0x540] sm:$0xff]
        %v984 = vld [vmem:[#allocation10 + $0x548] sm:$0xff]
        %v985 = vld [vmem:[#allocation10 + $0x550] sm:$0xff]
        %v986 = vld [vmem:[#allocation10 + $0x558] sm:$0xff]
        %v987 = vld [vmem:[#allocation10 + $0x560] sm:$0xff]
        %v988 = vld [vmem:[#allocation10 + $0x568] sm:$0xff]
        %v989 = vld [vmem:[#allocation10 + $0x570] sm:$0xff]
        %v990 = vld [vmem:[#allocation10 + $0x578] sm:$0xff]
        %v991 = vld [vmem:[#allocation10 + $0x580] sm:$0xff]
        %v992 = vld [vmem:[#allocation10 + $0x588] sm:$0xff]
        %v993 = vld [vmem:[#allocation10 + $0x590] sm:$0xff]
        %v994 = vld [vmem:[#allocation10 + $0x598] sm:$0xff]
        %v995 = vld [vmem:[#allocation10 + $0x5a0] sm:$0xff]
        %v996 = vld [vmem:[#allocation10 + $0x5a8] sm:$0xff]
        %v997 = vld [vmem:[#allocation10 + $0x5b0] sm:$0xff]
        %v998 = vld [vmem:[#allocation10 + $0x5b8] sm:$0xff]
        %v999 = vld [vmem:[#allocation10 + $0x5c0] sm:$0xff]
        %v1000 = vld [vmem:[#allocation10 + $0x5c8] sm:$0xff]
        %v1001 = vld [vmem:[#allocation10 + $0x5d0] sm:$0xff]
        %v1002 = vld [vmem:[#allocation10 + $0x5d8] sm:$0xff]
        %v1003 = vld [vmem:[#allocation10 + $0x5e0] sm:$0xff]
        %v1004 = vld [vmem:[#allocation10 + $0x5e8] sm:$0xff]
        %v1005 = vld [vmem:[#allocation10 + $0x5f0] sm:$0xff]
        %v1006 = vld [vmem:[#allocation10 + $0x5f8] sm:$0xff]
        %v1007 = vld [vmem:[#allocation10 + $0x600] sm:$0xff]
        %v1008 = vld [vmem:[#allocation10 + $0x608] sm:$0xff]
        %v1009 = vld [vmem:[#allocation10 + $0x610] sm:$0xff]
        %v1010 = vld [vmem:[#allocation10 + $0x618] sm:$0xff]
        %v1011 = vld [vmem:[#allocation10 + $0x620] sm:$0xff]
        %v1012 = vld [vmem:[#allocation10 + $0x628] sm:$0xff]
        %v1013 = vld [vmem:[#allocation10 + $0x630] sm:$0xff]
        %v1014 = vld [vmem:[#allocation10 + $0x638] sm:$0xff]
        %v1015 = vld [vmem:[#allocation10 + $0x640] sm:$0xff]
        %v1016 = vld [vmem:[#allocation10 + $0x648] sm:$0xff]
        %v1017 = vld [vmem:[#allocation10 + $0x650] sm:$0xff]
        %v1018 = vld [vmem:[#allocation10 + $0x658] sm:$0xff]
        %v1019 = vld [vmem:[#allocation10 + $0x660] sm:$0xff]
        %v1020 = vld [vmem:[#allocation10 + $0x668] sm:$0xff]
        %v1021 = vld [vmem:[#allocation10 + $0x670] sm:$0xff]
        %v1022 = vld [vmem:[#allocation10 + $0x678] sm:$0xff]
        %v1023 = vld [vmem:[#allocation10 + $0x680] sm:$0xff]
        %v1024 = vld [vmem:[#allocation10 + $0x688] sm:$0xff]
        %v1025 = vld [vmem:[#allocation10 + $0x690] sm:$0xff]
        %v1026 = vld [vmem:[#allocation10 + $0x698] sm:$0xff]
        %v1027 = vld [vmem:[#allocation10 + $0x6a0] sm:$0xff]
        %v1028 = vld [vmem:[#allocation10 + $0x6a8] sm:$0xff]
        %v1029 = vld [vmem:[#allocation10 + $0x6b0] sm:$0xff]
        %v1030 = vld [vmem:[#allocation10 + $0x6b8] sm:$0xff]
        %v1031 = vld [vmem:[#allocation10 + $0x6c0] sm:$0xff]
        %v1032 = vld [vmem:[#allocation10 + $0x6c8] sm:$0xff]
        %v1033 = vld [vmem:[#allocation10 + $0x6d0] sm:$0xff]
        %v1034 = vld [vmem:[#allocation10 + $0x6d8] sm:$0xff]
        %v1035 = vld [vmem:[#allocation10 + $0x6e0] sm:$0xff]
        %v1036 = vld [vmem:[#allocation10 + $0x6e8] sm:$0xff]
        %v1037 = vld [vmem:[#allocation10 + $0x6f0] sm:$0xff]
        %v1038 = vld [vmem:[#allocation10 + $0x6f8] sm:$0xff]
        %v1039 = vld [vmem:[#allocation10 + $0x700] sm:$0xff]
        %v1040 = vld [vmem:[#allocation10 + $0x708] sm:$0xff]
        %v1041 = vld [vmem:[#allocation10 + $0x710] sm:$0xff]
        %v1042 = vld [vmem:[#allocation10 + $0x718] sm:$0xff]
        %v1043 = vld [vmem:[#allocation10 + $0x720] sm:$0xff]
        %v1044 = vld [vmem:[#allocation10 + $0x728] sm:$0xff]
        %v1045 = vld [vmem:[#allocation10 + $0x730] sm:$0xff]
        %v1046 = vld [vmem:[#allocation10 + $0x738] sm:$0xff]
        %v1047 = vld [vmem:[#allocation10 + $0x740] sm:$0xff]
        %v1048 = vld [vmem:[#allocation10 + $0x748] sm:$0xff]
        %v1049 = vld [vmem:[#allocation10 + $0x750] sm:$0xff]
        %v1050 = vld [vmem:[#allocation10 + $0x758] sm:$0xff]
        %v1051 = vld [vmem:[#allocation10 + $0x760] sm:$0xff]
        %v1052 = vld [vmem:[#allocation10 + $0x768] sm:$0xff]
        %v1053 = vld [vmem:[#allocation10 + $0x770] sm:$0xff]
        %v1054 = vld [vmem:[#allocation10 + $0x778] sm:$0xff]
        %v1055 = vld [vmem:[#allocation10 + $0x780] sm:$0xff]
        %v1056 = vld [vmem:[#allocation10 + $0x788] sm:$0xff]
        %v1057 = vld [vmem:[#allocation10 + $0x790] sm:$0xff]
        %v1058 = vld [vmem:[#allocation10 + $0x798] sm:$0xff]
        %v1059 = vld [vmem:[#allocation10 + $0x7a0] sm:$0xff]
        %v1060 = vld [vmem:[#allocation10 + $0x7a8] sm:$0xff]
        %v1061 = vld [vmem:[#allocation10 + $0x7b0] sm:$0xff]
        %v1062 = vld [vmem:[#allocation10 + $0x7b8] sm:$0xff]
        %v1063 = vld [vmem:[#allocation10 + $0x7c0] sm:$0xff]
        %v1064 = vld [vmem:[#allocation10 + $0x7c8] sm:$0xff]
        %v1065 = vld [vmem:[#allocation10 + $0x7d0] sm:$0xff]
        %v1066 = vld [vmem:[#allocation10 + $0x7d8] sm:$0xff]
        %v1067 = vld [vmem:[#allocation10 + $0x7e0] sm:$0xff]
        %v1068 = vld [vmem:[#allocation10 + $0x7e8] sm:$0xff]
        %v1069 = vld [vmem:[#allocation10 + $0x7f0] sm:$0xff]
        %v1070 = vld [vmem:[#allocation10 + $0x7f8] sm:$0xff]
        %v1071 = vld [vmem:[#allocation10 + $0x800] sm:$0xff]
        %v1072 = vld [vmem:[#allocation10 + $0x808] sm:$0xff]
        %v1073 = vld [vmem:[#allocation10 + $0x810] sm:$0xff]
        %v1074 = vld [vmem:[#allocation10 + $0x818] sm:$0xff]
        %v1075 = vld [vmem:[#allocation10 + $0x820] sm:$0xff]
        %v1076 = vld [vmem:[#allocation10 + $0x828] sm:$0xff]
        %v1077 = vld [vmem:[#allocation10 + $0x830] sm:$0xff]
        %v1078 = vld [vmem:[#allocation10 + $0x838] sm:$0xff]
        %v1079 = vld [vmem:[#allocation10 + $0x840] sm:$0xff]
        %v1080 = vld [vmem:[#allocation10 + $0x848] sm:$0xff]
        %v1081 = vld [vmem:[#allocation10 + $0x850] sm:$0xff]
        %v1082 = vld [vmem:[#allocation10 + $0x858] sm:$0xff]
        %v1083 = vld [vmem:[#allocation10 + $0x860] sm:$0xff]
        %v1084 = vld [vmem:[#allocation10 + $0x868] sm:$0xff]
        %v1085 = vld [vmem:[#allocation10 + $0x870] sm:$0xff]
        %v1086 = vld [vmem:[#allocation10 + $0x878] sm:$0xff]
        %v1087 = vld [vmem:[#allocation10 + $0x880] sm:$0xff]
        %v1088 = vld [vmem:[#allocation10 + $0x888] sm:$0xff]
        %v1089 = vld [vmem:[#allocation10 + $0x890] sm:$0xff]
        %v1090 = vld [vmem:[#allocation10 + $0x898] sm:$0xff]
        %v1091 = vld [vmem:[#allocation10 + $0x8a0] sm:$0xff]
        %v1092 = vld [vmem:[#allocation10 + $0x8a8] sm:$0xff]
        %v1093 = vld [vmem:[#allocation10 + $0x8b0] sm:$0xff]
        %v1094 = vld [vmem:[#allocation10 + $0x8b8] sm:$0xff]
        %v1095 = vld [vmem:[#allocation10 + $0x8c0] sm:$0xff]
        %v1096 = vld [vmem:[#allocation10 + $0x8c8] sm:$0xff]
        %v1097 = vld [vmem:[#allocation10 + $0x8d0] sm:$0xff]
        %v1098 = vld [vmem:[#allocation10 + $0x8d8] sm:$0xff]
        %v1099 = vld [vmem:[#allocation10 + $0x8e0] sm:$0xff]
        %v1100 = vld [vmem:[#allocation10 + $0x8e8] sm:$0xff]
        %v1101 = vld [vmem:[#allocation10 + $0x8f0] sm:$0xff]
        %v1102 = vld [vmem:[#allocation10 + $0x8f8] sm:$0xff]
        %v1103 = vld [vmem:[#allocation10 + $0x900] sm:$0xff]
        %v1104 = vld [vmem:[#allocation10 + $0x908] sm:$0xff]
        %v1105 = vld [vmem:[#allocation10 + $0x910] sm:$0xff]
        %v1106 = vld [vmem:[#allocation10 + $0x918] sm:$0xff]
        %v1107 = vld [vmem:[#allocation10 + $0x920] sm:$0xff]
        %v1108 = vld [vmem:[#allocation10 + $0x928] sm:$0xff]
        %v1109 = vld [vmem:[#allocation10 + $0x930] sm:$0xff]
        %v1110 = vld [vmem:[#allocation10 + $0x938] sm:$0xff]
        %v1111 = vld [vmem:[#allocation10 + $0x940] sm:$0xff]
        %v1112 = vld [vmem:[#allocation10 + $0x948] sm:$0xff]
        %v1113 = vld [vmem:[#allocation10 + $0x950] sm:$0xff]
        %v1114 = vld [vmem:[#allocation10 + $0x958] sm:$0xff]
        %v1115 = vld [vmem:[#allocation10 + $0x960] sm:$0xff]
        %v1116 = vld [vmem:[#allocation10 + $0x968] sm:$0xff]
        %v1117 = vld [vmem:[#allocation10 + $0x970] sm:$0xff]
        %v1118 = vld [vmem:[#allocation10 + $0x978] sm:$0xff]
        %v1119 = vld [vmem:[#allocation10 + $0x980] sm:$0xff]
        %v1120 = vld [vmem:[#allocation10 + $0x988] sm:$0xff]
        %v1121 = vld [vmem:[#allocation10 + $0x990] sm:$0xff]
        %v1122 = vld [vmem:[#allocation10 + $0x998] sm:$0xff]
        %v1123 = vld [vmem:[#allocation10 + $0x9a0] sm:$0xff]
        %v1124 = vld [vmem:[#allocation10 + $0x9a8] sm:$0xff]
        %v1125 = vld [vmem:[#allocation10 + $0x9b0] sm:$0xff]
        %v1126 = vld [vmem:[#allocation10 + $0x9b8] sm:$0xff]
        %v1127 = vld [vmem:[#allocation10 + $0x9c0] sm:$0xff]
        %v1128 = vld [vmem:[#allocation10 + $0x9c8] sm:$0xff]
        %v1129 = vld [vmem:[#allocation10 + $0x9d0] sm:$0xff]
        %v1130 = vld [vmem:[#allocation10 + $0x9d8] sm:$0xff]
        %v1131 = vld [vmem:[#allocation10 + $0x9e0] sm:$0xff]
        %v1132 = vld [vmem:[#allocation10 + $0x9e8] sm:$0xff]
        %v1133 = vld [vmem:[#allocation10 + $0x9f0] sm:$0xff]
        %v1134 = vld [vmem:[#allocation10 + $0x9f8] sm:$0xff]
        %v1135 = vld [vmem:[#allocation10 + $0xa00] sm:$0xff]
        %v1136 = vld [vmem:[#allocation10 + $0xa08] sm:$0xff]
        %v1137 = vld [vmem:[#allocation10 + $0xa10] sm:$0xff]
        %v1138 = vld [vmem:[#allocation10 + $0xa18] sm:$0xff]
        %v1139 = vld [vmem:[#allocation10 + $0xa20] sm:$0xff]
        %v1140 = vld [vmem:[#allocation10 + $0xa28] sm:$0xff]
        %v1141 = vld [vmem:[#allocation10 + $0xa30] sm:$0xff]
        %v1142 = vld [vmem:[#allocation10 + $0xa38] sm:$0xff]
        %v1143 = vld [vmem:[#allocation10 + $0xa40] sm:$0xff]
        %v1144 = vld [vmem:[#allocation10 + $0xa48] sm:$0xff]
        %v1145 = vld [vmem:[#allocation10 + $0xa50] sm:$0xff]
        %v1146 = vld [vmem:[#allocation10 + $0xa58] sm:$0xff]
        %v1147 = vld [vmem:[#allocation10 + $0xa60] sm:$0xff]
        %v1148 = vld [vmem:[#allocation10 + $0xa68] sm:$0xff]
        %v1149 = vld [vmem:[#allocation10 + $0xa70] sm:$0xff]
        %v1150 = vld [vmem:[#allocation10 + $0xa78] sm:$0xff]
        %v1151 = vld [vmem:[#allocation10 + $0xa80] sm:$0xff]
        %v1152 = vld [vmem:[#allocation10 + $0xa88] sm:$0xff]
        %v1153 = vld [vmem:[#allocation10 + $0xa90] sm:$0xff]
        %v1154 = vld [vmem:[#allocation10 + $0xa98] sm:$0xff]
        %v1155 = vld [vmem:[#allocation10 + $0xaa0] sm:$0xff]
        %v1156 = vld [vmem:[#allocation10 + $0xaa8] sm:$0xff]
        %v1157 = vld [vmem:[#allocation10 + $0xab0] sm:$0xff]
        %v1158 = vld [vmem:[#allocation10 + $0xab8] sm:$0xff]
        %v1159 = vld [vmem:[#allocation10 + $0xac0] sm:$0xff]
        %v1160 = vld [vmem:[#allocation10 + $0xac8] sm:$0xff]
        %v1161 = vld [vmem:[#allocation10 + $0xad0] sm:$0xff]
        %v1162 = vld [vmem:[#allocation10 + $0xad8] sm:$0xff]
        %v1163 = vld [vmem:[#allocation10 + $0xae0] sm:$0xff]
        %v1164 = vld [vmem:[#allocation10 + $0xae8] sm:$0xff]
        %v1165 = vld [vmem:[#allocation10 + $0xaf0] sm:$0xff]
        %v1166 = vld [vmem:[#allocation10 + $0xaf8] sm:$0xff]
        %v1167 = vld [vmem:[#allocation10 + $0xb00] sm:$0xff]
        %v1168 = vld [vmem:[#allocation10 + $0xb08] sm:$0xff]
        %v1169 = vld [vmem:[#allocation10 + $0xb10] sm:$0xff]
        %v1170 = vld [vmem:[#allocation10 + $0xb18] sm:$0xff]
        %v1171 = vld [vmem:[#allocation10 + $0xb20] sm:$0xff]
        %v1172 = vld [vmem:[#allocation10 + $0xb28] sm:$0xff]
        %v1173 = vld [vmem:[#allocation10 + $0xb30] sm:$0xff]
        %v1174 = vld [vmem:[#allocation10 + $0xb38] sm:$0xff]
        %v1175 = vld [vmem:[#allocation10 + $0xb40] sm:$0xff]
        %v1176 = vld [vmem:[#allocation10 + $0xb48] sm:$0xff]
        %v1177 = vld [vmem:[#allocation10 + $0xb50] sm:$0xff]
        %v1178 = vld [vmem:[#allocation10 + $0xb58] sm:$0xff]
        %v1179 = vld [vmem:[#allocation10 + $0xb60] sm:$0xff]
        %v1180 = vld [vmem:[#allocation10 + $0xb68] sm:$0xff]
        %v1181 = vld [vmem:[#allocation10 + $0xb70] sm:$0xff]
        %v1182 = vld [vmem:[#allocation10 + $0xb78] sm:$0xff]
        %v1183 = vld [vmem:[#allocation10 + $0xb80] sm:$0xff]
        %v1184 = vld [vmem:[#allocation10 + $0xb88] sm:$0xff]
        %v1185 = vld [vmem:[#allocation10 + $0xb90] sm:$0xff]
        %v1186 = vld [vmem:[#allocation10 + $0xb98] sm:$0xff]
        %v1187 = vld [vmem:[#allocation10 + $0xba0] sm:$0xff]
        %v1188 = vld [vmem:[#allocation10 + $0xba8] sm:$0xff]
        %v1189 = vld [vmem:[#allocation10 + $0xbb0] sm:$0xff]
        %v1190 = vld [vmem:[#allocation10 + $0xbb8] sm:$0xff]
        %v1191 = vld [vmem:[#allocation10 + $0xbc0] sm:$0xff]
        %v1192 = vld [vmem:[#allocation10 + $0xbc8] sm:$0xff]
        %v1193 = vld [vmem:[#allocation10 + $0xbd0] sm:$0xff]
        %v1194 = vld [vmem:[#allocation10 + $0xbd8] sm:$0xff]
        %v1195 = vld [vmem:[#allocation10 + $0xbe0] sm:$0xff]
        %v1196 = vld [vmem:[#allocation10 + $0xbe8] sm:$0xff]
        %v1197 = vld [vmem:[#allocation10 + $0xbf0] sm:$0xff]
        %v1198 = vld [vmem:[#allocation10 + $0xbf8] sm:$0xff]
        %v1199 = vld [vmem:[#allocation10 + $0xc00] sm:$0xff]
        %v1200 = vld [vmem:[#allocation10 + $0xc08] sm:$0xff]
        %v1201 = vld [vmem:[#allocation10 + $0xc10] sm:$0xff]
        %v1202 = vld [vmem:[#allocation10 + $0xc18] sm:$0xff]
        %v1203 = vld [vmem:[#allocation10 + $0xc20] sm:$0xff]
        %v1204 = vld [vmem:[#allocation10 + $0xc28] sm:$0xff]
        %v1205 = vld [vmem:[#allocation10 + $0xc30] sm:$0xff]
        %v1206 = vld [vmem:[#allocation10 + $0xc38] sm:$0xff]
        %v1207 = vld [vmem:[#allocation10 + $0xc40] sm:$0xff]
        %v1208 = vld [vmem:[#allocation10 + $0xc48] sm:$0xff]
        %v1209 = vld [vmem:[#allocation10 + $0xc50] sm:$0xff]
        %v1210 = vld [vmem:[#allocation10 + $0xc58] sm:$0xff]
        %v1211 = vld [vmem:[#allocation10 + $0xc60] sm:$0xff]
        %v1212 = vld [vmem:[#allocation10 + $0xc68] sm:$0xff]
        %v1213 = vld [vmem:[#allocation10 + $0xc70] sm:$0xff]
        %v1214 = vld [vmem:[#allocation10 + $0xc78] sm:$0xff]
        %v1215 = vld [vmem:[#allocation10 + $0xc80] sm:$0xff]
        %v1216 = vld [vmem:[#allocation10 + $0xc88] sm:$0xff]
        %v1217 = vld [vmem:[#allocation10 + $0xc90] sm:$0xff]
        %v1218 = vld [vmem:[#allocation10 + $0xc98] sm:$0xff]
        %v1219 = vld [vmem:[#allocation10 + $0xca0] sm:$0xff]
        %v1220 = vld [vmem:[#allocation10 + $0xca8] sm:$0xff]
        %v1221 = vld [vmem:[#allocation10 + $0xcb0] sm:$0xff]
        %v1222 = vld [vmem:[#allocation10 + $0xcb8] sm:$0xff]
        %v1223 = vld [vmem:[#allocation10 + $0xcc0] sm:$0xff]
        %v1224 = vld [vmem:[#allocation10 + $0xcc8] sm:$0xff]
        %v1225 = vld [vmem:[#allocation10 + $0xcd0] sm:$0xff]
        %v1226 = vld [vmem:[#allocation10 + $0xcd8] sm:$0xff]
        %v1227 = vld [vmem:[#allocation10 + $0xce0] sm:$0xff]
        %v1228 = vld [vmem:[#allocation10 + $0xce8] sm:$0xff]
        %v1229 = vld [vmem:[#allocation10 + $0xcf0] sm:$0xff]
        %v1230 = vld [vmem:[#allocation10 + $0xcf8] sm:$0xff]
        %v1231 = vld [vmem:[#allocation10 + $0xd00] sm:$0xff]
        %v1232 = vld [vmem:[#allocation10 + $0xd08] sm:$0xff]
        %v1233 = vld [vmem:[#allocation10 + $0xd10] sm:$0xff]
        %v1234 = vld [vmem:[#allocation10 + $0xd18] sm:$0xff]
        %v1235 = vld [vmem:[#allocation10 + $0xd20] sm:$0xff]
        %v1236 = vld [vmem:[#allocation10 + $0xd28] sm:$0xff]
        %v1237 = vld [vmem:[#allocation10 + $0xd30] sm:$0xff]
        %v1238 = vld [vmem:[#allocation10 + $0xd38] sm:$0xff]
        %v1239 = vld [vmem:[#allocation10 + $0xd40] sm:$0xff]
        %v1240 = vld [vmem:[#allocation10 + $0xd48] sm:$0xff]
        %v1241 = vld [vmem:[#allocation10 + $0xd50] sm:$0xff]
        %v1242 = vld [vmem:[#allocation10 + $0xd58] sm:$0xff]
        %v1243 = vld [vmem:[#allocation10 + $0xd60] sm:$0xff]
        %v1244 = vld [vmem:[#allocation10 + $0xd68] sm:$0xff]
        %v1245 = vld [vmem:[#allocation10 + $0xd70] sm:$0xff]
        %v1246 = vld [vmem:[#allocation10 + $0xd78] sm:$0xff]
        %v1247 = vld [vmem:[#allocation10 + $0xd80] sm:$0xff]
        %v1248 = vld [vmem:[#allocation10 + $0xd88] sm:$0xff]
        %v1249 = vld [vmem:[#allocation10 + $0xd90] sm:$0xff]
        %v1250 = vld [vmem:[#allocation10 + $0xd98] sm:$0xff]
        %v1251 = vld [vmem:[#allocation10 + $0xda0] sm:$0xff]
        %v1252 = vld [vmem:[#allocation10 + $0xda8] sm:$0xff]
        %v1253 = vld [vmem:[#allocation10 + $0xdb0] sm:$0xff]
        %v1254 = vld [vmem:[#allocation10 + $0xdb8] sm:$0xff]
        %v1255 = vld [vmem:[#allocation10 + $0xdc0] sm:$0xff]
        %v1256 = vld [vmem:[#allocation10 + $0xdc8] sm:$0xff]
        %v1257 = vld [vmem:[#allocation10 + $0xdd0] sm:$0xff]
        %v1258 = vld [vmem:[#allocation10 + $0xdd8] sm:$0xff]
        %v1259 = vld [vmem:[#allocation10 + $0xde0] sm:$0xff]
        %v1260 = vld [vmem:[#allocation10 + $0xde8] sm:$0xff]
        %v1261 = vld [vmem:[#allocation10 + $0xdf0] sm:$0xff]
        %v1262 = vld [vmem:[#allocation10 + $0xdf8] sm:$0xff]
        %v1263 = vld [vmem:[#allocation10 + $0xe00] sm:$0xff]
        %v1264 = vld [vmem:[#allocation10 + $0xe08] sm:$0xff]
        %v1265 = vld [vmem:[#allocation10 + $0xe10] sm:$0xff]
        %v1266 = vld [vmem:[#allocation10 + $0xe18] sm:$0xff]
        %v1267 = vld [vmem:[#allocation10 + $0xe20] sm:$0xff]
        %v1268 = vld [vmem:[#allocation10 + $0xe28] sm:$0xff]
        %v1269 = vld [vmem:[#allocation10 + $0xe30] sm:$0xff]
        %v1270 = vld [vmem:[#allocation10 + $0xe38] sm:$0xff]
        %v1271 = vld [vmem:[#allocation10 + $0xe40] sm:$0xff]
        %v1272 = vld [vmem:[#allocation10 + $0xe48] sm:$0xff]
        %v1273 = vld [vmem:[#allocation10 + $0xe50] sm:$0xff]
        %v1274 = vld [vmem:[#allocation10 + $0xe58] sm:$0xff]
        %v1275 = vld [vmem:[#allocation10 + $0xe60] sm:$0xff]
        %v1276 = vld [vmem:[#allocation10 + $0xe68] sm:$0xff]
        %v1277 = vld [vmem:[#allocation10 + $0xe70] sm:$0xff]
        %v1278 = vld [vmem:[#allocation10 + $0xe78] sm:$0xff]
        %v1279 = vld [vmem:[#allocation10 + $0xe80] sm:$0xff]
        %v1280 = vld [vmem:[#allocation10 + $0xe88] sm:$0xff]
        %v1281 = vld [vmem:[#allocation10 + $0xe90] sm:$0xff]
        %v1282 = vld [vmem:[#allocation10 + $0xe98] sm:$0xff]
        %v1283 = vld [vmem:[#allocation10 + $0xea0] sm:$0xff]
        %v1284 = vld [vmem:[#allocation10 + $0xea8] sm:$0xff]
        %v1285 = vld [vmem:[#allocation10 + $0xeb0] sm:$0xff]
        %v1286 = vld [vmem:[#allocation10 + $0xeb8] sm:$0xff]
        %v1287 = vld [vmem:[#allocation10 + $0xec0] sm:$0xff]
        %v1288 = vld [vmem:[#allocation10 + $0xec8] sm:$0xff]
        %v1289 = vld [vmem:[#allocation10 + $0xed0] sm:$0xff]
        %v1290 = vld [vmem:[#allocation10 + $0xed8] sm:$0xff]
        %v1291 = vld [vmem:[#allocation10 + $0xee0] sm:$0xff]
        %v1292 = vld [vmem:[#allocation10 + $0xee8] sm:$0xff]
        %v1293 = vld [vmem:[#allocation10 + $0xef0] sm:$0xff]
        %v1294 = vld [vmem:[#allocation10 + $0xef8] sm:$0xff]
        %v1295 = vld [vmem:[#allocation10 + $0xf00] sm:$0xff]
        %v1296 = vld [vmem:[#allocation10 + $0xf08] sm:$0xff]
        %v1297 = vld [vmem:[#allocation10 + $0xf10] sm:$0xff]
        %v1298 = vld [vmem:[#allocation10 + $0xf18] sm:$0xff]
        %v1299 = vld [vmem:[#allocation10 + $0xf20] sm:$0xff]
        %v1300 = vld [vmem:[#allocation10 + $0xf28] sm:$0xff]
        %v1301 = vld [vmem:[#allocation10 + $0xf30] sm:$0xff]
        %v1302 = vld [vmem:[#allocation10 + $0xf38] sm:$0xff]
        %v1303 = vld [vmem:[#allocation10 + $0xf40] sm:$0xff]
        %v1304 = vld [vmem:[#allocation10 + $0xf48] sm:$0xff]
        %v1305 = vld [vmem:[#allocation10 + $0xf50] sm:$0xff]
        %v1306 = vld [vmem:[#allocation10 + $0xf58] sm:$0xff]
        %v1307 = vld [vmem:[#allocation10 + $0xf60] sm:$0xff]
        %v1308 = vld [vmem:[#allocation10 + $0xf68] sm:$0xff]
        %v1309 = vld [vmem:[#allocation10 + $0xf70] sm:$0xff]
        %v1310 = vld [vmem:[#allocation10 + $0xf78] sm:$0xff]
        %v1311 = vld [vmem:[#allocation10 + $0xf80] sm:$0xff]
        %v1312 = vld [vmem:[#allocation10 + $0xf88] sm:$0xff]
        %v1313 = vld [vmem:[#allocation10 + $0xf90] sm:$0xff]
        %v1314 = vld [vmem:[#allocation10 + $0xf98] sm:$0xff]
        %v1315 = vld [vmem:[#allocation10 + $0xfa0] sm:$0xff]
        %v1316 = vld [vmem:[#allocation10 + $0xfa8] sm:$0xff]
        %v1317 = vld [vmem:[#allocation10 + $0xfb0] sm:$0xff]
        %v1318 = vld [vmem:[#allocation10 + $0xfb8] sm:$0xff]
        %v1319 = vld [vmem:[#allocation10 + $0xfc0] sm:$0xff]
        %v1320 = vld [vmem:[#allocation10 + $0xfc8] sm:$0xff]
        %v1321 = vld [vmem:[#allocation10 + $0xfd0] sm:$0xff]
        %v1322 = vld [vmem:[#allocation10 + $0xfd8] sm:$0xff]
        %v1323 = vld [vmem:[#allocation10 + $0xfe0] sm:$0xff]
        %v1324 = vld [vmem:[#allocation10 + $0xfe8] sm:$0xff]
        %v1325 = vld [vmem:[#allocation10 + $0xff0] sm:$0xff]
        %v1326 = vld [vmem:[#allocation10 + $0xff8] sm:$0xff]
        %v1327 = vld [vmem:[#allocation10 + $0x1000] sm:$0xff]
        %v1328 = vld [vmem:[#allocation10 + $0x1008] sm:$0xff]
        %v1329 = vld [vmem:[#allocation10 + $0x1010] sm:$0xff]
        %v1330 = vld [vmem:[#allocation10 + $0x1018] sm:$0xff]
        %v1331 = vld [vmem:[#allocation10 + $0x1020] sm:$0xff]
        %v1332 = vld [vmem:[#allocation10 + $0x1028] sm:$0xff]
        %v1333 = vld [vmem:[#allocation10 + $0x1030] sm:$0xff]
        %v1334 = vld [vmem:[#allocation10 + $0x1038] sm:$0xff]
        %v1335 = vld [vmem:[#allocation10 + $0x1040] sm:$0xff]
        %v1336 = vld [vmem:[#allocation10 + $0x1048] sm:$0xff]
        %v1337 = vld [vmem:[#allocation10 + $0x1050] sm:$0xff]
        %v1338 = vld [vmem:[#allocation10 + $0x1058] sm:$0xff]
        %v1339 = vld [vmem:[#allocation10 + $0x1060] sm:$0xff]
        %v1340 = vld [vmem:[#allocation10 + $0x1068] sm:$0xff]
        %v1341 = vld [vmem:[#allocation10 + $0x1070] sm:$0xff]
        %v1342 = vld [vmem:[#allocation10 + $0x1078] sm:$0xff]
        %v1343 = vld [vmem:[#allocation10 + $0x1080] sm:$0xff]
        %v1344 = vld [vmem:[#allocation10 + $0x1088] sm:$0xff]
        %v1345 = vld [vmem:[#allocation10 + $0x1090] sm:$0xff]
        %v1346 = vld [vmem:[#allocation10 + $0x1098] sm:$0xff]
        %v1347 = vld [vmem:[#allocation10 + $0x10a0] sm:$0xff]
        %v1348 = vld [vmem:[#allocation10 + $0x10a8] sm:$0xff]
        %v1349 = vld [vmem:[#allocation10 + $0x10b0] sm:$0xff]
        %v1350 = vld [vmem:[#allocation10 + $0x10b8] sm:$0xff]
        %v1351 = vld [vmem:[#allocation10 + $0x10c0] sm:$0xff]
        %v1352 = vld [vmem:[#allocation10 + $0x10c8] sm:$0xff]
        %v1353 = vld [vmem:[#allocation10 + $0x10d0] sm:$0xff]
        %v1354 = vld [vmem:[#allocation10 + $0x10d8] sm:$0xff]
        %v1355 = vld [vmem:[#allocation10 + $0x10e0] sm:$0xff]
        %v1356 = vld [vmem:[#allocation10 + $0x10e8] sm:$0xff]
        %v1357 = vld [vmem:[#allocation10 + $0x10f0] sm:$0xff]
        %v1358 = vld [vmem:[#allocation10 + $0x10f8] sm:$0xff]
        %v1359 = vld [vmem:[#allocation10 + $0x1100] sm:$0xff]
        %v1360 = vld [vmem:[#allocation10 + $0x1108] sm:$0xff]
        %v1361 = vld [vmem:[#allocation10 + $0x1110] sm:$0xff]
        %v1362 = vld [vmem:[#allocation10 + $0x1118] sm:$0xff]
        %v1363 = vld [vmem:[#allocation10 + $0x1120] sm:$0xff]
        %v1364 = vld [vmem:[#allocation10 + $0x1128] sm:$0xff]
        %v1365 = vld [vmem:[#allocation10 + $0x1130] sm:$0xff]
        %v1366 = vld [vmem:[#allocation10 + $0x1138] sm:$0xff]
        %v1367 = vld [vmem:[#allocation10 + $0x1140] sm:$0xff]
        %v1368 = vld [vmem:[#allocation10 + $0x1148] sm:$0xff]
        %v1369 = vld [vmem:[#allocation10 + $0x1150] sm:$0xff]
        %v1370 = vld [vmem:[#allocation10 + $0x1158] sm:$0xff]
        %v1371 = vld [vmem:[#allocation10 + $0x1160] sm:$0xff]
        %v1372 = vld [vmem:[#allocation10 + $0x1168] sm:$0xff]
        %v1373 = vld [vmem:[#allocation10 + $0x1170] sm:$0xff]
        %v1374 = vld [vmem:[#allocation10 + $0x1178] sm:$0xff]
        %v1375 = vld [vmem:[#allocation10 + $0x1180] sm:$0xff]
        %v1376 = vld [vmem:[#allocation10 + $0x1188] sm:$0xff]
        %v1377 = vld [vmem:[#allocation10 + $0x1190] sm:$0xff]
        %v1378 = vld [vmem:[#allocation10 + $0x1198] sm:$0xff]
        %v1379 = vld [vmem:[#allocation10 + $0x11a0] sm:$0xff]
        %v1380 = vld [vmem:[#allocation10 + $0x11a8] sm:$0xff]
        %v1381 = vld [vmem:[#allocation10 + $0x11b0] sm:$0xff]
        %v1382 = vld [vmem:[#allocation10 + $0x11b8] sm:$0xff]
        %v1383 = vld [vmem:[#allocation10 + $0x11c0] sm:$0xff]
        %v1384 = vld [vmem:[#allocation10 + $0x11c8] sm:$0xff]
        %v1385 = vld [vmem:[#allocation10 + $0x11d0] sm:$0xff]
        %v1386 = vld [vmem:[#allocation10 + $0x11d8] sm:$0xff]
        %v1387 = vld [vmem:[#allocation10 + $0x11e0] sm:$0xff]
        %v1388 = vld [vmem:[#allocation10 + $0x11e8] sm:$0xff]
        %v1389 = vld [vmem:[#allocation10 + $0x11f0] sm:$0xff]
        %v1390 = vld [vmem:[#allocation10 + $0x11f8] sm:$0xff]
        %v1391 = vld [vmem:[#allocation10 + $0x1200] sm:$0xff]
        %v1392 = vld [vmem:[#allocation10 + $0x1208] sm:$0xff]
        %v1393 = vld [vmem:[#allocation10 + $0x1210] sm:$0xff]
        %v1394 = vld [vmem:[#allocation10 + $0x1218] sm:$0xff]
        %v1395 = vld [vmem:[#allocation10 + $0x1220] sm:$0xff]
        %v1396 = vld [vmem:[#allocation10 + $0x1228] sm:$0xff]
        %v1397 = vld [vmem:[#allocation10 + $0x1230] sm:$0xff]
        %v1398 = vld [vmem:[#allocation10 + $0x1238] sm:$0xff]
        %v1399 = vld [vmem:[#allocation10 + $0x1240] sm:$0xff]
        %v1400 = vld [vmem:[#allocation10 + $0x1248] sm:$0xff]
        %v1401 = vld [vmem:[#allocation10 + $0x1250] sm:$0xff]
        %v1402 = vld [vmem:[#allocation10 + $0x1258] sm:$0xff]
        %v1403 = vld [vmem:[#allocation10 + $0x1260] sm:$0xff]
        %v1404 = vld [vmem:[#allocation10 + $0x1268] sm:$0xff]
        %v1405 = vld [vmem:[#allocation10 + $0x1270] sm:$0xff]
        %v1406 = vld [vmem:[#allocation10 + $0x1278] sm:$0xff]
        %v1407 = vld [vmem:[#allocation10 + $0x1280] sm:$0xff]
        %v1408 = vld [vmem:[#allocation10 + $0x1288] sm:$0xff]
        %v1409 = vld [vmem:[#allocation10 + $0x1290] sm:$0xff]
        %v1410 = vld [vmem:[#allocation10 + $0x1298] sm:$0xff]
        %v1411 = vld [vmem:[#allocation10 + $0x12a0] sm:$0xff]
        %v1412 = vld [vmem:[#allocation10 + $0x12a8] sm:$0xff]
        %v1413 = vld [vmem:[#allocation10 + $0x12b0] sm:$0xff]
        %v1414 = vld [vmem:[#allocation10 + $0x12b8] sm:$0xff]
        %v1415 = vld [vmem:[#allocation10 + $0x12c0] sm:$0xff]
        %v1416 = vld [vmem:[#allocation10 + $0x12c8] sm:$0xff]
        %v1417 = vld [vmem:[#allocation10 + $0x12d0] sm:$0xff]
        %v1418 = vld [vmem:[#allocation10 + $0x12d8] sm:$0xff]
        %v1419 = vld [vmem:[#allocation10 + $0x12e0] sm:$0xff]
        %v1420 = vld [vmem:[#allocation10 + $0x12e8] sm:$0xff]
        %v1421 = vld [vmem:[#allocation10 + $0x12f0] sm:$0xff]
        %v1422 = vld [vmem:[#allocation10 + $0x12f8] sm:$0xff]
        %v1423 = vld [vmem:[#allocation10 + $0x1300] sm:$0xff]
        %v1424 = vld [vmem:[#allocation10 + $0x1308] sm:$0xff]
        %v1425 = vld [vmem:[#allocation10 + $0x1310] sm:$0xff]
        %v1426 = vld [vmem:[#allocation10 + $0x1318] sm:$0xff]
        %v1427 = vld [vmem:[#allocation10 + $0x1320] sm:$0xff]
        %v1428 = vld [vmem:[#allocation10 + $0x1328] sm:$0xff]
        %v1429 = vld [vmem:[#allocation10 + $0x1330] sm:$0xff]
        %v1430 = vld [vmem:[#allocation10 + $0x1338] sm:$0xff]
        %v1431 = vld [vmem:[#allocation10 + $0x1340] sm:$0xff]
        %v1432 = vld [vmem:[#allocation10 + $0x1348] sm:$0xff]
        %v1433 = vld [vmem:[#allocation10 + $0x1350] sm:$0xff]
        %v1434 = vld [vmem:[#allocation10 + $0x1358] sm:$0xff]
        %v1435 = vld [vmem:[#allocation10 + $0x1360] sm:$0xff]
        %v1436 = vld [vmem:[#allocation10 + $0x1368] sm:$0xff]
        %v1437 = vld [vmem:[#allocation10 + $0x1370] sm:$0xff]
        %v1438 = vld [vmem:[#allocation10 + $0x1378] sm:$0xff]
        %v1439 = vld [vmem:[#allocation10 + $0x1380] sm:$0xff]
        %v1440 = vld [vmem:[#allocation10 + $0x1388] sm:$0xff]
        %v1441 = vld [vmem:[#allocation10 + $0x1390] sm:$0xff]
        %v1442 = vld [vmem:[#allocation10 + $0x1398] sm:$0xff]
        %v1443 = vld [vmem:[#allocation10 + $0x13a0] sm:$0xff]
        %v1444 = vld [vmem:[#allocation10 + $0x13a8] sm:$0xff]
        %v1445 = vld [vmem:[#allocation10 + $0x13b0] sm:$0xff]
        %v1446 = vld [vmem:[#allocation10 + $0x13b8] sm:$0xff]
        %v1447 = vld [vmem:[#allocation10 + $0x13c0] sm:$0xff]
        %v1448 = vld [vmem:[#allocation10 + $0x13c8] sm:$0xff]
        %v1449 = vld [vmem:[#allocation10 + $0x13d0] sm:$0xff]
        %v1450 = vld [vmem:[#allocation10 + $0x13d8] sm:$0xff]
        %v1451 = vld [vmem:[#allocation10 + $0x13e0] sm:$0xff]
        %v1452 = vld [vmem:[#allocation10 + $0x13e8] sm:$0xff]
        %v1453 = vld [vmem:[#allocation10 + $0x13f0] sm:$0xff]
        %v1454 = vld [vmem:[#allocation10 + $0x13f8] sm:$0xff]
        %v1455 = vld [vmem:[#allocation10 + $0x1400] sm:$0xff]
        %v1456 = vld [vmem:[#allocation10 + $0x1408] sm:$0xff]
        %v1457 = vld [vmem:[#allocation10 + $0x1410] sm:$0xff]
        %v1458 = vld [vmem:[#allocation10 + $0x1418] sm:$0xff]
        %v1459 = vld [vmem:[#allocation10 + $0x1420] sm:$0xff]
        %v1460 = vld [vmem:[#allocation10 + $0x1428] sm:$0xff]
        %v1461 = vld [vmem:[#allocation10 + $0x1430] sm:$0xff]
        %v1462 = vld [vmem:[#allocation10 + $0x1438] sm:$0xff]
        %v1463 = vld [vmem:[#allocation10 + $0x1440] sm:$0xff]
        %v1464 = vld [vmem:[#allocation10 + $0x1448] sm:$0xff]
        %v1465 = vld [vmem:[#allocation10 + $0x1450] sm:$0xff]
        %v1466 = vld [vmem:[#allocation10 + $0x1458] sm:$0xff]
        %v1467 = vld [vmem:[#allocation10 + $0x1460] sm:$0xff]
        %v1468 = vld [vmem:[#allocation10 + $0x1468] sm:$0xff]
        %v1469 = vld [vmem:[#allocation10 + $0x1470] sm:$0xff]
        %v1470 = vld [vmem:[#allocation10 + $0x1478] sm:$0xff]
        %v1471 = vld [vmem:[#allocation10 + $0x1480] sm:$0xff]
        %v1472 = vld [vmem:[#allocation10 + $0x1488] sm:$0xff]
        %v1473 = vld [vmem:[#allocation10 + $0x1490] sm:$0xff]
        %v1474 = vld [vmem:[#allocation10 + $0x1498] sm:$0xff]
        %v1475 = vld [vmem:[#allocation10 + $0x14a0] sm:$0xff]
        %v1476 = vld [vmem:[#allocation10 + $0x14a8] sm:$0xff]
        %v1477 = vld [vmem:[#allocation10 + $0x14b0] sm:$0xff]
        %v1478 = vld [vmem:[#allocation10 + $0x14b8] sm:$0xff]
        %v1479 = vld [vmem:[#allocation10 + $0x14c0] sm:$0xff]
        %v1480 = vld [vmem:[#allocation10 + $0x14c8] sm:$0xff]
        %v1481 = vld [vmem:[#allocation10 + $0x14d0] sm:$0xff]
        %v1482 = vld [vmem:[#allocation10 + $0x14d8] sm:$0xff]
        %v1483 = vld [vmem:[#allocation10 + $0x14e0] sm:$0xff]
        %v1484 = vld [vmem:[#allocation10 + $0x14e8] sm:$0xff]
        %v1485 = vld [vmem:[#allocation10 + $0x14f0] sm:$0xff]
        %v1486 = vld [vmem:[#allocation10 + $0x14f8] sm:$0xff]
        %v1487 = vld [vmem:[#allocation10 + $0x1500] sm:$0xff]
        %v1488 = vld [vmem:[#allocation10 + $0x1508] sm:$0xff]
        %v1489 = vld [vmem:[#allocation10 + $0x1510] sm:$0xff]
        %v1490 = vld [vmem:[#allocation10 + $0x1518] sm:$0xff]
        %v1491 = vld [vmem:[#allocation10 + $0x1520] sm:$0xff]
        %v1492 = vld [vmem:[#allocation10 + $0x1528] sm:$0xff]
        %v1493 = vld [vmem:[#allocation10 + $0x1530] sm:$0xff]
        %v1494 = vld [vmem:[#allocation10 + $0x1538] sm:$0xff]
        %v1495 = vld [vmem:[#allocation10 + $0x1540] sm:$0xff]
        %v1496 = vld [vmem:[#allocation10 + $0x1548] sm:$0xff]
        %v1497 = vld [vmem:[#allocation10 + $0x1550] sm:$0xff]
        %v1498 = vld [vmem:[#allocation10 + $0x1558] sm:$0xff]
        %v1499 = vld [vmem:[#allocation10 + $0x1560] sm:$0xff]
        %v1500 = vld [vmem:[#allocation10 + $0x1568] sm:$0xff]
        %v1501 = vld [vmem:[#allocation10 + $0x1570] sm:$0xff]
        %v1502 = vld [vmem:[#allocation10 + $0x1578] sm:$0xff]
        %v1503 = vld [vmem:[#allocation10 + $0x1580] sm:$0xff]
        %v1504 = vld [vmem:[#allocation10 + $0x1588] sm:$0xff]
        %v1505 = vld [vmem:[#allocation10 + $0x1590] sm:$0xff]
        %v1506 = vld [vmem:[#allocation10 + $0x1598] sm:$0xff]
        %v1507 = vld [vmem:[#allocation10 + $0x15a0] sm:$0xff]
        %v1508 = vld [vmem:[#allocation10 + $0x15a8] sm:$0xff]
        %v1509 = vld [vmem:[#allocation10 + $0x15b0] sm:$0xff]
        %v1510 = vld [vmem:[#allocation10 + $0x15b8] sm:$0xff]
        %v1511 = vld [vmem:[#allocation10 + $0x15c0] sm:$0xff]
        %v1512 = vld [vmem:[#allocation10 + $0x15c8] sm:$0xff]
        %v1513 = vld [vmem:[#allocation10 + $0x15d0] sm:$0xff]
        %v1514 = vld [vmem:[#allocation10 + $0x15d8] sm:$0xff]
        %v1515 = vld [vmem:[#allocation10 + $0x15e0] sm:$0xff]
        %v1516 = vld [vmem:[#allocation10 + $0x15e8] sm:$0xff]
        %v1517 = vld [vmem:[#allocation10 + $0x15f0] sm:$0xff]
        %v1518 = vld [vmem:[#allocation10 + $0x15f8] sm:$0xff]
        %v1519 = vld [vmem:[#allocation10 + $0x1600] sm:$0xff]
        %v1520 = vld [vmem:[#allocation10 + $0x1608] sm:$0xff]
        %v1521 = vld [vmem:[#allocation10 + $0x1610] sm:$0xff]
        %v1522 = vld [vmem:[#allocation10 + $0x1618] sm:$0xff]
        %v1523 = vld [vmem:[#allocation10 + $0x1620] sm:$0xff]
        %v1524 = vld [vmem:[#allocation10 + $0x1628] sm:$0xff]
        %v1525 = vld [vmem:[#allocation10 + $0x1630] sm:$0xff]
        %v1526 = vld [vmem:[#allocation10 + $0x1638] sm:$0xff]
        %v1527 = vld [vmem:[#allocation10 + $0x1640] sm:$0xff]
        %v1528 = vld [vmem:[#allocation10 + $0x1648] sm:$0xff]
        %v1529 = vld [vmem:[#allocation10 + $0x1650] sm:$0xff]
        %v1530 = vld [vmem:[#allocation10 + $0x1658] sm:$0xff]
        %v1531 = vld [vmem:[#allocation10 + $0x1660] sm:$0xff]
        %v1532 = vld [vmem:[#allocation10 + $0x1668] sm:$0xff]
        %v1533 = vld [vmem:[#allocation10 + $0x1670] sm:$0xff]
        %v1534 = vld [vmem:[#allocation10 + $0x1678] sm:$0xff]
        %v1535 = vld [vmem:[#allocation10 + $0x1680] sm:$0xff]
        %v1536 = vld [vmem:[#allocation10 + $0x1688] sm:$0xff]
        %v1537 = vld [vmem:[#allocation10 + $0x1690] sm:$0xff]
        %v1538 = vld [vmem:[#allocation10 + $0x1698] sm:$0xff]
        %v1539 = vld [vmem:[#allocation10 + $0x16a0] sm:$0xff]
        %v1540 = vld [vmem:[#allocation10 + $0x16a8] sm:$0xff]
        %v1541 = vld [vmem:[#allocation10 + $0x16b0] sm:$0xff]
        %v1542 = vld [vmem:[#allocation10 + $0x16b8] sm:$0xff]
        %v1543 = vld [vmem:[#allocation10 + $0x16c0] sm:$0xff]
        %v1544 = vld [vmem:[#allocation10 + $0x16c8] sm:$0xff]
        %v1545 = vld [vmem:[#allocation10 + $0x16d0] sm:$0xff]
        %v1546 = vld [vmem:[#allocation10 + $0x16d8] sm:$0xff]
        %v1547 = vld [vmem:[#allocation10 + $0x16e0] sm:$0xff]
        %v1548 = vld [vmem:[#allocation10 + $0x16e8] sm:$0xff]
        %v1549 = vld [vmem:[#allocation10 + $0x16f0] sm:$0xff]
        %v1550 = vld [vmem:[#allocation10 + $0x16f8] sm:$0xff]
        %v1551 = vld [vmem:[#allocation10 + $0x1700] sm:$0xff]
        %v1552 = vld [vmem:[#allocation10 + $0x1708] sm:$0xff]
        %v1553 = vld [vmem:[#allocation10 + $0x1710] sm:$0xff]
        %v1554 = vld [vmem:[#allocation10 + $0x1718] sm:$0xff]
        %v1555 = vld [vmem:[#allocation10 + $0x1720] sm:$0xff]
        %v1556 = vld [vmem:[#allocation10 + $0x1728] sm:$0xff]
        %v1557 = vld [vmem:[#allocation10 + $0x1730] sm:$0xff]
        %v1558 = vld [vmem:[#allocation10 + $0x1738] sm:$0xff]
        %v1559 = vld [vmem:[#allocation10 + $0x1740] sm:$0xff]
        %v1560 = vld [vmem:[#allocation10 + $0x1748] sm:$0xff]
        %v1561 = vld [vmem:[#allocation10 + $0x1750] sm:$0xff]
        %v1562 = vld [vmem:[#allocation10 + $0x1758] sm:$0xff]
        %v1563 = vld [vmem:[#allocation10 + $0x1760] sm:$0xff]
        %v1564 = vld [vmem:[#allocation10 + $0x1768] sm:$0xff]
        %v1565 = vld [vmem:[#allocation10 + $0x1770] sm:$0xff]
        %v1566 = vld [vmem:[#allocation10 + $0x1778] sm:$0xff]
        %v1567 = vld [vmem:[#allocation10 + $0x1780] sm:$0xff]
        %v1568 = vld [vmem:[#allocation10 + $0x1788] sm:$0xff]
        %v1569 = vld [vmem:[#allocation10 + $0x1790] sm:$0xff]
        %v1570 = vld [vmem:[#allocation10 + $0x1798] sm:$0xff]
        %v1571 = vld [vmem:[#allocation10 + $0x17a0] sm:$0xff]
        %v1572 = vld [vmem:[#allocation10 + $0x17a8] sm:$0xff]
        %v1573 = vld [vmem:[#allocation10 + $0x17b0] sm:$0xff]
        %v1574 = vld [vmem:[#allocation10 + $0x17b8] sm:$0xff]
        %v1575 = vld [vmem:[#allocation10 + $0x17c0] sm:$0xff]
        %v1576 = vld [vmem:[#allocation10 + $0x17c8] sm:$0xff]
        %v1577 = vld [vmem:[#allocation10 + $0x17d0] sm:$0xff]
        %v1578 = vld [vmem:[#allocation10 + $0x17d8] sm:$0xff]
        %v1579 = vld [vmem:[#allocation10 + $0x17e0] sm:$0xff]
        %v1580 = vld [vmem:[#allocation10 + $0x17e8] sm:$0xff]
        %v1581 = vld [vmem:[#allocation10 + $0x17f0] sm:$0xff]
        %v1582 = vld [vmem:[#allocation10 + $0x17f8] sm:$0xff]
        %v1583 = vld [vmem:[#allocation11] sm:$0xf]
        %v1585 = vlaneseq
        %v1586 = vshrl.u32 %v1585, 7
        %v1587 = vsub.s32 0, %v1586
        %v1588 = vrot.slane %v1583, %v1587
        %v1589 = vlaneseq
        %v1590 = vshrl.u32 %v1589, 7
        %v1591 = vsub.s32 1, %v1590
        %v1592 = vrot.slane %v1583, %v1591
        %v1593 = vlaneseq
        %v1594 = vshrl.u32 %v1593, 7
        %v1595 = vsub.s32 2, %v1594
        %v1596 = vrot.slane %v1583, %v1595
        %v1597 = vlaneseq
        %v1598 = vshrl.u32 %v1597, 7
        %v1599 = vsub.s32 3, %v1598
        %v1600 = vrot.slane %v1583, %v1599
        %1605 = vmatprep.subr.mxu0 %v816
        %1606 = vmatpush1.msra.mxu0 %v815
        %1607 = vmatprep.subr.mxu0 %v820
        %1608 = vmatpush1.msra.mxu0 %v819
        %1609 = vmatprep.subr.mxu0 %v824
        %1610 = vmatpush1.msra.mxu0 %v823
        %1611 = vmatprep.subr.mxu0 %v828
        %1612 = vmatpush1.msra.mxu0 %v827
        %1613 = vmatprep.subr.mxu0 %v832
        %1614 = vmatpush1.msra.mxu0 %v831
        %1615 = vmatprep.subr.mxu0 %v836
        %1616 = vmatpush1.msra.mxu0 %v835
        %1617 = vmatprep.subr.mxu0 %v840
        %1618 = vmatpush1.msra.mxu0 %v839
        %1619 = vmatprep.subr.mxu0 %v844
        %1620 = vmatpush1.msra.mxu0 %v843
        %1621 = vmatprep.subr.mxu0 %v848
        %1622 = vmatpush1.msra.mxu0 %v847
        %1623 = vmatprep.subr.mxu0 %v852
        %1624 = vmatpush1.msra.mxu0 %v851
        %1625 = vmatprep.subr.mxu0 %v856
        %1626 = vmatpush1.msra.mxu0 %v855
        %1627 = vmatprep.subr.mxu0 %v860
        %1628 = vmatpush1.msra.mxu0 %v859
        %1629 = vmatprep.subr.mxu0 %v864
        %1630 = vmatpush1.msra.mxu0 %v863
        %1631 = vmatprep.subr.mxu0 %v868
        %1632 = vmatpush1.msra.mxu0 %v867
        %1633 = vmatprep.subr.mxu0 %v872
        %1634 = vmatpush1.msra.mxu0 %v871
        %1635 = vmatprep.subr.mxu0 %v876
        %1636 = vmatpush1.msra.mxu0 %v875
        %1637 = vmatprep.subr.mxu0 %v880
        %1638 = vmatpush1.msra.mxu0 %v879
        %1639 = vmatprep.subr.mxu0 %v884
        %1640 = vmatpush1.msra.mxu0 %v883
        %1641 = vmatprep.subr.mxu0 %v888
        %1642 = vmatpush1.msra.mxu0 %v887
        %1643 = vmatprep.subr.mxu0 %v892
        %1644 = vmatpush1.msra.mxu0 %v891
        %1645 = vmatprep.subr.mxu0 %v896
        %1646 = vmatpush1.msra.mxu0 %v895
        %1647 = vmatprep.subr.mxu0 %v900
        %1648 = vmatpush1.msra.mxu0 %v899
        %1649 = vmatprep.subr.mxu0 %v904
        %1650 = vmatpush1.msra.mxu0 %v903
        %1651 = vmatprep.subr.mxu0 %v908
        %1652 = vmatpush1.msra.mxu0 %v907
        %1653 = vmatprep.subr.mxu0 %v912
        %1654 = vmatpush1.msra.mxu0 %v911
        %1655 = vmatprep.subr.mxu0 %v916
        %1656 = vmatpush1.msra.mxu0 %v915
        %1657 = vmatprep.subr.mxu0 %v920
        %1658 = vmatpush1.msra.mxu0 %v919
        %1659 = vmatprep.subr.mxu0 %v924
        %1660 = vmatpush1.msra.mxu0 %v923
        %1661 = vmatprep.subr.mxu0 %v928
        %1662 = vmatpush1.msra.mxu0 %v927
        %1663 = vmatprep.subr.mxu0 %v932
        %1664 = vmatpush1.msra.mxu0 %v931
        %1665 = vmatprep.subr.mxu0 %v936
        %1666 = vmatpush1.msra.mxu0 %v935
        %1667 = vmatprep.subr.mxu0 %v940
        %1668 = vmatpush1.msra.mxu0 %v939
        %1669 = vmatprep.mubr.f32.mxu0 %v792
        %1670 = vmatmul.mubr.f32.gmra.mrb[0].mxu0 %v791
        %v1671 = vpop.f32.mrb[0].mxu0
        %v1672 = vadd.f32 %v1588, %v1671
        %v1673 = vpop.f32.mrb[0].mxu0
        %v1674 = vadd.f32 %v1592, %v1673
        %1675 = vmatprep.mubr.f32.mxu0 %v804
        %1676 = vmatmul.mubr.f32.gmra.mrb[0].mxu0 %v803
        %v1677 = vpop.f32.mrb[0].mxu0
        %v1678 = vadd.f32 %v1588, %v1677
        %v1679 = vpop.f32.mrb[0].mxu0
        %v1680 = vadd.f32 %v1592, %v1679
        %1681 = vdwg.mxu0
        %1682 = vmatprep.subr.mxu0 %v944
        %1683 = vmatpush1.msra.mxu0 %v943
        %1684 = vmatprep.subr.mxu0 %v948
        %1685 = vmatpush1.msra.mxu0 %v947
        %1686 = vmatprep.subr.mxu0 %v952
        %1687 = vmatpush1.msra.mxu0 %v951
        %1688 = vmatprep.subr.mxu0 %v956
        %1689 = vmatpush1.msra.mxu0 %v955
        %1690 = vmatprep.subr.mxu0 %v960
        %1691 = vmatpush1.msra.mxu0 %v959
        %1692 = vmatprep.subr.mxu0 %v964
        %1693 = vmatpush1.msra.mxu0 %v963
        %1694 = vmatprep.subr.mxu0 %v968
        %1695 = vmatpush1.msra.mxu0 %v967
        %1696 = vmatprep.subr.mxu0 %v972
        %1697 = vmatpush1.msra.mxu0 %v971
        %1698 = vmatprep.subr.mxu0 %v976
        %1699 = vmatpush1.msra.mxu0 %v975
        %1700 = vmatprep.subr.mxu0 %v980
        %1701 = vmatpush1.msra.mxu0 %v979
        %1702 = vmatprep.subr.mxu0 %v984
        %1703 = vmatpush1.msra.mxu0 %v983
        %1704 = vmatprep.subr.mxu0 %v988
        %1705 = vmatpush1.msra.mxu0 %v987
        %1706 = vmatprep.subr.mxu0 %v992
        %1707 = vmatpush1.msra.mxu0 %v991
        %1708 = vmatprep.subr.mxu0 %v996
        %1709 = vmatpush1.msra.mxu0 %v995
        %1710 = vmatprep.subr.mxu0 %v1000
        %1711 = vmatpush1.msra.mxu0 %v999
        %1712 = vmatprep.subr.mxu0 %v1004
        %1713 = vmatpush1.msra.mxu0 %v1003
        %1714 = vmatprep.subr.mxu0 %v1008
        %1715 = vmatpush1.msra.mxu0 %v1007
        %1716 = vmatprep.subr.mxu0 %v1012
        %1717 = vmatpush1.msra.mxu0 %v1011
        %1718 = vmatprep.subr.mxu0 %v1016
        %1719 = vmatpush1.msra.mxu0 %v1015
        %1720 = vmatprep.subr.mxu0 %v1020
        %1721 = vmatpush1.msra.mxu0 %v1019
        %1722 = vmatprep.subr.mxu0 %v1024
        %1723 = vmatpush1.msra.mxu0 %v1023
        %1724 = vmatprep.subr.mxu0 %v1028
        %1725 = vmatpush1.msra.mxu0 %v1027
        %1726 = vmatprep.subr.mxu0 %v1032
        %1727 = vmatpush1.msra.mxu0 %v1031
        %1728 = vmatprep.subr.mxu0 %v1036
        %1729 = vmatpush1.msra.mxu0 %v1035
        %1730 = vmatprep.subr.mxu0 %v1040
        %1731 = vmatpush1.msra.mxu0 %v1039
        %1732 = vmatprep.subr.mxu0 %v1044
        %1733 = vmatpush1.msra.mxu0 %v1043
        %1734 = vmatprep.subr.mxu0 %v1048
        %1735 = vmatpush1.msra.mxu0 %v1047
        %1736 = vmatprep.subr.mxu0 %v1052
        %1737 = vmatpush1.msra.mxu0 %v1051
        %1738 = vmatprep.subr.mxu0 %v1056
        %1739 = vmatpush1.msra.mxu0 %v1055
        %1740 = vmatprep.subr.mxu0 %v1060
        %1741 = vmatpush1.msra.mxu0 %v1059
        %1742 = vmatprep.subr.mxu0 %v1064
        %1743 = vmatpush1.msra.mxu0 %v1063
        %1744 = vmatprep.subr.mxu0 %v1068
        %1745 = vmatpush1.msra.mxu0 %v1067
        %1746 = vmatprep.mubr.f32.mxu0 %v794
        %1747 = vmatmul.mubr.f32.gmra.mrb[0].mxu0 %v793
        %v1748 = vpop.f32.mrb[0].mxu0
        %v1749 = vadd.f32 %v1672, %v1748
        %v1750 = vpop.f32.mrb[0].mxu0
        %v1751 = vadd.f32 %v1674, %v1750
        %1752 = vmatprep.mubr.f32.mxu0 %v806
        %1753 = vmatmul.mubr.f32.gmra.mrb[0].mxu0 %v805
        %v1754 = vpop.f32.mrb[0].mxu0
        %v1755 = vadd.f32 %v1678, %v1754
        %v1756 = vpop.f32.mrb[0].mxu0
        %v1757 = vadd.f32 %v1680, %v1756
        %1758 = vdwg.mxu0
        %1759 = vmatprep.subr.mxu0 %v1072
        %1760 = vmatpush1.msra.mxu0 %v1071
        %1761 = vmatprep.subr.mxu0 %v1076
        %1762 = vmatpush1.msra.mxu0 %v1075
        %1763 = vmatprep.subr.mxu0 %v1080
        %1764 = vmatpush1.msra.mxu0 %v1079
        %1765 = vmatprep.subr.mxu0 %v1084
        %1766 = vmatpush1.msra.mxu0 %v1083
        %1767 = vmatprep.subr.mxu0 %v1088
        %1768 = vmatpush1.msra.mxu0 %v1087
        %1769 = vmatprep.subr.mxu0 %v1092
        %1770 = vmatpush1.msra.mxu0 %v1091
        %1771 = vmatprep.subr.mxu0 %v1096
        %1772 = vmatpush1.msra.mxu0 %v1095
        %1773 = vmatprep.subr.mxu0 %v1100
        %1774 = vmatpush1.msra.mxu0 %v1099
        %1775 = vmatprep.subr.mxu0 %v1104
        %1776 = vmatpush1.msra.mxu0 %v1103
        %1777 = vmatprep.subr.mxu0 %v1108
        %1778 = vmatpush1.msra.mxu0 %v1107
        %1779 = vmatprep.subr.mxu0 %v1112
        %1780 = vmatpush1.msra.mxu0 %v1111
        %1781 = vmatprep.subr.mxu0 %v1116
        %1782 = vmatpush1.msra.mxu0 %v1115
        %1783 = vmatprep.subr.mxu0 %v1120
        %1784 = vmatpush1.msra.mxu0 %v1119
        %1785 = vmatprep.subr.mxu0 %v1124
        %1786 = vmatpush1.msra.mxu0 %v1123
        %1787 = vmatprep.subr.mxu0 %v1128
        %1788 = vmatpush1.msra.mxu0 %v1127
        %1789 = vmatprep.subr.mxu0 %v1132
        %1790 = vmatpush1.msra.mxu0 %v1131
        %1791 = vmatprep.subr.mxu0 %v1136
        %1792 = vmatpush1.msra.mxu0 %v1135
        %1793 = vmatprep.subr.mxu0 %v1140
        %1794 = vmatpush1.msra.mxu0 %v1139
        %1795 = vmatprep.subr.mxu0 %v1144
        %1796 = vmatpush1.msra.mxu0 %v1143
        %1797 = vmatprep.subr.mxu0 %v1148
        %1798 = vmatpush1.msra.mxu0 %v1147
        %1799 = vmatprep.subr.mxu0 %v1152
        %1800 = vmatpush1.msra.mxu0 %v1151
        %1801 = vmatprep.subr.mxu0 %v1156
        %1802 = vmatpush1.msra.mxu0 %v1155
        %1803 = vmatprep.subr.mxu0 %v1160
        %1804 = vmatpush1.msra.mxu0 %v1159
        %1805 = vmatprep.subr.mxu0 %v1164
        %1806 = vmatpush1.msra.mxu0 %v1163
        %1807 = vmatprep.subr.mxu0 %v1168
        %1808 = vmatpush1.msra.mxu0 %v1167
        %1809 = vmatprep.subr.mxu0 %v1172
        %1810 = vmatpush1.msra.mxu0 %v1171
        %1811 = vmatprep.subr.mxu0 %v1176
        %1812 = vmatpush1.msra.mxu0 %v1175
        %1813 = vmatprep.subr.mxu0 %v1180
        %1814 = vmatpush1.msra.mxu0 %v1179
        %1815 = vmatprep.subr.mxu0 %v1184
        %1816 = vmatpush1.msra.mxu0 %v1183
        %1817 = vmatprep.subr.mxu0 %v1188
        %1818 = vmatpush1.msra.mxu0 %v1187
        %1819 = vmatprep.subr.mxu0 %v1192
        %1820 = vmatpush1.msra.mxu0 %v1191
        %1821 = vmatprep.subr.mxu0 %v1196
        %1822 = vmatpush1.msra.mxu0 %v1195
        %1823 = vmatprep.mubr.f32.mxu0 %v796
        %1824 = vmatmul.mubr.f32.gmra.mrb[0].mxu0 %v795
        %v1825 = vpop.f32.mrb[0].mxu0
        %v1826 = vadd.f32 %v1749, %v1825
        %v1827 = vpop.f32.mrb[0].mxu0
        %v1828 = vadd.f32 %v1751, %v1827
        %1829 = vmatprep.mubr.f32.mxu0 %v808
        %1830 = vmatmul.mubr.f32.gmra.mrb[0].mxu0 %v807
        %v1831 = vpop.f32.mrb[0].mxu0
        %v1832 = vadd.f32 %v1755, %v1831
        %v1833 = vpop.f32.mrb[0].mxu0
        %v1834 = vadd.f32 %v1757, %v1833
        %1835 = vdwg.mxu0
        %1836 = vmatprep.subr.mxu0 %v1200
        %1837 = vmatpush1.msra.mxu0 %v1199
        %1838 = vmatprep.subr.mxu0 %v1204
        %1839 = vmatpush1.msra.mxu0 %v1203
        %1840 = vmatprep.subr.mxu0 %v1208
        %1841 = vmatpush1.msra.mxu0 %v1207
        %1842 = vmatprep.subr.mxu0 %v1212
        %1843 = vmatpush1.msra.mxu0 %v1211
        %1844 = vmatprep.subr.mxu0 %v1216
        %1845 = vmatpush1.msra.mxu0 %v1215
        %1846 = vmatprep.subr.mxu0 %v1220
        %1847 = vmatpush1.msra.mxu0 %v1219
        %1848 = vmatprep.subr.mxu0 %v1224
        %1849 = vmatpush1.msra.mxu0 %v1223
        %1850 = vmatprep.subr.mxu0 %v1228
        %1851 = vmatpush1.msra.mxu0 %v1227
        %1852 = vmatprep.subr.mxu0 %v1232
        %1853 = vmatpush1.msra.mxu0 %v1231
        %1854 = vmatprep.subr.mxu0 %v1236
        %1855 = vmatpush1.msra.mxu0 %v1235
        %1856 = vmatprep.subr.mxu0 %v1240
        %1857 = vmatpush1.msra.mxu0 %v1239
        %1858 = vmatprep.subr.mxu0 %v1244
        %1859 = vmatpush1.msra.mxu0 %v1243
        %1860 = vmatprep.subr.mxu0 %v1248
        %1861 = vmatpush1.msra.mxu0 %v1247
        %1862 = vmatprep.subr.mxu0 %v1252
        %1863 = vmatpush1.msra.mxu0 %v1251
        %1864 = vmatprep.subr.mxu0 %v1256
        %1865 = vmatpush1.msra.mxu0 %v1255
        %1866 = vmatprep.subr.mxu0 %v1260
        %1867 = vmatpush1.msra.mxu0 %v1259
        %1868 = vmatprep.subr.mxu0 %v1264
        %1869 = vmatpush1.msra.mxu0 %v1263
        %1870 = vmatprep.subr.mxu0 %v1268
        %1871 = vmatpush1.msra.mxu0 %v1267
        %1872 = vmatprep.subr.mxu0 %v1272
        %1873 = vmatpush1.msra.mxu0 %v1271
        %1874 = vmatprep.subr.mxu0 %v1276
        %1875 = vmatpush1.msra.mxu0 %v1275
        %1876 = vmatprep.subr.mxu0 %v1280
        %1877 = vmatpush1.msra.mxu0 %v1279
        %1878 = vmatprep.subr.mxu0 %v1284
        %1879 = vmatpush1.msra.mxu0 %v1283
        %1880 = vmatprep.subr.mxu0 %v1288
        %1881 = vmatpush1.msra.mxu0 %v1287
        %1882 = vmatprep.subr.mxu0 %v1292
        %1883 = vmatpush1.msra.mxu0 %v1291
        %1884 = vmatprep.subr.mxu0 %v1296
        %1885 = vmatpush1.msra.mxu0 %v1295
        %1886 = vmatprep.subr.mxu0 %v1300
        %1887 = vmatpush1.msra.mxu0 %v1299
        %1888 = vmatprep.subr.mxu0 %v1304
        %1889 = vmatpush1.msra.mxu0 %v1303
        %1890 = vmatprep.subr.mxu0 %v1308
        %1891 = vmatpush1.msra.mxu0 %v1307
        %1892 = vmatprep.subr.mxu0 %v1312
        %1893 = vmatpush1.msra.mxu0 %v1311
        %1894 = vmatprep.subr.mxu0 %v1316
        %1895 = vmatpush1.msra.mxu0 %v1315
        %1896 = vmatprep.subr.mxu0 %v1320
        %1897 = vmatpush1.msra.mxu0 %v1319
        %1898 = vmatprep.subr.mxu0 %v1324
        %1899 = vmatpush1.msra.mxu0 %v1323
        %1900 = vmatprep.mubr.f32.mxu0 %v798
        %1901 = vmatmul.mubr.f32.gmra.mrb[0].mxu0 %v797
        %v1902 = vpop.f32.mrb[0].mxu0
        %v1903 = vadd.f32 %v1826, %v1902
        %v1904 = vpop.f32.mrb[0].mxu0
        %v1905 = vadd.f32 %v1828, %v1904
        %1906 = vmatprep.mubr.f32.mxu0 %v810
        %1907 = vmatmul.mubr.f32.gmra.mrb[0].mxu0 %v809
        %v1908 = vpop.f32.mrb[0].mxu0
        %v1909 = vadd.f32 %v1832, %v1908
        %v1910 = vpop.f32.mrb[0].mxu0
        %v1911 = vadd.f32 %v1834, %v1910
        %1912 = vdwg.mxu0
        %1913 = vmatprep.subr.mxu0 %v1328
        %1914 = vmatpush1.msra.mxu0 %v1327
        %1915 = vmatprep.subr.mxu0 %v1332
        %1916 = vmatpush1.msra.mxu0 %v1331
        %1917 = vmatprep.subr.mxu0 %v1336
        %1918 = vmatpush1.msra.mxu0 %v1335
        %1919 = vmatprep.subr.mxu0 %v1340
        %1920 = vmatpush1.msra.mxu0 %v1339
        %1921 = vmatprep.subr.mxu0 %v1344
        %1922 = vmatpush1.msra.mxu0 %v1343
        %1923 = vmatprep.subr.mxu0 %v1348
        %1924 = vmatpush1.msra.mxu0 %v1347
        %1925 = vmatprep.subr.mxu0 %v1352
        %1926 = vmatpush1.msra.mxu0 %v1351
        %1927 = vmatprep.subr.mxu0 %v1356
        %1928 = vmatpush1.msra.mxu0 %v1355
        %1929 = vmatprep.subr.mxu0 %v1360
        %1930 = vmatpush1.msra.mxu0 %v1359
        %1931 = vmatprep.subr.mxu0 %v1364
        %1932 = vmatpush1.msra.mxu0 %v1363
        %1933 = vmatprep.subr.mxu0 %v1368
        %1934 = vmatpush1.msra.mxu0 %v1367
        %1935 = vmatprep.subr.mxu0 %v1372
        %1936 = vmatpush1.msra.mxu0 %v1371
        %1937 = vmatprep.subr.mxu0 %v1376
        %1938 = vmatpush1.msra.mxu0 %v1375
        %1939 = vmatprep.subr.mxu0 %v1380
        %1940 = vmatpush1.msra.mxu0 %v1379
        %1941 = vmatprep.subr.mxu0 %v1384
        %1942 = vmatpush1.msra.mxu0 %v1383
        %1943 = vmatprep.subr.mxu0 %v1388
        %1944 = vmatpush1.msra.mxu0 %v1387
        %1945 = vmatprep.subr.mxu0 %v1392
        %1946 = vmatpush1.msra.mxu0 %v1391
        %1947 = vmatprep.subr.mxu0 %v1396
        %1948 = vmatpush1.msra.mxu0 %v1395
        %1949 = vmatprep.subr.mxu0 %v1400
        %1950 = vmatpush1.msra.mxu0 %v1399
        %1951 = vmatprep.subr.mxu0 %v1404
        %1952 = vmatpush1.msra.mxu0 %v1403
        %1953 = vmatprep.subr.mxu0 %v1408
        %1954 = vmatpush1.msra.mxu0 %v1407
        %1955 = vmatprep.subr.mxu0 %v1412
        %1956 = vmatpush1.msra.mxu0 %v1411
        %1957 = vmatprep.subr.mxu0 %v1416
        %1958 = vmatpush1.msra.mxu0 %v1415
        %1959 = vmatprep.subr.mxu0 %v1420
        %1960 = vmatpush1.msra.mxu0 %v1419
        %1961 = vmatprep.subr.mxu0 %v1424
        %1962 = vmatpush1.msra.mxu0 %v1423
        %1963 = vmatprep.subr.mxu0 %v1428
        %1964 = vmatpush1.msra.mxu0 %v1427
        %1965 = vmatprep.subr.mxu0 %v1432
        %1966 = vmatpush1.msra.mxu0 %v1431
        %1967 = vmatprep.subr.mxu0 %v1436
        %1968 = vmatpush1.msra.mxu0 %v1435
        %1969 = vmatprep.subr.mxu0 %v1440
        %1970 = vmatpush1.msra.mxu0 %v1439
        %1971 = vmatprep.subr.mxu0 %v1444
        %1972 = vmatpush1.msra.mxu0 %v1443
        %1973 = vmatprep.subr.mxu0 %v1448
        %1974 = vmatpush1.msra.mxu0 %v1447
        %1975 = vmatprep.subr.mxu0 %v1452
        %1976 = vmatpush1.msra.mxu0 %v1451
        %1977 = vmatprep.mubr.f32.mxu0 %v800
        %1978 = vmatmul.mubr.f32.gmra.mrb[0].mxu0 %v799
        %v1979 = vpop.f32.mrb[0].mxu0
        %v1980 = vadd.f32 %v1903, %v1979
        %v1981 = vpop.f32.mrb[0].mxu0
        %v1982 = vadd.f32 %v1905, %v1981
        %1983 = vmatprep.mubr.f32.mxu0 %v812
        %1984 = vmatmul.mubr.f32.gmra.mrb[0].mxu0 %v811
        %v1985 = vpop.f32.mrb[0].mxu0
        %v1986 = vadd.f32 %v1909, %v1985
        %v1987 = vpop.f32.mrb[0].mxu0
        %v1988 = vadd.f32 %v1911, %v1987
        %1989 = vdwg.mxu0
        %1990 = vmatprep.subr.mxu0 %v1456
        %1991 = vmatpush1.msra.mxu0 %v1455
        %1992 = vmatprep.subr.mxu0 %v1460
        %1993 = vmatpush1.msra.mxu0 %v1459
        %1994 = vmatprep.subr.mxu0 %v1464
        %1995 = vmatpush1.msra.mxu0 %v1463
        %1996 = vmatprep.subr.mxu0 %v1468
        %1997 = vmatpush1.msra.mxu0 %v1467
        %1998 = vmatprep.subr.mxu0 %v1472
        %1999 = vmatpush1.msra.mxu0 %v1471
        %2000 = vmatprep.subr.mxu0 %v1476
        %2001 = vmatpush1.msra.mxu0 %v1475
        %2002 = vmatprep.subr.mxu0 %v1480
        %2003 = vmatpush1.msra.mxu0 %v1479
        %2004 = vmatprep.subr.mxu0 %v1484
        %2005 = vmatpush1.msra.mxu0 %v1483
        %2006 = vmatprep.subr.mxu0 %v1488
        %2007 = vmatpush1.msra.mxu0 %v1487
        %2008 = vmatprep.subr.mxu0 %v1492
        %2009 = vmatpush1.msra.mxu0 %v1491
        %2010 = vmatprep.subr.mxu0 %v1496
        %2011 = vmatpush1.msra.mxu0 %v1495
        %2012 = vmatprep.subr.mxu0 %v1500
        %2013 = vmatpush1.msra.mxu0 %v1499
        %2014 = vmatprep.subr.mxu0 %v1504
        %2015 = vmatpush1.msra.mxu0 %v1503
        %2016 = vmatprep.subr.mxu0 %v1508
        %2017 = vmatpush1.msra.mxu0 %v1507
        %2018 = vmatprep.subr.mxu0 %v1512
        %2019 = vmatpush1.msra.mxu0 %v1511
        %2020 = vmatprep.subr.mxu0 %v1516
        %2021 = vmatpush1.msra.mxu0 %v1515
        %2022 = vmatprep.subr.mxu0 %v1520
        %2023 = vmatpush1.msra.mxu0 %v1519
        %2024 = vmatprep.subr.mxu0 %v1524
        %2025 = vmatpush1.msra.mxu0 %v1523
        %2026 = vmatprep.subr.mxu0 %v1528
        %2027 = vmatpush1.msra.mxu0 %v1527
        %2028 = vmatprep.subr.mxu0 %v1532
        %2029 = vmatpush1.msra.mxu0 %v1531
        %2030 = vmatprep.subr.mxu0 %v1536
        %2031 = vmatpush1.msra.mxu0 %v1535
        %2032 = vmatprep.subr.mxu0 %v1540
        %2033 = vmatpush1.msra.mxu0 %v1539
        %2034 = vmatprep.subr.mxu0 %v1544
        %2035 = vmatpush1.msra.mxu0 %v1543
        %2036 = vmatprep.subr.mxu0 %v1548
        %2037 = vmatpush1.msra.mxu0 %v1547
        %2038 = vmatprep.subr.mxu0 %v1552
        %2039 = vmatpush1.msra.mxu0 %v1551
        %2040 = vmatprep.subr.mxu0 %v1556
        %2041 = vmatpush1.msra.mxu0 %v1555
        %2042 = vmatprep.subr.mxu0 %v1560
        %2043 = vmatpush1.msra.mxu0 %v1559
        %2044 = vmatprep.subr.mxu0 %v1564
        %2045 = vmatpush1.msra.mxu0 %v1563
        %2046 = vmatprep.subr.mxu0 %v1568
        %2047 = vmatpush1.msra.mxu0 %v1567
        %2048 = vmatprep.subr.mxu0 %v1572
        %2049 = vmatpush1.msra.mxu0 %v1571
        %2050 = vmatprep.subr.mxu0 %v1576
        %2051 = vmatpush1.msra.mxu0 %v1575
        %2052 = vmatprep.subr.mxu0 %v1580
        %2053 = vmatpush1.msra.mxu0 %v1579
        %2054 = vmatprep.mubr.f32.mxu0 %v802
        %2055 = vmatmul.mubr.f32.gmra.mrb[0].mxu0 %v801
        %v2056 = vpop.f32.mrb[0].mxu0
        %v2057 = vadd.f32 %v1980, %v2056
        %v2058 = vpop.f32.mrb[0].mxu0
        %v2059 = vadd.f32 %v1982, %v2058
        %2060 = vmatprep.mubr.f32.mxu0 %v814
        %2061 = vmatmul.mubr.f32.gmra.mrb[0].mxu0 %v813
        %v2062 = vpop.f32.mrb[0].mxu0
        %v2063 = vadd.f32 %v1986, %v2062
        %v2064 = vpop.f32.mrb[0].mxu0
        %v2065 = vadd.f32 %v1988, %v2064
        %2066 = vdwg.mxu0
        %2067 = vmatprep.subr.mxu0 %v818
        %2068 = vmatpush1.msra.mxu0 %v817
        %2069 = vmatprep.subr.mxu0 %v822
        %2070 = vmatpush1.msra.mxu0 %v821
        %2071 = vmatprep.subr.mxu0 %v826
        %2072 = vmatpush1.msra.mxu0 %v825
        %2073 = vmatprep.subr.mxu0 %v830
        %2074 = vmatpush1.msra.mxu0 %v829
        %2075 = vmatprep.subr.mxu0 %v834
        %2076 = vmatpush1.msra.mxu0 %v833
        %2077 = vmatprep.subr.mxu0 %v838
        %2078 = vmatpush1.msra.mxu0 %v837
        %2079 = vmatprep.subr.mxu0 %v842
        %2080 = vmatpush1.msra.mxu0 %v841
        %2081 = vmatprep.subr.mxu0 %v846
        %2082 = vmatpush1.msra.mxu0 %v845
        %2083 = vmatprep.subr.mxu0 %v850
        %2084 = vmatpush1.msra.mxu0 %v849
        %2085 = vmatprep.subr.mxu0 %v854
        %2086 = vmatpush1.msra.mxu0 %v853
        %2087 = vmatprep.subr.mxu0 %v858
        %2088 = vmatpush1.msra.mxu0 %v857
        %2089 = vmatprep.subr.mxu0 %v862
        %2090 = vmatpush1.msra.mxu0 %v861
        %2091 = vmatprep.subr.mxu0 %v866
        %2092 = vmatpush1.msra.mxu0 %v865
        %2093 = vmatprep.subr.mxu0 %v870
        %2094 = vmatpush1.msra.mxu0 %v869
        %2095 = vmatprep.subr.mxu0 %v874
        %2096 = vmatpush1.msra.mxu0 %v873
        %2097 = vmatprep.subr.mxu0 %v878
        %2098 = vmatpush1.msra.mxu0 %v877
        %2099 = vmatprep.subr.mxu0 %v882
        %2100 = vmatpush1.msra.mxu0 %v881
        %2101 = vmatprep.subr.mxu0 %v886
        %2102 = vmatpush1.msra.mxu0 %v885
        %2103 = vmatprep.subr.mxu0 %v890
        %2104 = vmatpush1.msra.mxu0 %v889
        %2105 = vmatprep.subr.mxu0 %v894
        %2106 = vmatpush1.msra.mxu0 %v893
        %2107 = vmatprep.subr.mxu0 %v898
        %2108 = vmatpush1.msra.mxu0 %v897
        %2109 = vmatprep.subr.mxu0 %v902
        %2110 = vmatpush1.msra.mxu0 %v901
        %2111 = vmatprep.subr.mxu0 %v906
        %2112 = vmatpush1.msra.mxu0 %v905
        %2113 = vmatprep.subr.mxu0 %v910
        %2114 = vmatpush1.msra.mxu0 %v909
        %2115 = vmatprep.subr.mxu0 %v914
        %2116 = vmatpush1.msra.mxu0 %v913
        %2117 = vmatprep.subr.mxu0 %v918
        %2118 = vmatpush1.msra.mxu0 %v917
        %2119 = vmatprep.subr.mxu0 %v922
        %2120 = vmatpush1.msra.mxu0 %v921
        %2121 = vmatprep.subr.mxu0 %v926
        %2122 = vmatpush1.msra.mxu0 %v925
        %2123 = vmatprep.subr.mxu0 %v930
        %2124 = vmatpush1.msra.mxu0 %v929
        %2125 = vmatprep.subr.mxu0 %v934
        %2126 = vmatpush1.msra.mxu0 %v933
        %2127 = vmatprep.subr.mxu0 %v938
        %2128 = vmatpush1.msra.mxu0 %v937
        %2129 = vmatprep.subr.mxu0 %v942
        %2130 = vmatpush1.msra.mxu0 %v941
        %2131 = vmatprep.mubr.f32.mxu0 %v792
        %2132 = vmatmul.mubr.f32.gmra.mrb[0].mxu0 %v791
        %v2133 = vpop.f32.mrb[0].mxu0
        %v2134 = vadd.f32 %v1596, %v2133
        %v2135 = vpop.f32.mrb[0].mxu0
        %v2136 = vadd.f32 %v1600, %v2135
        %2137 = vmatprep.mubr.f32.mxu0 %v804
        %2138 = vmatmul.mubr.f32.gmra.mrb[0].mxu0 %v803
        %v2139 = vpop.f32.mrb[0].mxu0
        %v2140 = vadd.f32 %v1596, %v2139
        %v2141 = vpop.f32.mrb[0].mxu0
        %v2142 = vadd.f32 %v1600, %v2141
        %2143 = vdwg.mxu0
        %2144 = vmatprep.subr.mxu0 %v946
        %2145 = vmatpush1.msra.mxu0 %v945
        %2146 = vmatprep.subr.mxu0 %v950
        %2147 = vmatpush1.msra.mxu0 %v949
        %2148 = vmatprep.subr.mxu0 %v954
        %2149 = vmatpush1.msra.mxu0 %v953
        %2150 = vmatprep.subr.mxu0 %v958
        %2151 = vmatpush1.msra.mxu0 %v957
        %2152 = vmatprep.subr.mxu0 %v962
        %2153 = vmatpush1.msra.mxu0 %v961
        %2154 = vmatprep.subr.mxu0 %v966
        %2155 = vmatpush1.msra.mxu0 %v965
        %2156 = vmatprep.subr.mxu0 %v970
        %2157 = vmatpush1.msra.mxu0 %v969
        %2158 = vmatprep.subr.mxu0 %v974
        %2159 = vmatpush1.msra.mxu0 %v973
        %2160 = vmatprep.subr.mxu0 %v978
        %2161 = vmatpush1.msra.mxu0 %v977
        %2162 = vmatprep.subr.mxu0 %v982
        %2163 = vmatpush1.msra.mxu0 %v981
        %2164 = vmatprep.subr.mxu0 %v986
        %2165 = vmatpush1.msra.mxu0 %v985
        %2166 = vmatprep.subr.mxu0 %v990
        %2167 = vmatpush1.msra.mxu0 %v989
        %2168 = vmatprep.subr.mxu0 %v994
        %2169 = vmatpush1.msra.mxu0 %v993
        %2170 = vmatprep.subr.mxu0 %v998
        %2171 = vmatpush1.msra.mxu0 %v997
        %2172 = vmatprep.subr.mxu0 %v1002
        %2173 = vmatpush1.msra.mxu0 %v1001
        %2174 = vmatprep.subr.mxu0 %v1006
        %2175 = vmatpush1.msra.mxu0 %v1005
        %2176 = vmatprep.subr.mxu0 %v1010
        %2177 = vmatpush1.msra.mxu0 %v1009
        %2178 = vmatprep.subr.mxu0 %v1014
        %2179 = vmatpush1.msra.mxu0 %v1013
        %2180 = vmatprep.subr.mxu0 %v1018
        %2181 = vmatpush1.msra.mxu0 %v1017
        %2182 = vmatprep.subr.mxu0 %v1022
        %2183 = vmatpush1.msra.mxu0 %v1021
        %2184 = vmatprep.subr.mxu0 %v1026
        %2185 = vmatpush1.msra.mxu0 %v1025
        %2186 = vmatprep.subr.mxu0 %v1030
        %2187 = vmatpush1.msra.mxu0 %v1029
        %2188 = vmatprep.subr.mxu0 %v1034
        %2189 = vmatpush1.msra.mxu0 %v1033
        %2190 = vmatprep.subr.mxu0 %v1038
        %2191 = vmatpush1.msra.mxu0 %v1037
        %2192 = vmatprep.subr.mxu0 %v1042
        %2193 = vmatpush1.msra.mxu0 %v1041
        %2194 = vmatprep.subr.mxu0 %v1046
        %2195 = vmatpush1.msra.mxu0 %v1045
        %2196 = vmatprep.subr.mxu0 %v1050
        %2197 = vmatpush1.msra.mxu0 %v1049
        %2198 = vmatprep.subr.mxu0 %v1054
        %2199 = vmatpush1.msra.mxu0 %v1053
        %2200 = vmatprep.subr.mxu0 %v1058
        %2201 = vmatpush1.msra.mxu0 %v1057
        %2202 = vmatprep.subr.mxu0 %v1062
        %2203 = vmatpush1.msra.mxu0 %v1061
        %2204 = vmatprep.subr.mxu0 %v1066
        %2205 = vmatpush1.msra.mxu0 %v1065
        %2206 = vmatprep.subr.mxu0 %v1070
        %2207 = vmatpush1.msra.mxu0 %v1069
        %2208 = vmatprep.mubr.f32.mxu0 %v794
        %2209 = vmatmul.mubr.f32.gmra.mrb[0].mxu0 %v793
        %v2210 = vpop.f32.mrb[0].mxu0
        %v2211 = vadd.f32 %v2134, %v2210
        %v2212 = vpop.f32.mrb[0].mxu0
        %v2213 = vadd.f32 %v2136, %v2212
        %2214 = vmatprep.mubr.f32.mxu0 %v806
        %2215 = vmatmul.mubr.f32.gmra.mrb[0].mxu0 %v805
        %v2216 = vpop.f32.mrb[0].mxu0
        %v2217 = vadd.f32 %v2140, %v2216
        %v2218 = vpop.f32.mrb[0].mxu0
        %v2219 = vadd.f32 %v2142, %v2218
        %2220 = vdwg.mxu0
        %2221 = vmatprep.subr.mxu0 %v1074
        %2222 = vmatpush1.msra.mxu0 %v1073
        %2223 = vmatprep.subr.mxu0 %v1078
        %2224 = vmatpush1.msra.mxu0 %v1077
        %2225 = vmatprep.subr.mxu0 %v1082
        %2226 = vmatpush1.msra.mxu0 %v1081
        %2227 = vmatprep.subr.mxu0 %v1086
        %2228 = vmatpush1.msra.mxu0 %v1085
        %2229 = vmatprep.subr.mxu0 %v1090
        %2230 = vmatpush1.msra.mxu0 %v1089
        %2231 = vmatprep.subr.mxu0 %v1094
        %2232 = vmatpush1.msra.mxu0 %v1093
        %2233 = vmatprep.subr.mxu0 %v1098
        %2234 = vmatpush1.msra.mxu0 %v1097
        %2235 = vmatprep.subr.mxu0 %v1102
        %2236 = vmatpush1.msra.mxu0 %v1101
        %2237 = vmatprep.subr.mxu0 %v1106
        %2238 = vmatpush1.msra.mxu0 %v1105
        %2239 = vmatprep.subr.mxu0 %v1110
        %2240 = vmatpush1.msra.mxu0 %v1109
        %2241 = vmatprep.subr.mxu0 %v1114
        %2242 = vmatpush1.msra.mxu0 %v1113
        %2243 = vmatprep.subr.mxu0 %v1118
        %2244 = vmatpush1.msra.mxu0 %v1117
        %2245 = vmatprep.subr.mxu0 %v1122
        %2246 = vmatpush1.msra.mxu0 %v1121
        %2247 = vmatprep.subr.mxu0 %v1126
        %2248 = vmatpush1.msra.mxu0 %v1125
        %2249 = vmatprep.subr.mxu0 %v1130
        %2250 = vmatpush1.msra.mxu0 %v1129
        %2251 = vmatprep.subr.mxu0 %v1134
        %2252 = vmatpush1.msra.mxu0 %v1133
        %2253 = vmatprep.subr.mxu0 %v1138
        %2254 = vmatpush1.msra.mxu0 %v1137
        %2255 = vmatprep.subr.mxu0 %v1142
        %2256 = vmatpush1.msra.mxu0 %v1141
        %2257 = vmatprep.subr.mxu0 %v1146
        %2258 = vmatpush1.msra.mxu0 %v1145
        %2259 = vmatprep.subr.mxu0 %v1150
        %2260 = vmatpush1.msra.mxu0 %v1149
        %2261 = vmatprep.subr.mxu0 %v1154
        %2262 = vmatpush1.msra.mxu0 %v1153
        %2263 = vmatprep.subr.mxu0 %v1158
        %2264 = vmatpush1.msra.mxu0 %v1157
        %2265 = vmatprep.subr.mxu0 %v1162
        %2266 = vmatpush1.msra.mxu0 %v1161
        %2267 = vmatprep.subr.mxu0 %v1166
        %2268 = vmatpush1.msra.mxu0 %v1165
        %2269 = vmatprep.subr.mxu0 %v1170
        %2270 = vmatpush1.msra.mxu0 %v1169
        %2271 = vmatprep.subr.mxu0 %v1174
        %2272 = vmatpush1.msra.mxu0 %v1173
        %2273 = vmatprep.subr.mxu0 %v1178
        %2274 = vmatpush1.msra.mxu0 %v1177
        %2275 = vmatprep.subr.mxu0 %v1182
        %2276 = vmatpush1.msra.mxu0 %v1181
        %2277 = vmatprep.subr.mxu0 %v1186
        %2278 = vmatpush1.msra.mxu0 %v1185
        %2279 = vmatprep.subr.mxu0 %v1190
        %2280 = vmatpush1.msra.mxu0 %v1189
        %2281 = vmatprep.subr.mxu0 %v1194
        %2282 = vmatpush1.msra.mxu0 %v1193
        %2283 = vmatprep.subr.mxu0 %v1198
        %2284 = vmatpush1.msra.mxu0 %v1197
        %2285 = vmatprep.mubr.f32.mxu0 %v796
        %2286 = vmatmul.mubr.f32.gmra.mrb[0].mxu0 %v795
        %v2287 = vpop.f32.mrb[0].mxu0
        %v2288 = vadd.f32 %v2211, %v2287
        %v2289 = vpop.f32.mrb[0].mxu0
        %v2290 = vadd.f32 %v2213, %v2289
        %2291 = vmatprep.mubr.f32.mxu0 %v808
        %2292 = vmatmul.mubr.f32.gmra.mrb[0].mxu0 %v807
        %v2293 = vpop.f32.mrb[0].mxu0
        %v2294 = vadd.f32 %v2217, %v2293
        %v2295 = vpop.f32.mrb[0].mxu0
        %v2296 = vadd.f32 %v2219, %v2295
        %2297 = vdwg.mxu0
        %2298 = vmatprep.subr.mxu0 %v1202
        %2299 = vmatpush1.msra.mxu0 %v1201
        %2300 = vmatprep.subr.mxu0 %v1206
        %2301 = vmatpush1.msra.mxu0 %v1205
        %2302 = vmatprep.subr.mxu0 %v1210
        %2303 = vmatpush1.msra.mxu0 %v1209
        %2304 = vmatprep.subr.mxu0 %v1214
        %2305 = vmatpush1.msra.mxu0 %v1213
        %2306 = vmatprep.subr.mxu0 %v1218
        %2307 = vmatpush1.msra.mxu0 %v1217
        %2308 = vmatprep.subr.mxu0 %v1222
        %2309 = vmatpush1.msra.mxu0 %v1221
        %2310 = vmatprep.subr.mxu0 %v1226
        %2311 = vmatpush1.msra.mxu0 %v1225
        %2312 = vmatprep.subr.mxu0 %v1230
        %2313 = vmatpush1.msra.mxu0 %v1229
        %2314 = vmatprep.subr.mxu0 %v1234
        %2315 = vmatpush1.msra.mxu0 %v1233
        %2316 = vmatprep.subr.mxu0 %v1238
        %2317 = vmatpush1.msra.mxu0 %v1237
        %2318 = vmatprep.subr.mxu0 %v1242
        %2319 = vmatpush1.msra.mxu0 %v1241
        %2320 = vmatprep.subr.mxu0 %v1246
        %2321 = vmatpush1.msra.mxu0 %v1245
        %2322 = vmatprep.subr.mxu0 %v1250
        %2323 = vmatpush1.msra.mxu0 %v1249
        %2324 = vmatprep.subr.mxu0 %v1254
        %2325 = vmatpush1.msra.mxu0 %v1253
        %2326 = vmatprep.subr.mxu0 %v1258
        %2327 = vmatpush1.msra.mxu0 %v1257
        %2328 = vmatprep.subr.mxu0 %v1262
        %2329 = vmatpush1.msra.mxu0 %v1261
        %2330 = vmatprep.subr.mxu0 %v1266
        %2331 = vmatpush1.msra.mxu0 %v1265
        %2332 = vmatprep.subr.mxu0 %v1270
        %2333 = vmatpush1.msra.mxu0 %v1269
        %2334 = vmatprep.subr.mxu0 %v1274
        %2335 = vmatpush1.msra.mxu0 %v1273
        %2336 = vmatprep.subr.mxu0 %v1278
        %2337 = vmatpush1.msra.mxu0 %v1277
        %2338 = vmatprep.subr.mxu0 %v1282
        %2339 = vmatpush1.msra.mxu0 %v1281
        %2340 = vmatprep.subr.mxu0 %v1286
        %2341 = vmatpush1.msra.mxu0 %v1285
        %2342 = vmatprep.subr.mxu0 %v1290
        %2343 = vmatpush1.msra.mxu0 %v1289
        %2344 = vmatprep.subr.mxu0 %v1294
        %2345 = vmatpush1.msra.mxu0 %v1293
        %2346 = vmatprep.subr.mxu0 %v1298
        %2347 = vmatpush1.msra.mxu0 %v1297
        %2348 = vmatprep.subr.mxu0 %v1302
        %2349 = vmatpush1.msra.mxu0 %v1301
        %2350 = vmatprep.subr.mxu0 %v1306
        %2351 = vmatpush1.msra.mxu0 %v1305
        %2352 = vmatprep.subr.mxu0 %v1310
        %2353 = vmatpush1.msra.mxu0 %v1309
        %2354 = vmatprep.subr.mxu0 %v1314
        %2355 = vmatpush1.msra.mxu0 %v1313
        %2356 = vmatprep.subr.mxu0 %v1318
        %2357 = vmatpush1.msra.mxu0 %v1317
        %2358 = vmatprep.subr.mxu0 %v1322
        %2359 = vmatpush1.msra.mxu0 %v1321
        %2360 = vmatprep.subr.mxu0 %v1326
        %2361 = vmatpush1.msra.mxu0 %v1325
        %2362 = vmatprep.mubr.f32.mxu0 %v798
        %2363 = vmatmul.mubr.f32.gmra.mrb[0].mxu0 %v797
        %v2364 = vpop.f32.mrb[0].mxu0
        %v2365 = vadd.f32 %v2288, %v2364
        %v2366 = vpop.f32.mrb[0].mxu0
        %v2367 = vadd.f32 %v2290, %v2366
        %2368 = vmatprep.mubr.f32.mxu0 %v810
        %2369 = vmatmul.mubr.f32.gmra.mrb[0].mxu0 %v809
        %v2370 = vpop.f32.mrb[0].mxu0
        %v2371 = vadd.f32 %v2294, %v2370
        %v2372 = vpop.f32.mrb[0].mxu0
        %v2373 = vadd.f32 %v2296, %v2372
        %2374 = vdwg.mxu0
        %2375 = vmatprep.subr.mxu0 %v1330
        %2376 = vmatpush1.msra.mxu0 %v1329
        %2377 = vmatprep.subr.mxu0 %v1334
        %2378 = vmatpush1.msra.mxu0 %v1333
        %2379 = vmatprep.subr.mxu0 %v1338
        %2380 = vmatpush1.msra.mxu0 %v1337
        %2381 = vmatprep.subr.mxu0 %v1342
        %2382 = vmatpush1.msra.mxu0 %v1341
        %2383 = vmatprep.subr.mxu0 %v1346
        %2384 = vmatpush1.msra.mxu0 %v1345
        %2385 = vmatprep.subr.mxu0 %v1350
        %2386 = vmatpush1.msra.mxu0 %v1349
        %2387 = vmatprep.subr.mxu0 %v1354
        %2388 = vmatpush1.msra.mxu0 %v1353
        %2389 = vmatprep.subr.mxu0 %v1358
        %2390 = vmatpush1.msra.mxu0 %v1357
        %2391 = vmatprep.subr.mxu0 %v1362
        %2392 = vmatpush1.msra.mxu0 %v1361
        %2393 = vmatprep.subr.mxu0 %v1366
        %2394 = vmatpush1.msra.mxu0 %v1365
        %2395 = vmatprep.subr.mxu0 %v1370
        %2396 = vmatpush1.msra.mxu0 %v1369
        %2397 = vmatprep.subr.mxu0 %v1374
        %2398 = vmatpush1.msra.mxu0 %v1373
        %2399 = vmatprep.subr.mxu0 %v1378
        %2400 = vmatpush1.msra.mxu0 %v1377
        %2401 = vmatprep.subr.mxu0 %v1382
        %2402 = vmatpush1.msra.mxu0 %v1381
        %2403 = vmatprep.subr.mxu0 %v1386
        %2404 = vmatpush1.msra.mxu0 %v1385
        %2405 = vmatprep.subr.mxu0 %v1390
        %2406 = vmatpush1.msra.mxu0 %v1389
        %2407 = vmatprep.subr.mxu0 %v1394
        %2408 = vmatpush1.msra.mxu0 %v1393
        %2409 = vmatprep.subr.mxu0 %v1398
        %2410 = vmatpush1.msra.mxu0 %v1397
        %2411 = vmatprep.subr.mxu0 %v1402
        %2412 = vmatpush1.msra.mxu0 %v1401
        %2413 = vmatprep.subr.mxu0 %v1406
        %2414 = vmatpush1.msra.mxu0 %v1405
        %2415 = vmatprep.subr.mxu0 %v1410
        %2416 = vmatpush1.msra.mxu0 %v1409
        %2417 = vmatprep.subr.mxu0 %v1414
        %2418 = vmatpush1.msra.mxu0 %v1413
        %2419 = vmatprep.subr.mxu0 %v1418
        %2420 = vmatpush1.msra.mxu0 %v1417
        %2421 = vmatprep.subr.mxu0 %v1422
        %2422 = vmatpush1.msra.mxu0 %v1421
        %2423 = vmatprep.subr.mxu0 %v1426
        %2424 = vmatpush1.msra.mxu0 %v1425
        %2425 = vmatprep.subr.mxu0 %v1430
        %2426 = vmatpush1.msra.mxu0 %v1429
        %2427 = vmatprep.subr.mxu0 %v1434
        %2428 = vmatpush1.msra.mxu0 %v1433
        %2429 = vmatprep.subr.mxu0 %v1438
        %2430 = vmatpush1.msra.mxu0 %v1437
        %2431 = vmatprep.subr.mxu0 %v1442
        %2432 = vmatpush1.msra.mxu0 %v1441
        %2433 = vmatprep.subr.mxu0 %v1446
        %2434 = vmatpush1.msra.mxu0 %v1445
        %2435 = vmatprep.subr.mxu0 %v1450
        %2436 = vmatpush1.msra.mxu0 %v1449
        %2437 = vmatprep.subr.mxu0 %v1454
        %2438 = vmatpush1.msra.mxu0 %v1453
        %2439 = vmatprep.mubr.f32.mxu0 %v800
        %2440 = vmatmul.mubr.f32.gmra.mrb[0].mxu0 %v799
        %v2441 = vpop.f32.mrb[0].mxu0
        %v2442 = vadd.f32 %v2365, %v2441
        %v2443 = vpop.f32.mrb[0].mxu0
        %v2444 = vadd.f32 %v2367, %v2443
        %2445 = vmatprep.mubr.f32.mxu0 %v812
        %2446 = vmatmul.mubr.f32.gmra.mrb[0].mxu0 %v811
        %v2447 = vpop.f32.mrb[0].mxu0
        %v2448 = vadd.f32 %v2371, %v2447
        %v2449 = vpop.f32.mrb[0].mxu0
        %v2450 = vadd.f32 %v2373, %v2449
        %2451 = vdwg.mxu0
        %2452 = vmatprep.subr.mxu0 %v1458
        %2453 = vmatpush1.msra.mxu0 %v1457
        %2454 = vmatprep.subr.mxu0 %v1462
        %2455 = vmatpush1.msra.mxu0 %v1461
        %2456 = vmatprep.subr.mxu0 %v1466
        %2457 = vmatpush1.msra.mxu0 %v1465
        %2458 = vmatprep.subr.mxu0 %v1470
        %2459 = vmatpush1.msra.mxu0 %v1469
        %2460 = vmatprep.subr.mxu0 %v1474
        %2461 = vmatpush1.msra.mxu0 %v1473
        %2462 = vmatprep.subr.mxu0 %v1478
        %2463 = vmatpush1.msra.mxu0 %v1477
        %2464 = vmatprep.subr.mxu0 %v1482
        %2465 = vmatpush1.msra.mxu0 %v1481
        %2466 = vmatprep.subr.mxu0 %v1486
        %2467 = vmatpush1.msra.mxu0 %v1485
        %2468 = vmatprep.subr.mxu0 %v1490
        %2469 = vmatpush1.msra.mxu0 %v1489
        %2470 = vmatprep.subr.mxu0 %v1494
        %2471 = vmatpush1.msra.mxu0 %v1493
        %2472 = vmatprep.subr.mxu0 %v1498
        %2473 = vmatpush1.msra.mxu0 %v1497
        %2474 = vmatprep.subr.mxu0 %v1502
        %2475 = vmatpush1.msra.mxu0 %v1501
        %2476 = vmatprep.subr.mxu0 %v1506
        %2477 = vmatpush1.msra.mxu0 %v1505
        %2478 = vmatprep.subr.mxu0 %v1510
        %2479 = vmatpush1.msra.mxu0 %v1509
        %2480 = vmatprep.subr.mxu0 %v1514
        %2481 = vmatpush1.msra.mxu0 %v1513
        %2482 = vmatprep.subr.mxu0 %v1518
        %2483 = vmatpush1.msra.mxu0 %v1517
        %2484 = vmatprep.subr.mxu0 %v1522
        %2485 = vmatpush1.msra.mxu0 %v1521
        %2486 = vmatprep.subr.mxu0 %v1526
        %2487 = vmatpush1.msra.mxu0 %v1525
        %2488 = vmatprep.subr.mxu0 %v1530
        %2489 = vmatpush1.msra.mxu0 %v1529
        %2490 = vmatprep.subr.mxu0 %v1534
        %2491 = vmatpush1.msra.mxu0 %v1533
        %2492 = vmatprep.subr.mxu0 %v1538
        %2493 = vmatpush1.msra.mxu0 %v1537
        %2494 = vmatprep.subr.mxu0 %v1542
        %2495 = vmatpush1.msra.mxu0 %v1541
        %2496 = vmatprep.subr.mxu0 %v1546
        %2497 = vmatpush1.msra.mxu0 %v1545
        %2498 = vmatprep.subr.mxu0 %v1550
        %2499 = vmatpush1.msra.mxu0 %v1549
        %2500 = vmatprep.subr.mxu0 %v1554
        %2501 = vmatpush1.msra.mxu0 %v1553
        %2502 = vmatprep.subr.mxu0 %v1558
        %2503 = vmatpush1.msra.mxu0 %v1557
        %2504 = vmatprep.subr.mxu0 %v1562
        %2505 = vmatpush1.msra.mxu0 %v1561
        %2506 = vmatprep.subr.mxu0 %v1566
        %2507 = vmatpush1.msra.mxu0 %v1565
        %2508 = vmatprep.subr.mxu0 %v1570
        %2509 = vmatpush1.msra.mxu0 %v1569
        %2510 = vmatprep.subr.mxu0 %v1574
        %2511 = vmatpush1.msra.mxu0 %v1573
        %2512 = vmatprep.subr.mxu0 %v1578
        %2513 = vmatpush1.msra.mxu0 %v1577
        %2514 = vmatprep.subr.mxu0 %v1582
        %2515 = vmatpush1.msra.mxu0 %v1581
        %2516 = vmatprep.mubr.f32.mxu0 %v802
        %2517 = vmatmul.mubr.f32.gmra.mrb[0].mxu0 %v801
        %v2518 = vpop.f32.mrb[0].mxu0
        %v2519 = vadd.f32 %v2442, %v2518
        %v2520 = vpop.f32.mrb[0].mxu0
        %v2521 = vadd.f32 %v2444, %v2520
        %2522 = vmatprep.mubr.f32.mxu0 %v814
        %2523 = vmatmul.mubr.f32.gmra.mrb[0].mxu0 %v813
        %v2524 = vpop.f32.mrb[0].mxu0
        %v2525 = vadd.f32 %v2448, %v2524
        %v2526 = vpop.f32.mrb[0].mxu0
        %v2527 = vadd.f32 %v2450, %v2526
        %2528 = vdwg.mxu0
        %v2529 = vmax.f32 %v2057, 0.0
        %v2530 = vmax.f32 %v2059, 0.0
        %v2531 = vmax.f32 %v2519, 0.0
        %v2532 = vmax.f32 %v2521, 0.0
        %v2533 = vmax.f32 %v2063, 0.0
        %v2534 = vmax.f32 %v2065, 0.0
        %v2535 = vmax.f32 %v2525, 0.0
        %v2536 = vmax.f32 %v2527, 0.0
        %2537 = vst [vmem:[%s279] sm:$0xff] %v2529
        %2538 = vst [vmem:[%s279 + $0x8] sm:$0xff] %v2530
        %2539 = vst [vmem:[%s279 + $0x10] sm:$0xff] %v2531
        %2540 = vst [vmem:[%s279 + $0x18] sm:$0xff] %v2532
        %2541 = vst [vmem:[%s279 + $0x20] sm:$0xff] %v2533
        %2542 = vst [vmem:[%s279 + $0x28] sm:$0xff] %v2534
        %2543 = vst [vmem:[%s279 + $0x30] sm:$0xff] %v2535
        %2544 = vst [vmem:[%s279 + $0x38] sm:$0xff] %v2536
        %p2545 = scmp.lt.s32.totalorder %s19, 1
        %s2546 = scalar_select %p2545, %s19, 1
        %s2547 = smul.addr %s2546, 8
        %s2548 = smul.addr %s2547, 8
        %s2549 = scalar_lea.vmem %s5, %s2548
        // Predicated region
        $region57: #{m1_forward.1} parent=39 // pred_check
          %p2550 = pneg %p147
        $region58: #{m1_forward.1} parent=39 // pred_check_branch
          %2552 = sbr.rel (%p2550) target = $region60
        $region59: #{m1_forward.1} parent=39 // pred_region
          _
        $region60: #{m1_forward.1} parent=39 // pred_fallthru
          _
      $region40: #{m1_forward.1} parent=5 // pred_fallthru
        _
      %p2553 = scmp.le.s32.totalorder 2, %s14
      // Predicated region
      $region61: #{m1_forward.1} parent=5 // pred_check
        %p2554 = pneg %p2553
      $region62: #{m1_forward.1} parent=5 // pred_check_branch
        %2556 = sbr.rel (%p2554) target = $region64
      $region63: #{m1_forward.1} parent=5 // pred_region
        %s2557 = ssub.s32 %s14, 2
        // Predicated region
        $region65: #{m1_forward.1} parent=63 // pred_check
          %p2558 = pneg %p153
        $region66: #{m1_forward.1} parent=63 // pred_check_branch
          %2560 = sbr.rel (%p2558) target = $region68
        $region67: #{m1_forward.1} parent=63 // pred_region
          %p2561 = scmp.lt.s32.totalorder %s20, 1
          %s2562 = scalar_select %p2561, %s20, 1
          %s2563 = smul.addr %s2562, 8
          %s2564 = smul.addr %s2563, 8
          %s2565 = scalar_lea.vmem %s5, %s2564
        $region68: #{m1_forward.1} parent=63 // pred_fallthru
          _
      $region64: #{m1_forward.1} parent=5 // pred_fallthru
        _
    $region6: #{m1_forward.1} parent=1 // loop_footer
      %s18 = sadd.s32 1, %s14
    $region7: #{m1_forward.1} parent=1 // loop_footer_branch
      %13 = sbr.rel target = $region3
    $region8: #{m1_forward.1} parent=1 // loop_exit
      _
    %2566 = vsyncpa [#allocation7], 1
    %s2567 = scalar_lea.sflag [#allocation7], 1
    %2568 = vsyncpa %s2567, 1
    %2569 = vsyncpa [#allocation9], 1
    %2570 = vsyncpa [#allocation12], 1

</llo_original>
